<compile_context>
chip_gen: v6e
topology: v6e:2x2x1
jax: 0.10.0
libtpu: 0.0.40
codegen_flags: <defaults>
</compile_context>

<pallas_src>
import functools

import numpy as np
import jax
import jax.numpy as jnp
from jax.experimental import pallas as pl
from jax.experimental.pallas import tpu as pltpu

NEG_SLOPE = 0.01   # torch.nn.LeakyReLU default in the module
QT = 512           # output lanes (spatial positions) per in-kernel GEMM tile


def _round_up(x, m):
    return (x + m - 1) // m * m


def _fused_double_conv3_kernel(x_ref, w1_ref, b1_ref, w2_ref, b2_ref, m_ref,
                               o_ref, y1_ref, xc1_ref, xc2_ref,
                               *, taps, q_pad, cin_p, cmid_p, off, margin):
    """One batch element; both Conv3d(k=3,p=1)+LeakyReLU stages fused.

    x_ref : (cin_p,  P_ext)    bf16  zero-padded input volume, flat padded coords
    w1_ref: (cmid_p, 27*cin_p) bf16  packed conv1 weight (taps folded into K)
    b1_ref: (cmid_p, 1)        f32
    w2_ref: (cmid_p, 27*cmid_p)bf16  packed conv2 weight
    b2_ref: (cmid_p, 1)        f32
    m_ref : (1, q_pad)         f32   1.0 at valid output positions else 0.0
    o_ref : (cmid_p, q_pad)    f32   conv2 output (garbage at masked positions)
    y1_ref: (cmid_p, P_ext)    bf16  scratch: conv1 output as zero-padded volume
    xc1/xc2: (27*cin_p, QT) / (27*cmid_p, QT) bf16 scratch: folded-tap slabs
    """
    # Zero the intermediate buffer: conv2's halo reads land in its margins.
    y1_ref[...] = jnp.zeros_like(y1_ref)

    # ---------- conv1 + LeakyReLU -> zero-padded intermediate volume (VMEM) ----
    for q0 in range(0, q_pad, QT):
        for t, s in enumerate(taps):                       # fold 27 taps into K
            xc1_ref[pl.ds(t * cin_p, cin_p), :] = x_ref[:, pl.ds(q0 + s, QT)]
        acc = jnp.dot(w1_ref[...], xc1_ref[...],
                      preferred_element_type=jnp.float32)  # (cmid_p, QT) f32
        acc = acc + b1_ref[...]
        acc = jnp.where(acc >= 0, acc, NEG_SLOPE * acc)    # LeakyReLU(0.01)
        acc = acc * m_ref[:, pl.ds(q0, QT)]                # zero pad/garbage rows
        y1_ref[:, pl.ds(margin + q0, QT)] = acc.astype(y1_ref.dtype)

    # ---------- conv2 + LeakyReLU -> output ------------------------------------
    shift = margin - off   # lane of padded-volume coordinate 0 inside y1
    for q0 in range(0, q_pad, QT):
        for t, s in enumerate(taps):
            xc2_ref[pl.ds(t * cmid_p, cmid_p), :] = \
                y1_ref[:, pl.ds(q0 + s + shift, QT)]
        acc = jnp.dot(w2_ref[...], xc2_ref[...],
                      preferred_element_type=jnp.float32)
        acc = acc + b2_ref[...]
        acc = jnp.where(acc >= 0, acc, NEG_SLOPE * acc)
        o_ref[:, pl.ds(q0, QT)] = acc.astype(o_ref.dtype)


def pack_params(params):
    """One-time packing of PyTorch-layout Conv3d params into MXU-friendly form.

    Weight (Cout, Cin, 3, 3, 3) -> (Cout_p, 27*Cin_p) bf16 with column index
    ((kd*3+kh)*3+kw)*Cin_p + ci, matching the in-kernel tap fold.
    """
    w1, b1, w2, b2 = params["w1"], params["b1"], params["w2"], params["b2"]
    out_ch, in_ch = w1.shape[0], w1.shape[1]
    cin_p = _round_up(in_ch, 8)
    cmid_p = _round_up(out_ch, 8)

    def pack_w(w, ci_p, co_p):
        co, ci = w.shape[0], w.shape[1]
        w = jnp.pad(w, ((0, co_p - co), (0, ci_p - ci), (0, 0), (0, 0), (0, 0)))
        w = jnp.transpose(w, (0, 2, 3, 4, 1))              # (co_p, kd, kh, kw, ci_p)
        return w.reshape(co_p, 27 * ci_p).astype(jnp.bfloat16)

    def pack_b(b, co_p):
        co = b.shape[0]
        return jnp.pad(b, (0, co_p - co)).astype(jnp.float32).reshape(co_p, 1)

    return {"w1": pack_w(w1, cin_p, cmid_p), "b1": pack_b(b1, cmid_p),
            "w2": pack_w(w2, cmid_p, cmid_p), "b2": pack_b(b2, cmid_p)}


def unet_box_forward(x, packed, *, out_ch):
    """x: (N, Cin, D, H, W) f32 (PyTorch NCDHW) -> (N, out_ch, D, H, W) f32."""
    N, Cin, D, H, W = x.shape
    cin_p = _round_up(Cin, 8)
    cmid_p = packed["w1"].shape[0]
    Dp, Hp, Wp = D + 2, H + 2, W + 2
    hw = Hp * Wp
    q_valid = D * hw                          # output rows in padded-flat coords
    q_pad = _round_up(q_valid, QT)
    off = hw + Wp + 1                         # flat offset of padded coord (1,1,1)
    margin = _round_up(off, 128)              # zero left-margin of intermediate
    max_tap = 2 * hw + 2 * Wp + 2
    p_ext = _round_up(margin - off + q_pad + max_tap, 128)
    taps = tuple(kd * hw + kh * Wp + kw
                 for kd in range(3) for kh in range(3) for kw in range(3))

    # Channels-first is exactly the kernel layout (channels->sublanes,
    # flattened padded spatial->lanes): pad channels to x8, spatial by 1, cast bf16.
    xp = jnp.pad(x, ((0, 0), (0, cin_p - Cin), (1, 1), (1, 1), (1, 1)))
    xflat = xp.reshape(N, cin_p, Dp * hw)
    xflat = jnp.pad(xflat, ((0, 0), (0, 0), (0, p_ext - Dp * hw)))
    xflat = xflat.astype(jnp.bfloat16)

    # Validity mask over output lanes: zero at H/W-pad garbage rows and q_pad tail.
    qi = jnp.arange(q_pad, dtype=jnp.int32)
    mask = ((qi // hw < D) & ((qi // Wp) % Hp < H) & (qi % Wp < W))
    mask = mask.astype(jnp.float32)[None, :]

    kernel = functools.partial(
        _fused_double_conv3_kernel, taps=taps, q_pad=q_pad,
        cin_p=cin_p, cmid_p=cmid_p, off=off, margin=margin)

    out = pl.pallas_call(
        kernel,
        out_shape=jax.ShapeDtypeStruct((N, cmid_p, q_pad), jnp.float32),
        grid_spec=pltpu.PrefetchScalarGridSpec(
            num_scalar_prefetch=0,
            grid=(N,),
            in_specs=[
                pl.BlockSpec((None, cin_p, p_ext), lambda n: (n, 0, 0)),
                pl.BlockSpec((cmid_p, 27 * cin_p), lambda n: (0, 0)),
                pl.BlockSpec((cmid_p, 1), lambda n: (0, 0)),
                pl.BlockSpec((cmid_p, 27 * cmid_p), lambda n: (0, 0)),
                pl.BlockSpec((cmid_p, 1), lambda n: (0, 0)),
                pl.BlockSpec((1, q_pad), lambda n: (0, 0)),
            ],
            out_specs=pl.BlockSpec((None, cmid_p, q_pad), lambda n: (n, 0, 0)),
            scratch_shapes=[
                pltpu.VMEM((cmid_p, p_ext), jnp.bfloat16),        # intermediate
                pltpu.VMEM((27 * cin_p, QT), jnp.bfloat16),       # conv1 im2col
                pltpu.VMEM((27 * cmid_p, QT), jnp.bfloat16),      # conv2 im2col
            ],
        ),
        compiler_params=pltpu.CompilerParams(dimension_semantics=("parallel",)),
    )(xflat, packed["w1"], packed["b1"], packed["w2"], packed["b2"], mask)

    # Strip channel padding, the q_pad tail and the H/W-pad garbage rows (glue).
    out = out[:, :out_ch, :q_valid].reshape(N, out_ch, D, Hp, Wp)[:, :, :, :H, :W]
    return out


def init_params(key, in_ch, out_ch):
    """Deterministic init mimicking PyTorch Conv3d defaults (PyTorch OIDHW layout)."""
    k1, k2, k3, k4 = jax.random.split(key, 4)
    bd1 = 1.0 / np.sqrt(in_ch * 27)
    w1 = jax.random.uniform(k1, (out_ch, in_ch, 3, 3, 3), jnp.float32, -bd1, bd1)
    b1 = jax.random.uniform(k2, (out_ch,), jnp.float32, -bd1, bd1)
    bd2 = 1.0 / np.sqrt(out_ch * 27)
    w2 = jax.random.uniform(k3, (out_ch, out_ch, 3, 3, 3), jnp.float32, -bd2, bd2)
    b2 = jax.random.uniform(k4, (out_ch,), jnp.float32, -bd2, bd2)
    return {"w1": w1, "b1": b1, "w2": w2, "b2": b2}


def _ref_forward(x, params):
    """Pure-JAX reference (XLA conv) for validation."""
    dn = jax.lax.conv_dimension_numbers(
        x.shape, params["w1"].shape, ("NCDHW", "OIDHW", "NCDHW"))

    def conv(z, w, b):
        y = jax.lax.conv_general_dilated(
            z, w, (1, 1, 1), [(1, 1)] * 3, dimension_numbers=dn)
        y = y + b[None, :, None, None, None]
        return jnp.where(y >= 0, y, NEG_SLOPE * y)

    y = conv(x, params["w1"], params["b1"])
    return conv(y, params["w2"], params["b2"])


if __name__ == "__main__":
    key = jax.random.PRNGKey(0)
    kx, kp = jax.random.split(key)

    # small shapes: batch=2, in_ch=4, out_ch=8, spatial 8^3 (PyTorch NCDHW)
    N, Cin, Cout, D, H, W = 2, 4, 8, 8, 8, 8
    x = jax.random.normal(kx, (N, Cin, D, H, W), jnp.float32)
    params = init_params(kp, Cin, Cout)
    packed = pack_params(params)          # one-time weight pack/pad (outside jit)

    fwd = jax.jit(functools.partial(unet_box_forward, out_ch=Cout))
    out = jax.block_until_ready(fwd(x, packed))
    assert out.shape == (N, Cout, D, H, W)

    ref = jax.block_until_ready(_ref_forward(x, params))
    np.testing.assert_allclose(np.asarray(out), np.asarray(ref),
                               rtol=2e-2, atol=2e-2)
    print("KERNEL_OK")
</pallas_src>

<mosaic_0001>
module attributes {stable_mosaic.version = 11 : i64} {
  func.func @_fused_double_conv3_kernel(%arg0: i32, %arg1: memref<1x8x1280xbf16, #tpu.memory_space<vmem>>, %arg2: memref<8x216xbf16, #tpu.memory_space<vmem>>, %arg3: memref<8x1xf32, #tpu.memory_space<vmem>>, %arg4: memref<8x216xbf16, #tpu.memory_space<vmem>>, %arg5: memref<8x1xf32, #tpu.memory_space<vmem>>, %arg6: memref<1x1024xf32, #tpu.memory_space<vmem>>, %arg7: memref<1x8x1024xf32, #tpu.memory_space<vmem>>, %arg8: memref<8x1280xbf16, #tpu.memory_space<vmem>>, %arg9: memref<216x512xbf16, #tpu.memory_space<vmem>>, %arg10: memref<216x512xbf16, #tpu.memory_space<vmem>>) attributes {dimension_semantics = [#tpu.dimension_semantics<parallel>], iteration_bounds = array<i64: 2>, scalar_prefetch = 0 : i64, scratch_operands = 3 : i64, tpu.core_type = #tpu.core_type<tc>, window_params = [{transform_indices = @transform_0, window_bounds = array<i64: 1, 8, 1280>}, {pipeline_mode = #tpu.pipeline_mode<synchronous>, transform_indices = @transform_1, window_bounds = array<i64: 8, 216>}, {pipeline_mode = #tpu.pipeline_mode<synchronous>, transform_indices = @transform_2, window_bounds = array<i64: 8, 1>}, {pipeline_mode = #tpu.pipeline_mode<synchronous>, transform_indices = @transform_3, window_bounds = array<i64: 8, 216>}, {pipeline_mode = #tpu.pipeline_mode<synchronous>, transform_indices = @transform_4, window_bounds = array<i64: 8, 1>}, {pipeline_mode = #tpu.pipeline_mode<synchronous>, transform_indices = @transform_5, window_bounds = array<i64: 1, 1024>}, {transform_indices = @transform_6, window_bounds = array<i64: 1, 8, 1024>}]} {
    %cst = arith.constant 0.000000e+00 : bf16
    %0 = vector.broadcast %cst : bf16 to vector<8x1280xbf16>
    %c0 = arith.constant 0 : index
    %c0_0 = arith.constant 0 : index
    %1 = vector.load %arg8[%c0, %c0_0] : memref<8x1280xbf16, #tpu.memory_space<vmem>>, vector<8x1280xbf16>
    tpu.vector_store %arg8[%c0, %c0_0], %0 {strides = array<i32>} : memref<8x1280xbf16, #tpu.memory_space<vmem>>, vector<8x1280xbf16>,
    %c0_1 = arith.constant 0 : index
    %c0_2 = arith.constant 0 : index
    %c0_3 = arith.constant 0 : index
    %2 = vector.load %arg1[%c0_1, %c0_2, %c0_3] : memref<1x8x1280xbf16, #tpu.memory_space<vmem>>, vector<1x8x512xbf16>
    %3 = vector.shape_cast %2 : vector<1x8x512xbf16> to vector<8x512xbf16>
    %c0_4 = arith.constant 0 : index
    %c0_5 = arith.constant 0 : index
    %4 = vector.load %arg9[%c0_4, %c0_5] : memref<216x512xbf16, #tpu.memory_space<vmem>>, vector<8x512xbf16>
    tpu.vector_store %arg9[%c0_4, %c0_5], %3 {strides = array<i32>} : memref<216x512xbf16, #tpu.memory_space<vmem>>, vector<8x512xbf16>,
    %c0_6 = arith.constant 0 : index
    %c0_7 = arith.constant 0 : index
    %c1 = arith.constant 1 : index
    %5 = vector.load %arg1[%c0_6, %c0_7, %c1] : memref<1x8x1280xbf16, #tpu.memory_space<vmem>>, vector<1x8x512xbf16>
    %6 = vector.shape_cast %5 : vector<1x8x512xbf16> to vector<8x512xbf16>
    %c8 = arith.constant 8 : index
    %c0_8 = arith.constant 0 : index
    %7 = vector.load %arg9[%c8, %c0_8] : memref<216x512xbf16, #tpu.memory_space<vmem>>, vector<8x512xbf16>
    tpu.vector_store %arg9[%c8, %c0_8], %6 {strides = array<i32>} : memref<216x512xbf16, #tpu.memory_space<vmem>>, vector<8x512xbf16>,
    %c0_9 = arith.constant 0 : index
    %c0_10 = arith.constant 0 : index
    %c2 = arith.constant 2 : index
    %8 = vector.load %arg1[%c0_9, %c0_10, %c2] : memref<1x8x1280xbf16, #tpu.memory_space<vmem>>, vector<1x8x512xbf16>
    %9 = vector.shape_cast %8 : vector<1x8x512xbf16> to vector<8x512xbf16>
    %c16 = arith.constant 16 : index
    %c0_11 = arith.constant 0 : index
    %10 = vector.load %arg9[%c16, %c0_11] : memref<216x512xbf16, #tpu.memory_space<vmem>>, vector<8x512xbf16>
    tpu.vector_store %arg9[%c16, %c0_11], %9 {strides = array<i32>} : memref<216x512xbf16, #tpu.memory_space<vmem>>, vector<8x512xbf16>,
    %c0_12 = arith.constant 0 : index
    %c0_13 = arith.constant 0 : index
    %c10 = arith.constant 10 : index
    %11 = vector.load %arg1[%c0_12, %c0_13, %c10] : memref<1x8x1280xbf16, #tpu.memory_space<vmem>>, vector<1x8x512xbf16>
    %12 = vector.shape_cast %11 : vector<1x8x512xbf16> to vector<8x512xbf16>
    %c24 = arith.constant 24 : index
    %c0_14 = arith.constant 0 : index
    %13 = vector.load %arg9[%c24, %c0_14] : memref<216x512xbf16, #tpu.memory_space<vmem>>, vector<8x512xbf16>
    tpu.vector_store %arg9[%c24, %c0_14], %12 {strides = array<i32>} : memref<216x512xbf16, #tpu.memory_space<vmem>>, vector<8x512xbf16>,
    %c0_15 = arith.constant 0 : index
    %c0_16 = arith.constant 0 : index
    %c11 = arith.constant 11 : index
    %14 = vector.load %arg1[%c0_15, %c0_16, %c11] : memref<1x8x1280xbf16, #tpu.memory_space<vmem>>, vector<1x8x512xbf16>
    %15 = vector.shape_cast %14 : vector<1x8x512xbf16> to vector<8x512xbf16>
    %c32 = arith.constant 32 : index
    %c0_17 = arith.constant 0 : index
    %16 = vector.load %arg9[%c32, %c0_17] : memref<216x512xbf16, #tpu.memory_space<vmem>>, vector<8x512xbf16>
    tpu.vector_store %arg9[%c32, %c0_17], %15 {strides = array<i32>} : memref<216x512xbf16, #tpu.memory_space<vmem>>, vector<8x512xbf16>,
    %c0_18 = arith.constant 0 : index
    %c0_19 = arith.constant 0 : index
    %c12 = arith.constant 12 : index
    %17 = vector.load %arg1[%c0_18, %c0_19, %c12] : memref<1x8x1280xbf16, #tpu.memory_space<vmem>>, vector<1x8x512xbf16>
    %18 = vector.shape_cast %17 : vector<1x8x512xbf16> to vector<8x512xbf16>
    %c40 = arith.constant 40 : index
    %c0_20 = arith.constant 0 : index
    %19 = vector.load %arg9[%c40, %c0_20] : memref<216x512xbf16, #tpu.memory_space<vmem>>, vector<8x512xbf16>
    tpu.vector_store %arg9[%c40, %c0_20], %18 {strides = array<i32>} : memref<216x512xbf16, #tpu.memory_space<vmem>>, vector<8x512xbf16>,
    %c0_21 = arith.constant 0 : index
    %c0_22 = arith.constant 0 : index
    %c20 = arith.constant 20 : index
    %20 = vector.load %arg1[%c0_21, %c0_22, %c20] : memref<1x8x1280xbf16, #tpu.memory_space<vmem>>, vector<1x8x512xbf16>
    %21 = vector.shape_cast %20 : vector<1x8x512xbf16> to vector<8x512xbf16>
    %c48 = arith.constant 48 : index
    %c0_23 = arith.constant 0 : index
    %22 = vector.load %arg9[%c48, %c0_23] : memref<216x512xbf16, #tpu.memory_space<vmem>>, vector<8x512xbf16>
    tpu.vector_store %arg9[%c48, %c0_23], %21 {strides = array<i32>} : memref<216x512xbf16, #tpu.memory_space<vmem>>, vector<8x512xbf16>,
    %c0_24 = arith.constant 0 : index
    %c0_25 = arith.constant 0 : index
    %c21 = arith.constant 21 : index
    %23 = vector.load %arg1[%c0_24, %c0_25, %c21] : memref<1x8x1280xbf16, #tpu.memory_space<vmem>>, vector<1x8x512xbf16>
    %24 = vector.shape_cast %23 : vector<1x8x512xbf16> to vector<8x512xbf16>
    %c56 = arith.constant 56 : index
    %c0_26 = arith.constant 0 : index
    %25 = vector.load %arg9[%c56, %c0_26] : memref<216x512xbf16, #tpu.memory_space<vmem>>, vector<8x512xbf16>
    tpu.vector_store %arg9[%c56, %c0_26], %24 {strides = array<i32>} : memref<216x512xbf16, #tpu.memory_space<vmem>>, vector<8x512xbf16>,
    %c0_27 = arith.constant 0 : index
    %c0_28 = arith.constant 0 : index
    %c22 = arith.constant 22 : index
    %26 = vector.load %arg1[%c0_27, %c0_28, %c22] : memref<1x8x1280xbf16, #tpu.memory_space<vmem>>, vector<1x8x512xbf16>
    %27 = vector.shape_cast %26 : vector<1x8x512xbf16> to vector<8x512xbf16>
    %c64 = arith.constant 64 : index
    %c0_29 = arith.constant 0 : index
    %28 = vector.load %arg9[%c64, %c0_29] : memref<216x512xbf16, #tpu.memory_space<vmem>>, vector<8x512xbf16>
    tpu.vector_store %arg9[%c64, %c0_29], %27 {strides = array<i32>} : memref<216x512xbf16, #tpu.memory_space<vmem>>, vector<8x512xbf16>,
    %c0_30 = arith.constant 0 : index
    %c0_31 = arith.constant 0 : index
    %c100 = arith.constant 100 : index
    %29 = vector.load %arg1[%c0_30, %c0_31, %c100] : memref<1x8x1280xbf16, #tpu.memory_space<vmem>>, vector<1x8x512xbf16>
    %30 = vector.shape_cast %29 : vector<1x8x512xbf16> to vector<8x512xbf16>
    %c72 = arith.constant 72 : index
    %c0_32 = arith.constant 0 : index
    %31 = vector.load %arg9[%c72, %c0_32] : memref<216x512xbf16, #tpu.memory_space<vmem>>, vector<8x512xbf16>
    tpu.vector_store %arg9[%c72, %c0_32], %30 {strides = array<i32>} : memref<216x512xbf16, #tpu.memory_space<vmem>>, vector<8x512xbf16>,
    %c0_33 = arith.constant 0 : index
    %c0_34 = arith.constant 0 : index
    %c101 = arith.constant 101 : index
    %32 = vector.load %arg1[%c0_33, %c0_34, %c101] : memref<1x8x1280xbf16, #tpu.memory_space<vmem>>, vector<1x8x512xbf16>
    %33 = vector.shape_cast %32 : vector<1x8x512xbf16> to vector<8x512xbf16>
    %c80 = arith.constant 80 : index
    %c0_35 = arith.constant 0 : index
    %34 = vector.load %arg9[%c80, %c0_35] : memref<216x512xbf16, #tpu.memory_space<vmem>>, vector<8x512xbf16>
    tpu.vector_store %arg9[%c80, %c0_35], %33 {strides = array<i32>} : memref<216x512xbf16, #tpu.memory_space<vmem>>, vector<8x512xbf16>,
    %c0_36 = arith.constant 0 : index
    %c0_37 = arith.constant 0 : index
    %c102 = arith.constant 102 : index
    %35 = vector.load %arg1[%c0_36, %c0_37, %c102] : memref<1x8x1280xbf16, #tpu.memory_space<vmem>>, vector<1x8x512xbf16>
    %36 = vector.shape_cast %35 : vector<1x8x512xbf16> to vector<8x512xbf16>
    %c88 = arith.constant 88 : index
    %c0_38 = arith.constant 0 : index
    %37 = vector.load %arg9[%c88, %c0_38] : memref<216x512xbf16, #tpu.memory_space<vmem>>, vector<8x512xbf16>
    tpu.vector_store %arg9[%c88, %c0_38], %36 {strides = array<i32>} : memref<216x512xbf16, #tpu.memory_space<vmem>>, vector<8x512xbf16>,
    %c0_39 = arith.constant 0 : index
    %c0_40 = arith.constant 0 : index
    %c110 = arith.constant 110 : index
    %38 = vector.load %arg1[%c0_39, %c0_40, %c110] : memref<1x8x1280xbf16, #tpu.memory_space<vmem>>, vector<1x8x512xbf16>
    %39 = vector.shape_cast %38 : vector<1x8x512xbf16> to vector<8x512xbf16>
    %c96 = arith.constant 96 : index
    %c0_41 = arith.constant 0 : index
    %40 = vector.load %arg9[%c96, %c0_41] : memref<216x512xbf16, #tpu.memory_space<vmem>>, vector<8x512xbf16>
    tpu.vector_store %arg9[%c96, %c0_41], %39 {strides = array<i32>} : memref<216x512xbf16, #tpu.memory_space<vmem>>, vector<8x512xbf16>,
    %c0_42 = arith.constant 0 : index
    %c0_43 = arith.constant 0 : index
    %c111 = arith.constant 111 : index
    %41 = vector.load %arg1[%c0_42, %c0_43, %c111] : memref<1x8x1280xbf16, #tpu.memory_space<vmem>>, vector<1x8x512xbf16>
    %42 = vector.shape_cast %41 : vector<1x8x512xbf16> to vector<8x512xbf16>
    %c104 = arith.constant 104 : index
    %c0_44 = arith.constant 0 : index
    %43 = vector.load %arg9[%c104, %c0_44] : memref<216x512xbf16, #tpu.memory_space<vmem>>, vector<8x512xbf16>
    tpu.vector_store %arg9[%c104, %c0_44], %42 {strides = array<i32>} : memref<216x512xbf16, #tpu.memory_space<vmem>>, vector<8x512xbf16>,
    %c0_45 = arith.constant 0 : index
    %c0_46 = arith.constant 0 : index
    %c112 = arith.constant 112 : index
    %44 = vector.load %arg1[%c0_45, %c0_46, %c112] : memref<1x8x1280xbf16, #tpu.memory_space<vmem>>, vector<1x8x512xbf16>
    %45 = vector.shape_cast %44 : vector<1x8x512xbf16> to vector<8x512xbf16>
    %c112_47 = arith.constant 112 : index
    %c0_48 = arith.constant 0 : index
    %46 = vector.load %arg9[%c112_47, %c0_48] : memref<216x512xbf16, #tpu.memory_space<vmem>>, vector<8x512xbf16>
    tpu.vector_store %arg9[%c112_47, %c0_48], %45 {strides = array<i32>} : memref<216x512xbf16, #tpu.memory_space<vmem>>, vector<8x512xbf16>,
    %c0_49 = arith.constant 0 : index
    %c0_50 = arith.constant 0 : index
    %c120 = arith.constant 120 : index
    %47 = vector.load %arg1[%c0_49, %c0_50, %c120] : memref<1x8x1280xbf16, #tpu.memory_space<vmem>>, vector<1x8x512xbf16>
    %48 = vector.shape_cast %47 : vector<1x8x512xbf16> to vector<8x512xbf16>
    %c120_51 = arith.constant 120 : index
    %c0_52 = arith.constant 0 : index
    %49 = vector.load %arg9[%c120_51, %c0_52] : memref<216x512xbf16, #tpu.memory_space<vmem>>, vector<8x512xbf16>
    tpu.vector_store %arg9[%c120_51, %c0_52], %48 {strides = array<i32>} : memref<216x512xbf16, #tpu.memory_space<vmem>>, vector<8x512xbf16>,
    %c0_53 = arith.constant 0 : index
    %c0_54 = arith.constant 0 : index
    %c121 = arith.constant 121 : index
    %50 = vector.load %arg1[%c0_53, %c0_54, %c121] : memref<1x8x1280xbf16, #tpu.memory_space<vmem>>, vector<1x8x512xbf16>
    %51 = vector.shape_cast %50 : vector<1x8x512xbf16> to vector<8x512xbf16>
    %c128 = arith.constant 128 : index
    %c0_55 = arith.constant 0 : index
    %52 = vector.load %arg9[%c128, %c0_55] : memref<216x512xbf16, #tpu.memory_space<vmem>>, vector<8x512xbf16>
    tpu.vector_store %arg9[%c128, %c0_55], %51 {strides = array<i32>} : memref<216x512xbf16, #tpu.memory_space<vmem>>, vector<8x512xbf16>,
    %c0_56 = arith.constant 0 : index
    %c0_57 = arith.constant 0 : index
    %c122 = arith.constant 122 : index
    %53 = vector.load %arg1[%c0_56, %c0_57, %c122] : memref<1x8x1280xbf16, #tpu.memory_space<vmem>>, vector<1x8x512xbf16>
    %54 = vector.shape_cast %53 : vector<1x8x512xbf16> to vector<8x512xbf16>
    %c136 = arith.constant 136 : index
    %c0_58 = arith.constant 0 : index
    %55 = vector.load %arg9[%c136, %c0_58] : memref<216x512xbf16, #tpu.memory_space<vmem>>, vector<8x512xbf16>
    tpu.vector_store %arg9[%c136, %c0_58], %54 {strides = array<i32>} : memref<216x512xbf16, #tpu.memory_space<vmem>>, vector<8x512xbf16>,
    %c0_59 = arith.constant 0 : index
    %c0_60 = arith.constant 0 : index
    %c200 = arith.constant 200 : index
    %56 = vector.load %arg1[%c0_59, %c0_60, %c200] : memref<1x8x1280xbf16, #tpu.memory_space<vmem>>, vector<1x8x512xbf16>
    %57 = vector.shape_cast %56 : vector<1x8x512xbf16> to vector<8x512xbf16>
    %c144 = arith.constant 144 : index
    %c0_61 = arith.constant 0 : index
    %58 = vector.load %arg9[%c144, %c0_61] : memref<216x512xbf16, #tpu.memory_space<vmem>>, vector<8x512xbf16>
    tpu.vector_store %arg9[%c144, %c0_61], %57 {strides = array<i32>} : memref<216x512xbf16, #tpu.memory_space<vmem>>, vector<8x512xbf16>,
    %c0_62 = arith.constant 0 : index
    %c0_63 = arith.constant 0 : index
    %c201 = arith.constant 201 : index
    %59 = vector.load %arg1[%c0_62, %c0_63, %c201] : memref<1x8x1280xbf16, #tpu.memory_space<vmem>>, vector<1x8x512xbf16>
    %60 = vector.shape_cast %59 : vector<1x8x512xbf16> to vector<8x512xbf16>
    %c152 = arith.constant 152 : index
    %c0_64 = arith.constant 0 : index
    %61 = vector.load %arg9[%c152, %c0_64] : memref<216x512xbf16, #tpu.memory_space<vmem>>, vector<8x512xbf16>
    tpu.vector_store %arg9[%c152, %c0_64], %60 {strides = array<i32>} : memref<216x512xbf16, #tpu.memory_space<vmem>>, vector<8x512xbf16>,
    %c0_65 = arith.constant 0 : index
    %c0_66 = arith.constant 0 : index
    %c202 = arith.constant 202 : index
    %62 = vector.load %arg1[%c0_65, %c0_66, %c202] : memref<1x8x1280xbf16, #tpu.memory_space<vmem>>, vector<1x8x512xbf16>
    %63 = vector.shape_cast %62 : vector<1x8x512xbf16> to vector<8x512xbf16>
    %c160 = arith.constant 160 : index
    %c0_67 = arith.constant 0 : index
    %64 = vector.load %arg9[%c160, %c0_67] : memref<216x512xbf16, #tpu.memory_space<vmem>>, vector<8x512xbf16>
    tpu.vector_store %arg9[%c160, %c0_67], %63 {strides = array<i32>} : memref<216x512xbf16, #tpu.memory_space<vmem>>, vector<8x512xbf16>,
    %c0_68 = arith.constant 0 : index
    %c0_69 = arith.constant 0 : index
    %c210 = arith.constant 210 : index
    %65 = vector.load %arg1[%c0_68, %c0_69, %c210] : memref<1x8x1280xbf16, #tpu.memory_space<vmem>>, vector<1x8x512xbf16>
    %66 = vector.shape_cast %65 : vector<1x8x512xbf16> to vector<8x512xbf16>
    %c168 = arith.constant 168 : index
    %c0_70 = arith.constant 0 : index
    %67 = vector.load %arg9[%c168, %c0_70] : memref<216x512xbf16, #tpu.memory_space<vmem>>, vector<8x512xbf16>
    tpu.vector_store %arg9[%c168, %c0_70], %66 {strides = array<i32>} : memref<216x512xbf16, #tpu.memory_space<vmem>>, vector<8x512xbf16>,
    %c0_71 = arith.constant 0 : index
    %c0_72 = arith.constant 0 : index
    %c211 = arith.constant 211 : index
    %68 = vector.load %arg1[%c0_71, %c0_72, %c211] : memref<1x8x1280xbf16, #tpu.memory_space<vmem>>, vector<1x8x512xbf16>
    %69 = vector.shape_cast %68 : vector<1x8x512xbf16> to vector<8x512xbf16>
    %c176 = arith.constant 176 : index
    %c0_73 = arith.constant 0 : index
    %70 = vector.load %arg9[%c176, %c0_73] : memref<216x512xbf16, #tpu.memory_space<vmem>>, vector<8x512xbf16>
    tpu.vector_store %arg9[%c176, %c0_73], %69 {strides = array<i32>} : memref<216x512xbf16, #tpu.memory_space<vmem>>, vector<8x512xbf16>,
    %c0_74 = arith.constant 0 : index
    %c0_75 = arith.constant 0 : index
    %c212 = arith.constant 212 : index
    %71 = vector.load %arg1[%c0_74, %c0_75, %c212] : memref<1x8x1280xbf16, #tpu.memory_space<vmem>>, vector<1x8x512xbf16>
    %72 = vector.shape_cast %71 : vector<1x8x512xbf16> to vector<8x512xbf16>
    %c184 = arith.constant 184 : index
    %c0_76 = arith.constant 0 : index
    %73 = vector.load %arg9[%c184, %c0_76] : memref<216x512xbf16, #tpu.memory_space<vmem>>, vector<8x512xbf16>
    tpu.vector_store %arg9[%c184, %c0_76], %72 {strides = array<i32>} : memref<216x512xbf16, #tpu.memory_space<vmem>>, vector<8x512xbf16>,
    %c0_77 = arith.constant 0 : index
    %c0_78 = arith.constant 0 : index
    %c220 = arith.constant 220 : index
    %74 = vector.load %arg1[%c0_77, %c0_78, %c220] : memref<1x8x1280xbf16, #tpu.memory_space<vmem>>, vector<1x8x512xbf16>
    %75 = vector.shape_cast %74 : vector<1x8x512xbf16> to vector<8x512xbf16>
    %c192 = arith.constant 192 : index
    %c0_79 = arith.constant 0 : index
    %76 = vector.load %arg9[%c192, %c0_79] : memref<216x512xbf16, #tpu.memory_space<vmem>>, vector<8x512xbf16>
    tpu.vector_store %arg9[%c192, %c0_79], %75 {strides = array<i32>} : memref<216x512xbf16, #tpu.memory_space<vmem>>, vector<8x512xbf16>,
    %c0_80 = arith.constant 0 : index
    %c0_81 = arith.constant 0 : index
    %c221 = arith.constant 221 : index
    %77 = vector.load %arg1[%c0_80, %c0_81, %c221] : memref<1x8x1280xbf16, #tpu.memory_space<vmem>>, vector<1x8x512xbf16>
    %78 = vector.shape_cast %77 : vector<1x8x512xbf16> to vector<8x512xbf16>
    %c200_82 = arith.constant 200 : index
    %c0_83 = arith.constant 0 : index
    %79 = vector.load %arg9[%c200_82, %c0_83] : memref<216x512xbf16, #tpu.memory_space<vmem>>, vector<8x512xbf16>
    tpu.vector_store %arg9[%c200_82, %c0_83], %78 {strides = array<i32>} : memref<216x512xbf16, #tpu.memory_space<vmem>>, vector<8x512xbf16>,
    %c0_84 = arith.constant 0 : index
    %c0_85 = arith.constant 0 : index
    %c222 = arith.constant 222 : index
    %80 = vector.load %arg1[%c0_84, %c0_85, %c222] : memref<1x8x1280xbf16, #tpu.memory_space<vmem>>, vector<1x8x512xbf16>
    %81 = vector.shape_cast %80 : vector<1x8x512xbf16> to vector<8x512xbf16>
    %c208 = arith.constant 208 : index
    %c0_86 = arith.constant 0 : index
    %82 = vector.load %arg9[%c208, %c0_86] : memref<216x512xbf16, #tpu.memory_space<vmem>>, vector<8x512xbf16>
    tpu.vector_store %arg9[%c208, %c0_86], %81 {strides = array<i32>} : memref<216x512xbf16, #tpu.memory_space<vmem>>, vector<8x512xbf16>,
    %c0_87 = arith.constant 0 : index
    %c0_88 = arith.constant 0 : index
    %83 = vector.load %arg2[%c0_87, %c0_88] : memref<8x216xbf16, #tpu.memory_space<vmem>>, vector<8x216xbf16>
    %c0_89 = arith.constant 0 : index
    %c0_90 = arith.constant 0 : index
    %84 = vector.load %arg9[%c0_89, %c0_90] : memref<216x512xbf16, #tpu.memory_space<vmem>>, vector<216x512xbf16>
    %cst_91 = arith.constant dense<0.000000e+00> : vector<8x512xf32>
    %85 = tpu.matmul %83, %84, %cst_91 {dimension_numbers = #tpu.dot_dimension_numbers<[1], [0], [0], [1], [0, 0, 1, 1], [], []>} : vector<8x216xbf16>, vector<216x512xbf16>, vector<8x512xf32> -> vector<8x512xf32>
    %c0_92 = arith.constant 0 : index
    %c0_93 = arith.constant 0 : index
    %86 = vector.load %arg3[%c0_92, %c0_93] : memref<8x1xf32, #tpu.memory_space<vmem>>, vector<8x1xf32>
    %87 = vector.broadcast %86 : vector<8x1xf32> to vector<8x512xf32>
    %88 = arith.addf %85, %87 : vector<8x512xf32>
    %cst_94 = arith.constant 0.000000e+00 : f32
    %89 = vector.broadcast %cst_94 : f32 to vector<8x512xf32>
    %90 = arith.cmpf oge, %88, %89 : vector<8x512xf32>
    %cst_95 = arith.constant 0.00999999977 : f32
    %91 = vector.broadcast %cst_95 : f32 to vector<8x512xf32>
    %92 = arith.mulf %91, %88 : vector<8x512xf32>
    %93 = arith.select %90, %88, %92 : vector<8x512xi1>, vector<8x512xf32>
    %c0_96 = arith.constant 0 : index
    %c0_97 = arith.constant 0 : index
    %94 = vector.load %arg6[%c0_96, %c0_97] : memref<1x1024xf32, #tpu.memory_space<vmem>>, vector<1x512xf32>
    %95 = vector.broadcast %94 : vector<1x512xf32> to vector<8x512xf32>
    %96 = arith.mulf %93, %95 : vector<8x512xf32>
    %97 = arith.truncf %96 : vector<8x512xf32> to vector<8x512xbf16>
    %c0_98 = arith.constant 0 : index
    %c128_99 = arith.constant 128 : index
    %98 = vector.load %arg8[%c0_98, %c128_99] : memref<8x1280xbf16, #tpu.memory_space<vmem>>, vector<8x512xbf16>
    tpu.vector_store %arg8[%c0_98, %c128_99], %97 {strides = array<i32>} : memref<8x1280xbf16, #tpu.memory_space<vmem>>, vector<8x512xbf16>,
    %c0_100 = arith.constant 0 : index
    %c0_101 = arith.constant 0 : index
    %c512 = arith.constant 512 : index
    %99 = vector.load %arg1[%c0_100, %c0_101, %c512] : memref<1x8x1280xbf16, #tpu.memory_space<vmem>>, vector<1x8x512xbf16>
    %100 = vector.shape_cast %99 : vector<1x8x512xbf16> to vector<8x512xbf16>
    %c0_102 = arith.constant 0 : index
    %c0_103 = arith.constant 0 : index
    %101 = vector.load %arg9[%c0_102, %c0_103] : memref<216x512xbf16, #tpu.memory_space<vmem>>, vector<8x512xbf16>
    tpu.vector_store %arg9[%c0_102, %c0_103], %100 {strides = array<i32>} : memref<216x512xbf16, #tpu.memory_space<vmem>>, vector<8x512xbf16>,
    %c0_104 = arith.constant 0 : index
    %c0_105 = arith.constant 0 : index
    %c513 = arith.constant 513 : index
    %102 = vector.load %arg1[%c0_104, %c0_105, %c513] : memref<1x8x1280xbf16, #tpu.memory_space<vmem>>, vector<1x8x512xbf16>
    %103 = vector.shape_cast %102 : vector<1x8x512xbf16> to vector<8x512xbf16>
    %c8_106 = arith.constant 8 : index
    %c0_107 = arith.constant 0 : index
    %104 = vector.load %arg9[%c8_106, %c0_107] : memref<216x512xbf16, #tpu.memory_space<vmem>>, vector<8x512xbf16>
    tpu.vector_store %arg9[%c8_106, %c0_107], %103 {strides = array<i32>} : memref<216x512xbf16, #tpu.memory_space<vmem>>, vector<8x512xbf16>,
    %c0_108 = arith.constant 0 : index
    %c0_109 = arith.constant 0 : index
    %c514 = arith.constant 514 : index
    %105 = vector.load %arg1[%c0_108, %c0_109, %c514] : memref<1x8x1280xbf16, #tpu.memory_space<vmem>>, vector<1x8x512xbf16>
    %106 = vector.shape_cast %105 : vector<1x8x512xbf16> to vector<8x512xbf16>
    %c16_110 = arith.constant 16 : index
    %c0_111 = arith.constant 0 : index
    %107 = vector.load %arg9[%c16_110, %c0_111] : memref<216x512xbf16, #tpu.memory_space<vmem>>, vector<8x512xbf16>
    tpu.vector_store %arg9[%c16_110, %c0_111], %106 {strides = array<i32>} : memref<216x512xbf16, #tpu.memory_space<vmem>>, vector<8x512xbf16>,
    %c0_112 = arith.constant 0 : index
    %c0_113 = arith.constant 0 : index
    %c522 = arith.constant 522 : index
    %108 = vector.load %arg1[%c0_112, %c0_113, %c522] : memref<1x8x1280xbf16, #tpu.memory_space<vmem>>, vector<1x8x512xbf16>
    %109 = vector.shape_cast %108 : vector<1x8x512xbf16> to vector<8x512xbf16>
    %c24_114 = arith.constant 24 : index
    %c0_115 = arith.constant 0 : index
    %110 = vector.load %arg9[%c24_114, %c0_115] : memref<216x512xbf16, #tpu.memory_space<vmem>>, vector<8x512xbf16>
    tpu.vector_store %arg9[%c24_114, %c0_115], %109 {strides = array<i32>} : memref<216x512xbf16, #tpu.memory_space<vmem>>, vector<8x512xbf16>,
    %c0_116 = arith.constant 0 : index
    %c0_117 = arith.constant 0 : index
    %c523 = arith.constant 523 : index
    %111 = vector.load %arg1[%c0_116, %c0_117, %c523] : memref<1x8x1280xbf16, #tpu.memory_space<vmem>>, vector<1x8x512xbf16>
    %112 = vector.shape_cast %111 : vector<1x8x512xbf16> to vector<8x512xbf16>
    %c32_118 = arith.constant 32 : index
    %c0_119 = arith.constant 0 : index
    %113 = vector.load %arg9[%c32_118, %c0_119] : memref<216x512xbf16, #tpu.memory_space<vmem>>, vector<8x512xbf16>
    tpu.vector_store %arg9[%c32_118, %c0_119], %112 {strides = array<i32>} : memref<216x512xbf16, #tpu.memory_space<vmem>>, vector<8x512xbf16>,
    %c0_120 = arith.constant 0 : index
    %c0_121 = arith.constant 0 : index
    %c524 = arith.constant 524 : index
    %114 = vector.load %arg1[%c0_120, %c0_121, %c524] : memref<1x8x1280xbf16, #tpu.memory_space<vmem>>, vector<1x8x512xbf16>
    %115 = vector.shape_cast %114 : vector<1x8x512xbf16> to vector<8x512xbf16>
    %c40_122 = arith.constant 40 : index
    %c0_123 = arith.constant 0 : index
    %116 = vector.load %arg9[%c40_122, %c0_123] : memref<216x512xbf16, #tpu.memory_space<vmem>>, vector<8x512xbf16>
    tpu.vector_store %arg9[%c40_122, %c0_123], %115 {strides = array<i32>} : memref<216x512xbf16, #tpu.memory_space<vmem>>, vector<8x512xbf16>,
    %c0_124 = arith.constant 0 : index
    %c0_125 = arith.constant 0 : index
    %c532 = arith.constant 532 : index
    %117 = vector.load %arg1[%c0_124, %c0_125, %c532] : memref<1x8x1280xbf16, #tpu.memory_space<vmem>>, vector<1x8x512xbf16>
    %118 = vector.shape_cast %117 : vector<1x8x512xbf16> to vector<8x512xbf16>
    %c48_126 = arith.constant 48 : index
    %c0_127 = arith.constant 0 : index
    %119 = vector.load %arg9[%c48_126, %c0_127] : memref<216x512xbf16, #tpu.memory_space<vmem>>, vector<8x512xbf16>
    tpu.vector_store %arg9[%c48_126, %c0_127], %118 {strides = array<i32>} : memref<216x512xbf16, #tpu.memory_space<vmem>>, vector<8x512xbf16>,
    %c0_128 = arith.constant 0 : index
    %c0_129 = arith.constant 0 : index
    %c533 = arith.constant 533 : index
    %120 = vector.load %arg1[%c0_128, %c0_129, %c533] : memref<1x8x1280xbf16, #tpu.memory_space<vmem>>, vector<1x8x512xbf16>
    %121 = vector.shape_cast %120 : vector<1x8x512xbf16> to vector<8x512xbf16>
    %c56_130 = arith.constant 56 : index
    %c0_131 = arith.constant 0 : index
    %122 = vector.load %arg9[%c56_130, %c0_131] : memref<216x512xbf16, #tpu.memory_space<vmem>>, vector<8x512xbf16>
    tpu.vector_store %arg9[%c56_130, %c0_131], %121 {strides = array<i32>} : memref<216x512xbf16, #tpu.memory_space<vmem>>, vector<8x512xbf16>,
    %c0_132 = arith.constant 0 : index
    %c0_133 = arith.constant 0 : index
    %c534 = arith.constant 534 : index
    %123 = vector.load %arg1[%c0_132, %c0_133, %c534] : memref<1x8x1280xbf16, #tpu.memory_space<vmem>>, vector<1x8x512xbf16>
    %124 = vector.shape_cast %123 : vector<1x8x512xbf16> to vector<8x512xbf16>
    %c64_134 = arith.constant 64 : index
    %c0_135 = arith.constant 0 : index
    %125 = vector.load %arg9[%c64_134, %c0_135] : memref<216x512xbf16, #tpu.memory_space<vmem>>, vector<8x512xbf16>
    tpu.vector_store %arg9[%c64_134, %c0_135], %124 {strides = array<i32>} : memref<216x512xbf16, #tpu.memory_space<vmem>>, vector<8x512xbf16>,
    %c0_136 = arith.constant 0 : index
    %c0_137 = arith.constant 0 : index
    %c612 = arith.constant 612 : index
    %126 = vector.load %arg1[%c0_136, %c0_137, %c612] : memref<1x8x1280xbf16, #tpu.memory_space<vmem>>, vector<1x8x512xbf16>
    %127 = vector.shape_cast %126 : vector<1x8x512xbf16> to vector<8x512xbf16>
    %c72_138 = arith.constant 72 : index
    %c0_139 = arith.constant 0 : index
    %128 = vector.load %arg9[%c72_138, %c0_139] : memref<216x512xbf16, #tpu.memory_space<vmem>>, vector<8x512xbf16>
    tpu.vector_store %arg9[%c72_138, %c0_139], %127 {strides = array<i32>} : memref<216x512xbf16, #tpu.memory_space<vmem>>, vector<8x512xbf16>,
    %c0_140 = arith.constant 0 : index
    %c0_141 = arith.constant 0 : index
    %c613 = arith.constant 613 : index
    %129 = vector.load %arg1[%c0_140, %c0_141, %c613] : memref<1x8x1280xbf16, #tpu.memory_space<vmem>>, vector<1x8x512xbf16>
    %130 = vector.shape_cast %129 : vector<1x8x512xbf16> to vector<8x512xbf16>
    %c80_142 = arith.constant 80 : index
    %c0_143 = arith.constant 0 : index
    %131 = vector.load %arg9[%c80_142, %c0_143] : memref<216x512xbf16, #tpu.memory_space<vmem>>, vector<8x512xbf16>
    tpu.vector_store %arg9[%c80_142, %c0_143], %130 {strides = array<i32>} : memref<216x512xbf16, #tpu.memory_space<vmem>>, vector<8x512xbf16>,
    %c0_144 = arith.constant 0 : index
    %c0_145 = arith.constant 0 : index
    %c614 = arith.constant 614 : index
    %132 = vector.load %arg1[%c0_144, %c0_145, %c614] : memref<1x8x1280xbf16, #tpu.memory_space<vmem>>, vector<1x8x512xbf16>
    %133 = vector.shape_cast %132 : vector<1x8x512xbf16> to vector<8x512xbf16>
    %c88_146 = arith.constant 88 : index
    %c0_147 = arith.constant 0 : index
    %134 = vector.load %arg9[%c88_146, %c0_147] : memref<216x512xbf16, #tpu.memory_space<vmem>>, vector<8x512xbf16>
    tpu.vector_store %arg9[%c88_146, %c0_147], %133 {strides = array<i32>} : memref<216x512xbf16, #tpu.memory_space<vmem>>, vector<8x512xbf16>,
    %c0_148 = arith.constant 0 : index
    %c0_149 = arith.constant 0 : index
    %c622 = arith.constant 622 : index
    %135 = vector.load %arg1[%c0_148, %c0_149, %c622] : memref<1x8x1280xbf16, #tpu.memory_space<vmem>>, vector<1x8x512xbf16>
    %136 = vector.shape_cast %135 : vector<1x8x512xbf16> to vector<8x512xbf16>
    %c96_150 = arith.constant 96 : index
    %c0_151 = arith.constant 0 : index
    %137 = vector.load %arg9[%c96_150, %c0_151] : memref<216x512xbf16, #tpu.memory_space<vmem>>, vector<8x512xbf16>
    tpu.vector_store %arg9[%c96_150, %c0_151], %136 {strides = array<i32>} : memref<216x512xbf16, #tpu.memory_space<vmem>>, vector<8x512xbf16>,
    %c0_152 = arith.constant 0 : index
    %c0_153 = arith.constant 0 : index
    %c623 = arith.constant 623 : index
    %138 = vector.load %arg1[%c0_152, %c0_153, %c623] : memref<1x8x1280xbf16, #tpu.memory_space<vmem>>, vector<1x8x512xbf16>
    %139 = vector.shape_cast %138 : vector<1x8x512xbf16> to vector<8x512xbf16>
    %c104_154 = arith.constant 104 : index
    %c0_155 = arith.constant 0 : index
    %140 = vector.load %arg9[%c104_154, %c0_155] : memref<216x512xbf16, #tpu.memory_space<vmem>>, vector<8x512xbf16>
    tpu.vector_store %arg9[%c104_154, %c0_155], %139 {strides = array<i32>} : memref<216x512xbf16, #tpu.memory_space<vmem>>, vector<8x512xbf16>,
    %c0_156 = arith.constant 0 : index
    %c0_157 = arith.constant 0 : index
    %c624 = arith.constant 624 : index
    %141 = vector.load %arg1[%c0_156, %c0_157, %c624] : memref<1x8x1280xbf16, #tpu.memory_space<vmem>>, vector<1x8x512xbf16>
    %142 = vector.shape_cast %141 : vector<1x8x512xbf16> to vector<8x512xbf16>
    %c112_158 = arith.constant 112 : index
    %c0_159 = arith.constant 0 : index
    %143 = vector.load %arg9[%c112_158, %c0_159] : memref<216x512xbf16, #tpu.memory_space<vmem>>, vector<8x512xbf16>
    tpu.vector_store %arg9[%c112_158, %c0_159], %142 {strides = array<i32>} : memref<216x512xbf16, #tpu.memory_space<vmem>>, vector<8x512xbf16>,
    %c0_160 = arith.constant 0 : index
    %c0_161 = arith.constant 0 : index
    %c632 = arith.constant 632 : index
    %144 = vector.load %arg1[%c0_160, %c0_161, %c632] : memref<1x8x1280xbf16, #tpu.memory_space<vmem>>, vector<1x8x512xbf16>
    %145 = vector.shape_cast %144 : vector<1x8x512xbf16> to vector<8x512xbf16>
    %c120_162 = arith.constant 120 : index
    %c0_163 = arith.constant 0 : index
    %146 = vector.load %arg9[%c120_162, %c0_163] : memref<216x512xbf16, #tpu.memory_space<vmem>>, vector<8x512xbf16>
    tpu.vector_store %arg9[%c120_162, %c0_163], %145 {strides = array<i32>} : memref<216x512xbf16, #tpu.memory_space<vmem>>, vector<8x512xbf16>,
    %c0_164 = arith.constant 0 : index
    %c0_165 = arith.constant 0 : index
    %c633 = arith.constant 633 : index
    %147 = vector.load %arg1[%c0_164, %c0_165, %c633] : memref<1x8x1280xbf16, #tpu.memory_space<vmem>>, vector<1x8x512xbf16>
    %148 = vector.shape_cast %147 : vector<1x8x512xbf16> to vector<8x512xbf16>
    %c128_166 = arith.constant 128 : index
    %c0_167 = arith.constant 0 : index
    %149 = vector.load %arg9[%c128_166, %c0_167] : memref<216x512xbf16, #tpu.memory_space<vmem>>, vector<8x512xbf16>
    tpu.vector_store %arg9[%c128_166, %c0_167], %148 {strides = array<i32>} : memref<216x512xbf16, #tpu.memory_space<vmem>>, vector<8x512xbf16>,
    %c0_168 = arith.constant 0 : index
    %c0_169 = arith.constant 0 : index
    %c634 = arith.constant 634 : index
    %150 = vector.load %arg1[%c0_168, %c0_169, %c634] : memref<1x8x1280xbf16, #tpu.memory_space<vmem>>, vector<1x8x512xbf16>
    %151 = vector.shape_cast %150 : vector<1x8x512xbf16> to vector<8x512xbf16>
    %c136_170 = arith.constant 136 : index
    %c0_171 = arith.constant 0 : index
    %152 = vector.load %arg9[%c136_170, %c0_171] : memref<216x512xbf16, #tpu.memory_space<vmem>>, vector<8x512xbf16>
    tpu.vector_store %arg9[%c136_170, %c0_171], %151 {strides = array<i32>} : memref<216x512xbf16, #tpu.memory_space<vmem>>, vector<8x512xbf16>,
    %c0_172 = arith.constant 0 : index
    %c0_173 = arith.constant 0 : index
    %c712 = arith.constant 712 : index
    %153 = vector.load %arg1[%c0_172, %c0_173, %c712] : memref<1x8x1280xbf16, #tpu.memory_space<vmem>>, vector<1x8x512xbf16>
    %154 = vector.shape_cast %153 : vector<1x8x512xbf16> to vector<8x512xbf16>
    %c144_174 = arith.constant 144 : index
    %c0_175 = arith.constant 0 : index
    %155 = vector.load %arg9[%c144_174, %c0_175] : memref<216x512xbf16, #tpu.memory_space<vmem>>, vector<8x512xbf16>
    tpu.vector_store %arg9[%c144_174, %c0_175], %154 {strides = array<i32>} : memref<216x512xbf16, #tpu.memory_space<vmem>>, vector<8x512xbf16>,
    %c0_176 = arith.constant 0 : index
    %c0_177 = arith.constant 0 : index
    %c713 = arith.constant 713 : index
    %156 = vector.load %arg1[%c0_176, %c0_177, %c713] : memref<1x8x1280xbf16, #tpu.memory_space<vmem>>, vector<1x8x512xbf16>
    %157 = vector.shape_cast %156 : vector<1x8x512xbf16> to vector<8x512xbf16>
    %c152_178 = arith.constant 152 : index
    %c0_179 = arith.constant 0 : index
    %158 = vector.load %arg9[%c152_178, %c0_179] : memref<216x512xbf16, #tpu.memory_space<vmem>>, vector<8x512xbf16>
    tpu.vector_store %arg9[%c152_178, %c0_179], %157 {strides = array<i32>} : memref<216x512xbf16, #tpu.memory_space<vmem>>, vector<8x512xbf16>,
    %c0_180 = arith.constant 0 : index
    %c0_181 = arith.constant 0 : index
    %c714 = arith.constant 714 : index
    %159 = vector.load %arg1[%c0_180, %c0_181, %c714] : memref<1x8x1280xbf16, #tpu.memory_space<vmem>>, vector<1x8x512xbf16>
    %160 = vector.shape_cast %159 : vector<1x8x512xbf16> to vector<8x512xbf16>
    %c160_182 = arith.constant 160 : index
    %c0_183 = arith.constant 0 : index
    %161 = vector.load %arg9[%c160_182, %c0_183] : memref<216x512xbf16, #tpu.memory_space<vmem>>, vector<8x512xbf16>
    tpu.vector_store %arg9[%c160_182, %c0_183], %160 {strides = array<i32>} : memref<216x512xbf16, #tpu.memory_space<vmem>>, vector<8x512xbf16>,
    %c0_184 = arith.constant 0 : index
    %c0_185 = arith.constant 0 : index
    %c722 = arith.constant 722 : index
    %162 = vector.load %arg1[%c0_184, %c0_185, %c722] : memref<1x8x1280xbf16, #tpu.memory_space<vmem>>, vector<1x8x512xbf16>
    %163 = vector.shape_cast %162 : vector<1x8x512xbf16> to vector<8x512xbf16>
    %c168_186 = arith.constant 168 : index
    %c0_187 = arith.constant 0 : index
    %164 = vector.load %arg9[%c168_186, %c0_187] : memref<216x512xbf16, #tpu.memory_space<vmem>>, vector<8x512xbf16>
    tpu.vector_store %arg9[%c168_186, %c0_187], %163 {strides = array<i32>} : memref<216x512xbf16, #tpu.memory_space<vmem>>, vector<8x512xbf16>,
    %c0_188 = arith.constant 0 : index
    %c0_189 = arith.constant 0 : index
    %c723 = arith.constant 723 : index
    %165 = vector.load %arg1[%c0_188, %c0_189, %c723] : memref<1x8x1280xbf16, #tpu.memory_space<vmem>>, vector<1x8x512xbf16>
    %166 = vector.shape_cast %165 : vector<1x8x512xbf16> to vector<8x512xbf16>
    %c176_190 = arith.constant 176 : index
    %c0_191 = arith.constant 0 : index
    %167 = vector.load %arg9[%c176_190, %c0_191] : memref<216x512xbf16, #tpu.memory_space<vmem>>, vector<8x512xbf16>
    tpu.vector_store %arg9[%c176_190, %c0_191], %166 {strides = array<i32>} : memref<216x512xbf16, #tpu.memory_space<vmem>>, vector<8x512xbf16>,
    %c0_192 = arith.constant 0 : index
    %c0_193 = arith.constant 0 : index
    %c724 = arith.constant 724 : index
    %168 = vector.load %arg1[%c0_192, %c0_193, %c724] : memref<1x8x1280xbf16, #tpu.memory_space<vmem>>, vector<1x8x512xbf16>
    %169 = vector.shape_cast %168 : vector<1x8x512xbf16> to vector<8x512xbf16>
    %c184_194 = arith.constant 184 : index
    %c0_195 = arith.constant 0 : index
    %170 = vector.load %arg9[%c184_194, %c0_195] : memref<216x512xbf16, #tpu.memory_space<vmem>>, vector<8x512xbf16>
    tpu.vector_store %arg9[%c184_194, %c0_195], %169 {strides = array<i32>} : memref<216x512xbf16, #tpu.memory_space<vmem>>, vector<8x512xbf16>,
    %c0_196 = arith.constant 0 : index
    %c0_197 = arith.constant 0 : index
    %c732 = arith.constant 732 : index
    %171 = vector.load %arg1[%c0_196, %c0_197, %c732] : memref<1x8x1280xbf16, #tpu.memory_space<vmem>>, vector<1x8x512xbf16>
    %172 = vector.shape_cast %171 : vector<1x8x512xbf16> to vector<8x512xbf16>
    %c192_198 = arith.constant 192 : index
    %c0_199 = arith.constant 0 : index
    %173 = vector.load %arg9[%c192_198, %c0_199] : memref<216x512xbf16, #tpu.memory_space<vmem>>, vector<8x512xbf16>
    tpu.vector_store %arg9[%c192_198, %c0_199], %172 {strides = array<i32>} : memref<216x512xbf16, #tpu.memory_space<vmem>>, vector<8x512xbf16>,
    %c0_200 = arith.constant 0 : index
    %c0_201 = arith.constant 0 : index
    %c733 = arith.constant 733 : index
    %174 = vector.load %arg1[%c0_200, %c0_201, %c733] : memref<1x8x1280xbf16, #tpu.memory_space<vmem>>, vector<1x8x512xbf16>
    %175 = vector.shape_cast %174 : vector<1x8x512xbf16> to vector<8x512xbf16>
    %c200_202 = arith.constant 200 : index
    %c0_203 = arith.constant 0 : index
    %176 = vector.load %arg9[%c200_202, %c0_203] : memref<216x512xbf16, #tpu.memory_space<vmem>>, vector<8x512xbf16>
    tpu.vector_store %arg9[%c200_202, %c0_203], %175 {strides = array<i32>} : memref<216x512xbf16, #tpu.memory_space<vmem>>, vector<8x512xbf16>,
    %c0_204 = arith.constant 0 : index
    %c0_205 = arith.constant 0 : index
    %c734 = arith.constant 734 : index
    %177 = vector.load %arg1[%c0_204, %c0_205, %c734] : memref<1x8x1280xbf16, #tpu.memory_space<vmem>>, vector<1x8x512xbf16>
    %178 = vector.shape_cast %177 : vector<1x8x512xbf16> to vector<8x512xbf16>
    %c208_206 = arith.constant 208 : index
    %c0_207 = arith.constant 0 : index
    %179 = vector.load %arg9[%c208_206, %c0_207] : memref<216x512xbf16, #tpu.memory_space<vmem>>, vector<8x512xbf16>
    tpu.vector_store %arg9[%c208_206, %c0_207], %178 {strides = array<i32>} : memref<216x512xbf16, #tpu.memory_space<vmem>>, vector<8x512xbf16>,
    %c0_208 = arith.constant 0 : index
    %c0_209 = arith.constant 0 : index
    %180 = vector.load %arg2[%c0_208, %c0_209] : memref<8x216xbf16, #tpu.memory_space<vmem>>, vector<8x216xbf16>
    %c0_210 = arith.constant 0 : index
    %c0_211 = arith.constant 0 : index
    %181 = vector.load %arg9[%c0_210, %c0_211] : memref<216x512xbf16, #tpu.memory_space<vmem>>, vector<216x512xbf16>
    %cst_212 = arith.constant dense<0.000000e+00> : vector<8x512xf32>
    %182 = tpu.matmul %180, %181, %cst_212 {dimension_numbers = #tpu.dot_dimension_numbers<[1], [0], [0], [1], [0, 0, 1, 1], [], []>} : vector<8x216xbf16>, vector<216x512xbf16>, vector<8x512xf32> -> vector<8x512xf32>
    %c0_213 = arith.constant 0 : index
    %c0_214 = arith.constant 0 : index
    %183 = vector.load %arg3[%c0_213, %c0_214] : memref<8x1xf32, #tpu.memory_space<vmem>>, vector<8x1xf32>
    %184 = vector.broadcast %183 : vector<8x1xf32> to vector<8x512xf32>
    %185 = arith.addf %182, %184 : vector<8x512xf32>
    %cst_215 = arith.constant 0.000000e+00 : f32
    %186 = vector.broadcast %cst_215 : f32 to vector<8x512xf32>
    %187 = arith.cmpf oge, %185, %186 : vector<8x512xf32>
    %cst_216 = arith.constant 0.00999999977 : f32
    %188 = vector.broadcast %cst_216 : f32 to vector<8x512xf32>
    %189 = arith.mulf %188, %185 : vector<8x512xf32>
    %190 = arith.select %187, %185, %189 : vector<8x512xi1>, vector<8x512xf32>
    %c0_217 = arith.constant 0 : index
    %c512_218 = arith.constant 512 : index
    %191 = vector.load %arg6[%c0_217, %c512_218] : memref<1x1024xf32, #tpu.memory_space<vmem>>, vector<1x512xf32>
    %192 = vector.broadcast %191 : vector<1x512xf32> to vector<8x512xf32>
    %193 = arith.mulf %190, %192 : vector<8x512xf32>
    %194 = arith.truncf %193 : vector<8x512xf32> to vector<8x512xbf16>
    %c0_219 = arith.constant 0 : index
    %c640 = arith.constant 640 : index
    %195 = vector.load %arg8[%c0_219, %c640] : memref<8x1280xbf16, #tpu.memory_space<vmem>>, vector<8x512xbf16>
    tpu.vector_store %arg8[%c0_219, %c640], %194 {strides = array<i32>} : memref<8x1280xbf16, #tpu.memory_space<vmem>>, vector<8x512xbf16>,
    %c0_220 = arith.constant 0 : index
    %c17 = arith.constant 17 : index
    %196 = vector.load %arg8[%c0_220, %c17] : memref<8x1280xbf16, #tpu.memory_space<vmem>>, vector<8x512xbf16>
    %c0_221 = arith.constant 0 : index
    %c0_222 = arith.constant 0 : index
    %197 = vector.load %arg10[%c0_221, %c0_222] : memref<216x512xbf16, #tpu.memory_space<vmem>>, vector<8x512xbf16>
    tpu.vector_store %arg10[%c0_221, %c0_222], %196 {strides = array<i32>} : memref<216x512xbf16, #tpu.memory_space<vmem>>, vector<8x512xbf16>,
    %c0_223 = arith.constant 0 : index
    %c18 = arith.constant 18 : index
    %198 = vector.load %arg8[%c0_223, %c18] : memref<8x1280xbf16, #tpu.memory_space<vmem>>, vector<8x512xbf16>
    %c8_224 = arith.constant 8 : index
    %c0_225 = arith.constant 0 : index
    %199 = vector.load %arg10[%c8_224, %c0_225] : memref<216x512xbf16, #tpu.memory_space<vmem>>, vector<8x512xbf16>
    tpu.vector_store %arg10[%c8_224, %c0_225], %198 {strides = array<i32>} : memref<216x512xbf16, #tpu.memory_space<vmem>>, vector<8x512xbf16>,
    %c0_226 = arith.constant 0 : index
    %c19 = arith.constant 19 : index
    %200 = vector.load %arg8[%c0_226, %c19] : memref<8x1280xbf16, #tpu.memory_space<vmem>>, vector<8x512xbf16>
    %c16_227 = arith.constant 16 : index
    %c0_228 = arith.constant 0 : index
    %201 = vector.load %arg10[%c16_227, %c0_228] : memref<216x512xbf16, #tpu.memory_space<vmem>>, vector<8x512xbf16>
    tpu.vector_store %arg10[%c16_227, %c0_228], %200 {strides = array<i32>} : memref<216x512xbf16, #tpu.memory_space<vmem>>, vector<8x512xbf16>,
    %c0_229 = arith.constant 0 : index
    %c27 = arith.constant 27 : index
    %202 = vector.load %arg8[%c0_229, %c27] : memref<8x1280xbf16, #tpu.memory_space<vmem>>, vector<8x512xbf16>
    %c24_230 = arith.constant 24 : index
    %c0_231 = arith.constant 0 : index
    %203 = vector.load %arg10[%c24_230, %c0_231] : memref<216x512xbf16, #tpu.memory_space<vmem>>, vector<8x512xbf16>
    tpu.vector_store %arg10[%c24_230, %c0_231], %202 {strides = array<i32>} : memref<216x512xbf16, #tpu.memory_space<vmem>>, vector<8x512xbf16>,
    %c0_232 = arith.constant 0 : index
    %c28 = arith.constant 28 : index
    %204 = vector.load %arg8[%c0_232, %c28] : memref<8x1280xbf16, #tpu.memory_space<vmem>>, vector<8x512xbf16>
    %c32_233 = arith.constant 32 : index
    %c0_234 = arith.constant 0 : index
    %205 = vector.load %arg10[%c32_233, %c0_234] : memref<216x512xbf16, #tpu.memory_space<vmem>>, vector<8x512xbf16>
    tpu.vector_store %arg10[%c32_233, %c0_234], %204 {strides = array<i32>} : memref<216x512xbf16, #tpu.memory_space<vmem>>, vector<8x512xbf16>,
    %c0_235 = arith.constant 0 : index
    %c29 = arith.constant 29 : index
    %206 = vector.load %arg8[%c0_235, %c29] : memref<8x1280xbf16, #tpu.memory_space<vmem>>, vector<8x512xbf16>
    %c40_236 = arith.constant 40 : index
    %c0_237 = arith.constant 0 : index
    %207 = vector.load %arg10[%c40_236, %c0_237] : memref<216x512xbf16, #tpu.memory_space<vmem>>, vector<8x512xbf16>
    tpu.vector_store %arg10[%c40_236, %c0_237], %206 {strides = array<i32>} : memref<216x512xbf16, #tpu.memory_space<vmem>>, vector<8x512xbf16>,
    %c0_238 = arith.constant 0 : index
    %c37 = arith.constant 37 : index
    %208 = vector.load %arg8[%c0_238, %c37] : memref<8x1280xbf16, #tpu.memory_space<vmem>>, vector<8x512xbf16>
    %c48_239 = arith.constant 48 : index
    %c0_240 = arith.constant 0 : index
    %209 = vector.load %arg10[%c48_239, %c0_240] : memref<216x512xbf16, #tpu.memory_space<vmem>>, vector<8x512xbf16>
    tpu.vector_store %arg10[%c48_239, %c0_240], %208 {strides = array<i32>} : memref<216x512xbf16, #tpu.memory_space<vmem>>, vector<8x512xbf16>,
    %c0_241 = arith.constant 0 : index
    %c38 = arith.constant 38 : index
    %210 = vector.load %arg8[%c0_241, %c38] : memref<8x1280xbf16, #tpu.memory_space<vmem>>, vector<8x512xbf16>
    %c56_242 = arith.constant 56 : index
    %c0_243 = arith.constant 0 : index
    %211 = vector.load %arg10[%c56_242, %c0_243] : memref<216x512xbf16, #tpu.memory_space<vmem>>, vector<8x512xbf16>
    tpu.vector_store %arg10[%c56_242, %c0_243], %210 {strides = array<i32>} : memref<216x512xbf16, #tpu.memory_space<vmem>>, vector<8x512xbf16>,
    %c0_244 = arith.constant 0 : index
    %c39 = arith.constant 39 : index
    %212 = vector.load %arg8[%c0_244, %c39] : memref<8x1280xbf16, #tpu.memory_space<vmem>>, vector<8x512xbf16>
    %c64_245 = arith.constant 64 : index
    %c0_246 = arith.constant 0 : index
    %213 = vector.load %arg10[%c64_245, %c0_246] : memref<216x512xbf16, #tpu.memory_space<vmem>>, vector<8x512xbf16>
    tpu.vector_store %arg10[%c64_245, %c0_246], %212 {strides = array<i32>} : memref<216x512xbf16, #tpu.memory_space<vmem>>, vector<8x512xbf16>,
    %c0_247 = arith.constant 0 : index
    %c117 = arith.constant 117 : index
    %214 = vector.load %arg8[%c0_247, %c117] : memref<8x1280xbf16, #tpu.memory_space<vmem>>, vector<8x512xbf16>
    %c72_248 = arith.constant 72 : index
    %c0_249 = arith.constant 0 : index
    %215 = vector.load %arg10[%c72_248, %c0_249] : memref<216x512xbf16, #tpu.memory_space<vmem>>, vector<8x512xbf16>
    tpu.vector_store %arg10[%c72_248, %c0_249], %214 {strides = array<i32>} : memref<216x512xbf16, #tpu.memory_space<vmem>>, vector<8x512xbf16>,
    %c0_250 = arith.constant 0 : index
    %c118 = arith.constant 118 : index
    %216 = vector.load %arg8[%c0_250, %c118] : memref<8x1280xbf16, #tpu.memory_space<vmem>>, vector<8x512xbf16>
    %c80_251 = arith.constant 80 : index
    %c0_252 = arith.constant 0 : index
    %217 = vector.load %arg10[%c80_251, %c0_252] : memref<216x512xbf16, #tpu.memory_space<vmem>>, vector<8x512xbf16>
    tpu.vector_store %arg10[%c80_251, %c0_252], %216 {strides = array<i32>} : memref<216x512xbf16, #tpu.memory_space<vmem>>, vector<8x512xbf16>,
    %c0_253 = arith.constant 0 : index
    %c119 = arith.constant 119 : index
    %218 = vector.load %arg8[%c0_253, %c119] : memref<8x1280xbf16, #tpu.memory_space<vmem>>, vector<8x512xbf16>
    %c88_254 = arith.constant 88 : index
    %c0_255 = arith.constant 0 : index
    %219 = vector.load %arg10[%c88_254, %c0_255] : memref<216x512xbf16, #tpu.memory_space<vmem>>, vector<8x512xbf16>
    tpu.vector_store %arg10[%c88_254, %c0_255], %218 {strides = array<i32>} : memref<216x512xbf16, #tpu.memory_space<vmem>>, vector<8x512xbf16>,
    %c0_256 = arith.constant 0 : index
    %c127 = arith.constant 127 : index
    %220 = vector.load %arg8[%c0_256, %c127] : memref<8x1280xbf16, #tpu.memory_space<vmem>>, vector<8x512xbf16>
    %c96_257 = arith.constant 96 : index
    %c0_258 = arith.constant 0 : index
    %221 = vector.load %arg10[%c96_257, %c0_258] : memref<216x512xbf16, #tpu.memory_space<vmem>>, vector<8x512xbf16>
    tpu.vector_store %arg10[%c96_257, %c0_258], %220 {strides = array<i32>} : memref<216x512xbf16, #tpu.memory_space<vmem>>, vector<8x512xbf16>,
    %c0_259 = arith.constant 0 : index
    %c128_260 = arith.constant 128 : index
    %222 = vector.load %arg8[%c0_259, %c128_260] : memref<8x1280xbf16, #tpu.memory_space<vmem>>, vector<8x512xbf16>
    %c104_261 = arith.constant 104 : index
    %c0_262 = arith.constant 0 : index
    %223 = vector.load %arg10[%c104_261, %c0_262] : memref<216x512xbf16, #tpu.memory_space<vmem>>, vector<8x512xbf16>
    tpu.vector_store %arg10[%c104_261, %c0_262], %222 {strides = array<i32>} : memref<216x512xbf16, #tpu.memory_space<vmem>>, vector<8x512xbf16>,
    %c0_263 = arith.constant 0 : index
    %c129 = arith.constant 129 : index
    %224 = vector.load %arg8[%c0_263, %c129] : memref<8x1280xbf16, #tpu.memory_space<vmem>>, vector<8x512xbf16>
    %c112_264 = arith.constant 112 : index
    %c0_265 = arith.constant 0 : index
    %225 = vector.load %arg10[%c112_264, %c0_265] : memref<216x512xbf16, #tpu.memory_space<vmem>>, vector<8x512xbf16>
    tpu.vector_store %arg10[%c112_264, %c0_265], %224 {strides = array<i32>} : memref<216x512xbf16, #tpu.memory_space<vmem>>, vector<8x512xbf16>,
    %c0_266 = arith.constant 0 : index
    %c137 = arith.constant 137 : index
    %226 = vector.load %arg8[%c0_266, %c137] : memref<8x1280xbf16, #tpu.memory_space<vmem>>, vector<8x512xbf16>
    %c120_267 = arith.constant 120 : index
    %c0_268 = arith.constant 0 : index
    %227 = vector.load %arg10[%c120_267, %c0_268] : memref<216x512xbf16, #tpu.memory_space<vmem>>, vector<8x512xbf16>
    tpu.vector_store %arg10[%c120_267, %c0_268], %226 {strides = array<i32>} : memref<216x512xbf16, #tpu.memory_space<vmem>>, vector<8x512xbf16>,
    %c0_269 = arith.constant 0 : index
    %c138 = arith.constant 138 : index
    %228 = vector.load %arg8[%c0_269, %c138] : memref<8x1280xbf16, #tpu.memory_space<vmem>>, vector<8x512xbf16>
    %c128_270 = arith.constant 128 : index
    %c0_271 = arith.constant 0 : index
    %229 = vector.load %arg10[%c128_270, %c0_271] : memref<216x512xbf16, #tpu.memory_space<vmem>>, vector<8x512xbf16>
    tpu.vector_store %arg10[%c128_270, %c0_271], %228 {strides = array<i32>} : memref<216x512xbf16, #tpu.memory_space<vmem>>, vector<8x512xbf16>,
    %c0_272 = arith.constant 0 : index
    %c139 = arith.constant 139 : index
    %230 = vector.load %arg8[%c0_272, %c139] : memref<8x1280xbf16, #tpu.memory_space<vmem>>, vector<8x512xbf16>
    %c136_273 = arith.constant 136 : index
    %c0_274 = arith.constant 0 : index
    %231 = vector.load %arg10[%c136_273, %c0_274] : memref<216x512xbf16, #tpu.memory_space<vmem>>, vector<8x512xbf16>
    tpu.vector_store %arg10[%c136_273, %c0_274], %230 {strides = array<i32>} : memref<216x512xbf16, #tpu.memory_space<vmem>>, vector<8x512xbf16>,
    %c0_275 = arith.constant 0 : index
    %c217 = arith.constant 217 : index
    %232 = vector.load %arg8[%c0_275, %c217] : memref<8x1280xbf16, #tpu.memory_space<vmem>>, vector<8x512xbf16>
    %c144_276 = arith.constant 144 : index
    %c0_277 = arith.constant 0 : index
    %233 = vector.load %arg10[%c144_276, %c0_277] : memref<216x512xbf16, #tpu.memory_space<vmem>>, vector<8x512xbf16>
    tpu.vector_store %arg10[%c144_276, %c0_277], %232 {strides = array<i32>} : memref<216x512xbf16, #tpu.memory_space<vmem>>, vector<8x512xbf16>,
    %c0_278 = arith.constant 0 : index
    %c218 = arith.constant 218 : index
    %234 = vector.load %arg8[%c0_278, %c218] : memref<8x1280xbf16, #tpu.memory_space<vmem>>, vector<8x512xbf16>
    %c152_279 = arith.constant 152 : index
    %c0_280 = arith.constant 0 : index
    %235 = vector.load %arg10[%c152_279, %c0_280] : memref<216x512xbf16, #tpu.memory_space<vmem>>, vector<8x512xbf16>
    tpu.vector_store %arg10[%c152_279, %c0_280], %234 {strides = array<i32>} : memref<216x512xbf16, #tpu.memory_space<vmem>>, vector<8x512xbf16>,
    %c0_281 = arith.constant 0 : index
    %c219 = arith.constant 219 : index
    %236 = vector.load %arg8[%c0_281, %c219] : memref<8x1280xbf16, #tpu.memory_space<vmem>>, vector<8x512xbf16>
    %c160_282 = arith.constant 160 : index
    %c0_283 = arith.constant 0 : index
    %237 = vector.load %arg10[%c160_282, %c0_283] : memref<216x512xbf16, #tpu.memory_space<vmem>>, vector<8x512xbf16>
    tpu.vector_store %arg10[%c160_282, %c0_283], %236 {strides = array<i32>} : memref<216x512xbf16, #tpu.memory_space<vmem>>, vector<8x512xbf16>,
    %c0_284 = arith.constant 0 : index
    %c227 = arith.constant 227 : index
    %238 = vector.load %arg8[%c0_284, %c227] : memref<8x1280xbf16, #tpu.memory_space<vmem>>, vector<8x512xbf16>
    %c168_285 = arith.constant 168 : index
    %c0_286 = arith.constant 0 : index
    %239 = vector.load %arg10[%c168_285, %c0_286] : memref<216x512xbf16, #tpu.memory_space<vmem>>, vector<8x512xbf16>
    tpu.vector_store %arg10[%c168_285, %c0_286], %238 {strides = array<i32>} : memref<216x512xbf16, #tpu.memory_space<vmem>>, vector<8x512xbf16>,
    %c0_287 = arith.constant 0 : index
    %c228 = arith.constant 228 : index
    %240 = vector.load %arg8[%c0_287, %c228] : memref<8x1280xbf16, #tpu.memory_space<vmem>>, vector<8x512xbf16>
    %c176_288 = arith.constant 176 : index
    %c0_289 = arith.constant 0 : index
    %241 = vector.load %arg10[%c176_288, %c0_289] : memref<216x512xbf16, #tpu.memory_space<vmem>>, vector<8x512xbf16>
    tpu.vector_store %arg10[%c176_288, %c0_289], %240 {strides = array<i32>} : memref<216x512xbf16, #tpu.memory_space<vmem>>, vector<8x512xbf16>,
    %c0_290 = arith.constant 0 : index
    %c229 = arith.constant 229 : index
    %242 = vector.load %arg8[%c0_290, %c229] : memref<8x1280xbf16, #tpu.memory_space<vmem>>, vector<8x512xbf16>
    %c184_291 = arith.constant 184 : index
    %c0_292 = arith.constant 0 : index
    %243 = vector.load %arg10[%c184_291, %c0_292] : memref<216x512xbf16, #tpu.memory_space<vmem>>, vector<8x512xbf16>
    tpu.vector_store %arg10[%c184_291, %c0_292], %242 {strides = array<i32>} : memref<216x512xbf16, #tpu.memory_space<vmem>>, vector<8x512xbf16>,
    %c0_293 = arith.constant 0 : index
    %c237 = arith.constant 237 : index
    %244 = vector.load %arg8[%c0_293, %c237] : memref<8x1280xbf16, #tpu.memory_space<vmem>>, vector<8x512xbf16>
    %c192_294 = arith.constant 192 : index
    %c0_295 = arith.constant 0 : index
    %245 = vector.load %arg10[%c192_294, %c0_295] : memref<216x512xbf16, #tpu.memory_space<vmem>>, vector<8x512xbf16>
    tpu.vector_store %arg10[%c192_294, %c0_295], %244 {strides = array<i32>} : memref<216x512xbf16, #tpu.memory_space<vmem>>, vector<8x512xbf16>,
    %c0_296 = arith.constant 0 : index
    %c238 = arith.constant 238 : index
    %246 = vector.load %arg8[%c0_296, %c238] : memref<8x1280xbf16, #tpu.memory_space<vmem>>, vector<8x512xbf16>
    %c200_297 = arith.constant 200 : index
    %c0_298 = arith.constant 0 : index
    %247 = vector.load %arg10[%c200_297, %c0_298] : memref<216x512xbf16, #tpu.memory_space<vmem>>, vector<8x512xbf16>
    tpu.vector_store %arg10[%c200_297, %c0_298], %246 {strides = array<i32>} : memref<216x512xbf16, #tpu.memory_space<vmem>>, vector<8x512xbf16>,
    %c0_299 = arith.constant 0 : index
    %c239 = arith.constant 239 : index
    %248 = vector.load %arg8[%c0_299, %c239] : memref<8x1280xbf16, #tpu.memory_space<vmem>>, vector<8x512xbf16>
    %c208_300 = arith.constant 208 : index
    %c0_301 = arith.constant 0 : index
    %249 = vector.load %arg10[%c208_300, %c0_301] : memref<216x512xbf16, #tpu.memory_space<vmem>>, vector<8x512xbf16>
    tpu.vector_store %arg10[%c208_300, %c0_301], %248 {strides = array<i32>} : memref<216x512xbf16, #tpu.memory_space<vmem>>, vector<8x512xbf16>,
    %c0_302 = arith.constant 0 : index
    %c0_303 = arith.constant 0 : index
    %250 = vector.load %arg4[%c0_302, %c0_303] : memref<8x216xbf16, #tpu.memory_space<vmem>>, vector<8x216xbf16>
    %c0_304 = arith.constant 0 : index
    %c0_305 = arith.constant 0 : index
    %251 = vector.load %arg10[%c0_304, %c0_305] : memref<216x512xbf16, #tpu.memory_space<vmem>>, vector<216x512xbf16>
    %cst_306 = arith.constant dense<0.000000e+00> : vector<8x512xf32>
    %252 = tpu.matmul %250, %251, %cst_306 {dimension_numbers = #tpu.dot_dimension_numbers<[1], [0], [0], [1], [0, 0, 1, 1], [], []>} : vector<8x216xbf16>, vector<216x512xbf16>, vector<8x512xf32> -> vector<8x512xf32>
    %c0_307 = arith.constant 0 : index
    %c0_308 = arith.constant 0 : index
    %253 = vector.load %arg5[%c0_307, %c0_308] : memref<8x1xf32, #tpu.memory_space<vmem>>, vector<8x1xf32>
    %254 = vector.broadcast %253 : vector<8x1xf32> to vector<8x512xf32>
    %255 = arith.addf %252, %254 : vector<8x512xf32>
    %cst_309 = arith.constant 0.000000e+00 : f32
    %256 = vector.broadcast %cst_309 : f32 to vector<8x512xf32>
    %257 = arith.cmpf oge, %255, %256 : vector<8x512xf32>
    %cst_310 = arith.constant 0.00999999977 : f32
    %258 = vector.broadcast %cst_310 : f32 to vector<8x512xf32>
    %259 = arith.mulf %258, %255 : vector<8x512xf32>
    %260 = arith.select %257, %255, %259 : vector<8x512xi1>, vector<8x512xf32>
    %c0_311 = arith.constant 0 : index
    %c0_312 = arith.constant 0 : index
    %c0_313 = arith.constant 0 : index
    %261 = vector.load %arg7[%c0_311, %c0_312, %c0_313] : memref<1x8x1024xf32, #tpu.memory_space<vmem>>, vector<1x8x512xf32>
    %262 = vector.shape_cast %261 : vector<1x8x512xf32> to vector<8x512xf32>
    %263 = vector.shape_cast %260 : vector<8x512xf32> to vector<1x8x512xf32>
    tpu.vector_store %arg7[%c0_311, %c0_312, %c0_313], %263 {strides = array<i32>} : memref<1x8x1024xf32, #tpu.memory_space<vmem>>, vector<1x8x512xf32>,
    %c0_314 = arith.constant 0 : index
    %c529 = arith.constant 529 : index
    %264 = vector.load %arg8[%c0_314, %c529] : memref<8x1280xbf16, #tpu.memory_space<vmem>>, vector<8x512xbf16>
    %c0_315 = arith.constant 0 : index
    %c0_316 = arith.constant 0 : index
    %265 = vector.load %arg10[%c0_315, %c0_316] : memref<216x512xbf16, #tpu.memory_space<vmem>>, vector<8x512xbf16>
    tpu.vector_store %arg10[%c0_315, %c0_316], %264 {strides = array<i32>} : memref<216x512xbf16, #tpu.memory_space<vmem>>, vector<8x512xbf16>,
    %c0_317 = arith.constant 0 : index
    %c530 = arith.constant 530 : index
    %266 = vector.load %arg8[%c0_317, %c530] : memref<8x1280xbf16, #tpu.memory_space<vmem>>, vector<8x512xbf16>
    %c8_318 = arith.constant 8 : index
    %c0_319 = arith.constant 0 : index
    %267 = vector.load %arg10[%c8_318, %c0_319] : memref<216x512xbf16, #tpu.memory_space<vmem>>, vector<8x512xbf16>
    tpu.vector_store %arg10[%c8_318, %c0_319], %266 {strides = array<i32>} : memref<216x512xbf16, #tpu.memory_space<vmem>>, vector<8x512xbf16>,
    %c0_320 = arith.constant 0 : index
    %c531 = arith.constant 531 : index
    %268 = vector.load %arg8[%c0_320, %c531] : memref<8x1280xbf16, #tpu.memory_space<vmem>>, vector<8x512xbf16>
    %c16_321 = arith.constant 16 : index
    %c0_322 = arith.constant 0 : index
    %269 = vector.load %arg10[%c16_321, %c0_322] : memref<216x512xbf16, #tpu.memory_space<vmem>>, vector<8x512xbf16>
    tpu.vector_store %arg10[%c16_321, %c0_322], %268 {strides = array<i32>} : memref<216x512xbf16, #tpu.memory_space<vmem>>, vector<8x512xbf16>,
    %c0_323 = arith.constant 0 : index
    %c539 = arith.constant 539 : index
    %270 = vector.load %arg8[%c0_323, %c539] : memref<8x1280xbf16, #tpu.memory_space<vmem>>, vector<8x512xbf16>
    %c24_324 = arith.constant 24 : index
    %c0_325 = arith.constant 0 : index
    %271 = vector.load %arg10[%c24_324, %c0_325] : memref<216x512xbf16, #tpu.memory_space<vmem>>, vector<8x512xbf16>
    tpu.vector_store %arg10[%c24_324, %c0_325], %270 {strides = array<i32>} : memref<216x512xbf16, #tpu.memory_space<vmem>>, vector<8x512xbf16>,
    %c0_326 = arith.constant 0 : index
    %c540 = arith.constant 540 : index
    %272 = vector.load %arg8[%c0_326, %c540] : memref<8x1280xbf16, #tpu.memory_space<vmem>>, vector<8x512xbf16>
    %c32_327 = arith.constant 32 : index
    %c0_328 = arith.constant 0 : index
    %273 = vector.load %arg10[%c32_327, %c0_328] : memref<216x512xbf16, #tpu.memory_space<vmem>>, vector<8x512xbf16>
    tpu.vector_store %arg10[%c32_327, %c0_328], %272 {strides = array<i32>} : memref<216x512xbf16, #tpu.memory_space<vmem>>, vector<8x512xbf16>,
    %c0_329 = arith.constant 0 : index
    %c541 = arith.constant 541 : index
    %274 = vector.load %arg8[%c0_329, %c541] : memref<8x1280xbf16, #tpu.memory_space<vmem>>, vector<8x512xbf16>
    %c40_330 = arith.constant 40 : index
    %c0_331 = arith.constant 0 : index
    %275 = vector.load %arg10[%c40_330, %c0_331] : memref<216x512xbf16, #tpu.memory_space<vmem>>, vector<8x512xbf16>
    tpu.vector_store %arg10[%c40_330, %c0_331], %274 {strides = array<i32>} : memref<216x512xbf16, #tpu.memory_space<vmem>>, vector<8x512xbf16>,
    %c0_332 = arith.constant 0 : index
    %c549 = arith.constant 549 : index
    %276 = vector.load %arg8[%c0_332, %c549] : memref<8x1280xbf16, #tpu.memory_space<vmem>>, vector<8x512xbf16>
    %c48_333 = arith.constant 48 : index
    %c0_334 = arith.constant 0 : index
    %277 = vector.load %arg10[%c48_333, %c0_334] : memref<216x512xbf16, #tpu.memory_space<vmem>>, vector<8x512xbf16>
    tpu.vector_store %arg10[%c48_333, %c0_334], %276 {strides = array<i32>} : memref<216x512xbf16, #tpu.memory_space<vmem>>, vector<8x512xbf16>,
    %c0_335 = arith.constant 0 : index
    %c550 = arith.constant 550 : index
    %278 = vector.load %arg8[%c0_335, %c550] : memref<8x1280xbf16, #tpu.memory_space<vmem>>, vector<8x512xbf16>
    %c56_336 = arith.constant 56 : index
    %c0_337 = arith.constant 0 : index
    %279 = vector.load %arg10[%c56_336, %c0_337] : memref<216x512xbf16, #tpu.memory_space<vmem>>, vector<8x512xbf16>
    tpu.vector_store %arg10[%c56_336, %c0_337], %278 {strides = array<i32>} : memref<216x512xbf16, #tpu.memory_space<vmem>>, vector<8x512xbf16>,
    %c0_338 = arith.constant 0 : index
    %c551 = arith.constant 551 : index
    %280 = vector.load %arg8[%c0_338, %c551] : memref<8x1280xbf16, #tpu.memory_space<vmem>>, vector<8x512xbf16>
    %c64_339 = arith.constant 64 : index
    %c0_340 = arith.constant 0 : index
    %281 = vector.load %arg10[%c64_339, %c0_340] : memref<216x512xbf16, #tpu.memory_space<vmem>>, vector<8x512xbf16>
    tpu.vector_store %arg10[%c64_339, %c0_340], %280 {strides = array<i32>} : memref<216x512xbf16, #tpu.memory_space<vmem>>, vector<8x512xbf16>,
    %c0_341 = arith.constant 0 : index
    %c629 = arith.constant 629 : index
    %282 = vector.load %arg8[%c0_341, %c629] : memref<8x1280xbf16, #tpu.memory_space<vmem>>, vector<8x512xbf16>
    %c72_342 = arith.constant 72 : index
    %c0_343 = arith.constant 0 : index
    %283 = vector.load %arg10[%c72_342, %c0_343] : memref<216x512xbf16, #tpu.memory_space<vmem>>, vector<8x512xbf16>
    tpu.vector_store %arg10[%c72_342, %c0_343], %282 {strides = array<i32>} : memref<216x512xbf16, #tpu.memory_space<vmem>>, vector<8x512xbf16>,
    %c0_344 = arith.constant 0 : index
    %c630 = arith.constant 630 : index
    %284 = vector.load %arg8[%c0_344, %c630] : memref<8x1280xbf16, #tpu.memory_space<vmem>>, vector<8x512xbf16>
    %c80_345 = arith.constant 80 : index
    %c0_346 = arith.constant 0 : index
    %285 = vector.load %arg10[%c80_345, %c0_346] : memref<216x512xbf16, #tpu.memory_space<vmem>>, vector<8x512xbf16>
    tpu.vector_store %arg10[%c80_345, %c0_346], %284 {strides = array<i32>} : memref<216x512xbf16, #tpu.memory_space<vmem>>, vector<8x512xbf16>,
    %c0_347 = arith.constant 0 : index
    %c631 = arith.constant 631 : index
    %286 = vector.load %arg8[%c0_347, %c631] : memref<8x1280xbf16, #tpu.memory_space<vmem>>, vector<8x512xbf16>
    %c88_348 = arith.constant 88 : index
    %c0_349 = arith.constant 0 : index
    %287 = vector.load %arg10[%c88_348, %c0_349] : memref<216x512xbf16, #tpu.memory_space<vmem>>, vector<8x512xbf16>
    tpu.vector_store %arg10[%c88_348, %c0_349], %286 {strides = array<i32>} : memref<216x512xbf16, #tpu.memory_space<vmem>>, vector<8x512xbf16>,
    %c0_350 = arith.constant 0 : index
    %c639 = arith.constant 639 : index
    %288 = vector.load %arg8[%c0_350, %c639] : memref<8x1280xbf16, #tpu.memory_space<vmem>>, vector<8x512xbf16>
    %c96_351 = arith.constant 96 : index
    %c0_352 = arith.constant 0 : index
    %289 = vector.load %arg10[%c96_351, %c0_352] : memref<216x512xbf16, #tpu.memory_space<vmem>>, vector<8x512xbf16>
    tpu.vector_store %arg10[%c96_351, %c0_352], %288 {strides = array<i32>} : memref<216x512xbf16, #tpu.memory_space<vmem>>, vector<8x512xbf16>,
    %c0_353 = arith.constant 0 : index
    %c640_354 = arith.constant 640 : index
    %290 = vector.load %arg8[%c0_353, %c640_354] : memref<8x1280xbf16, #tpu.memory_space<vmem>>, vector<8x512xbf16>
    %c104_355 = arith.constant 104 : index
    %c0_356 = arith.constant 0 : index
    %291 = vector.load %arg10[%c104_355, %c0_356] : memref<216x512xbf16, #tpu.memory_space<vmem>>, vector<8x512xbf16>
    tpu.vector_store %arg10[%c104_355, %c0_356], %290 {strides = array<i32>} : memref<216x512xbf16, #tpu.memory_space<vmem>>, vector<8x512xbf16>,
    %c0_357 = arith.constant 0 : index
    %c641 = arith.constant 641 : index
    %292 = vector.load %arg8[%c0_357, %c641] : memref<8x1280xbf16, #tpu.memory_space<vmem>>, vector<8x512xbf16>
    %c112_358 = arith.constant 112 : index
    %c0_359 = arith.constant 0 : index
    %293 = vector.load %arg10[%c112_358, %c0_359] : memref<216x512xbf16, #tpu.memory_space<vmem>>, vector<8x512xbf16>
    tpu.vector_store %arg10[%c112_358, %c0_359], %292 {strides = array<i32>} : memref<216x512xbf16, #tpu.memory_space<vmem>>, vector<8x512xbf16>,
    %c0_360 = arith.constant 0 : index
    %c649 = arith.constant 649 : index
    %294 = vector.load %arg8[%c0_360, %c649] : memref<8x1280xbf16, #tpu.memory_space<vmem>>, vector<8x512xbf16>
    %c120_361 = arith.constant 120 : index
    %c0_362 = arith.constant 0 : index
    %295 = vector.load %arg10[%c120_361, %c0_362] : memref<216x512xbf16, #tpu.memory_space<vmem>>, vector<8x512xbf16>
    tpu.vector_store %arg10[%c120_361, %c0_362], %294 {strides = array<i32>} : memref<216x512xbf16, #tpu.memory_space<vmem>>, vector<8x512xbf16>,
    %c0_363 = arith.constant 0 : index
    %c650 = arith.constant 650 : index
    %296 = vector.load %arg8[%c0_363, %c650] : memref<8x1280xbf16, #tpu.memory_space<vmem>>, vector<8x512xbf16>
    %c128_364 = arith.constant 128 : index
    %c0_365 = arith.constant 0 : index
    %297 = vector.load %arg10[%c128_364, %c0_365] : memref<216x512xbf16, #tpu.memory_space<vmem>>, vector<8x512xbf16>
    tpu.vector_store %arg10[%c128_364, %c0_365], %296 {strides = array<i32>} : memref<216x512xbf16, #tpu.memory_space<vmem>>, vector<8x512xbf16>,
    %c0_366 = arith.constant 0 : index
    %c651 = arith.constant 651 : index
    %298 = vector.load %arg8[%c0_366, %c651] : memref<8x1280xbf16, #tpu.memory_space<vmem>>, vector<8x512xbf16>
    %c136_367 = arith.constant 136 : index
    %c0_368 = arith.constant 0 : index
    %299 = vector.load %arg10[%c136_367, %c0_368] : memref<216x512xbf16, #tpu.memory_space<vmem>>, vector<8x512xbf16>
    tpu.vector_store %arg10[%c136_367, %c0_368], %298 {strides = array<i32>} : memref<216x512xbf16, #tpu.memory_space<vmem>>, vector<8x512xbf16>,
    %c0_369 = arith.constant 0 : index
    %c729 = arith.constant 729 : index
    %300 = vector.load %arg8[%c0_369, %c729] : memref<8x1280xbf16, #tpu.memory_space<vmem>>, vector<8x512xbf16>
    %c144_370 = arith.constant 144 : index
    %c0_371 = arith.constant 0 : index
    %301 = vector.load %arg10[%c144_370, %c0_371] : memref<216x512xbf16, #tpu.memory_space<vmem>>, vector<8x512xbf16>
    tpu.vector_store %arg10[%c144_370, %c0_371], %300 {strides = array<i32>} : memref<216x512xbf16, #tpu.memory_space<vmem>>, vector<8x512xbf16>,
    %c0_372 = arith.constant 0 : index
    %c730 = arith.constant 730 : index
    %302 = vector.load %arg8[%c0_372, %c730] : memref<8x1280xbf16, #tpu.memory_space<vmem>>, vector<8x512xbf16>
    %c152_373 = arith.constant 152 : index
    %c0_374 = arith.constant 0 : index
    %303 = vector.load %arg10[%c152_373, %c0_374] : memref<216x512xbf16, #tpu.memory_space<vmem>>, vector<8x512xbf16>
    tpu.vector_store %arg10[%c152_373, %c0_374], %302 {strides = array<i32>} : memref<216x512xbf16, #tpu.memory_space<vmem>>, vector<8x512xbf16>,
    %c0_375 = arith.constant 0 : index
    %c731 = arith.constant 731 : index
    %304 = vector.load %arg8[%c0_375, %c731] : memref<8x1280xbf16, #tpu.memory_space<vmem>>, vector<8x512xbf16>
    %c160_376 = arith.constant 160 : index
    %c0_377 = arith.constant 0 : index
    %305 = vector.load %arg10[%c160_376, %c0_377] : memref<216x512xbf16, #tpu.memory_space<vmem>>, vector<8x512xbf16>
    tpu.vector_store %arg10[%c160_376, %c0_377], %304 {strides = array<i32>} : memref<216x512xbf16, #tpu.memory_space<vmem>>, vector<8x512xbf16>,
    %c0_378 = arith.constant 0 : index
    %c739 = arith.constant 739 : index
    %306 = vector.load %arg8[%c0_378, %c739] : memref<8x1280xbf16, #tpu.memory_space<vmem>>, vector<8x512xbf16>
    %c168_379 = arith.constant 168 : index
    %c0_380 = arith.constant 0 : index
    %307 = vector.load %arg10[%c168_379, %c0_380] : memref<216x512xbf16, #tpu.memory_space<vmem>>, vector<8x512xbf16>
    tpu.vector_store %arg10[%c168_379, %c0_380], %306 {strides = array<i32>} : memref<216x512xbf16, #tpu.memory_space<vmem>>, vector<8x512xbf16>,
    %c0_381 = arith.constant 0 : index
    %c740 = arith.constant 740 : index
    %308 = vector.load %arg8[%c0_381, %c740] : memref<8x1280xbf16, #tpu.memory_space<vmem>>, vector<8x512xbf16>
    %c176_382 = arith.constant 176 : index
    %c0_383 = arith.constant 0 : index
    %309 = vector.load %arg10[%c176_382, %c0_383] : memref<216x512xbf16, #tpu.memory_space<vmem>>, vector<8x512xbf16>
    tpu.vector_store %arg10[%c176_382, %c0_383], %308 {strides = array<i32>} : memref<216x512xbf16, #tpu.memory_space<vmem>>, vector<8x512xbf16>,
    %c0_384 = arith.constant 0 : index
    %c741 = arith.constant 741 : index
    %310 = vector.load %arg8[%c0_384, %c741] : memref<8x1280xbf16, #tpu.memory_space<vmem>>, vector<8x512xbf16>
    %c184_385 = arith.constant 184 : index
    %c0_386 = arith.constant 0 : index
    %311 = vector.load %arg10[%c184_385, %c0_386] : memref<216x512xbf16, #tpu.memory_space<vmem>>, vector<8x512xbf16>
    tpu.vector_store %arg10[%c184_385, %c0_386], %310 {strides = array<i32>} : memref<216x512xbf16, #tpu.memory_space<vmem>>, vector<8x512xbf16>,
    %c0_387 = arith.constant 0 : index
    %c749 = arith.constant 749 : index
    %312 = vector.load %arg8[%c0_387, %c749] : memref<8x1280xbf16, #tpu.memory_space<vmem>>, vector<8x512xbf16>
    %c192_388 = arith.constant 192 : index
    %c0_389 = arith.constant 0 : index
    %313 = vector.load %arg10[%c192_388, %c0_389] : memref<216x512xbf16, #tpu.memory_space<vmem>>, vector<8x512xbf16>
    tpu.vector_store %arg10[%c192_388, %c0_389], %312 {strides = array<i32>} : memref<216x512xbf16, #tpu.memory_space<vmem>>, vector<8x512xbf16>,
    %c0_390 = arith.constant 0 : index
    %c750 = arith.constant 750 : index
    %314 = vector.load %arg8[%c0_390, %c750] : memref<8x1280xbf16, #tpu.memory_space<vmem>>, vector<8x512xbf16>
    %c200_391 = arith.constant 200 : index
    %c0_392 = arith.constant 0 : index
    %315 = vector.load %arg10[%c200_391, %c0_392] : memref<216x512xbf16, #tpu.memory_space<vmem>>, vector<8x512xbf16>
    tpu.vector_store %arg10[%c200_391, %c0_392], %314 {strides = array<i32>} : memref<216x512xbf16, #tpu.memory_space<vmem>>, vector<8x512xbf16>,
    %c0_393 = arith.constant 0 : index
    %c751 = arith.constant 751 : index
    %316 = vector.load %arg8[%c0_393, %c751] : memref<8x1280xbf16, #tpu.memory_space<vmem>>, vector<8x512xbf16>
    %c208_394 = arith.constant 208 : index
    %c0_395 = arith.constant 0 : index
    %317 = vector.load %arg10[%c208_394, %c0_395] : memref<216x512xbf16, #tpu.memory_space<vmem>>, vector<8x512xbf16>
    tpu.vector_store %arg10[%c208_394, %c0_395], %316 {strides = array<i32>} : memref<216x512xbf16, #tpu.memory_space<vmem>>, vector<8x512xbf16>,
    %c0_396 = arith.constant 0 : index
    %c0_397 = arith.constant 0 : index
    %318 = vector.load %arg4[%c0_396, %c0_397] : memref<8x216xbf16, #tpu.memory_space<vmem>>, vector<8x216xbf16>
    %c0_398 = arith.constant 0 : index
    %c0_399 = arith.constant 0 : index
    %319 = vector.load %arg10[%c0_398, %c0_399] : memref<216x512xbf16, #tpu.memory_space<vmem>>, vector<216x512xbf16>
    %cst_400 = arith.constant dense<0.000000e+00> : vector<8x512xf32>
    %320 = tpu.matmul %318, %319, %cst_400 {dimension_numbers = #tpu.dot_dimension_numbers<[1], [0], [0], [1], [0, 0, 1, 1], [], []>} : vector<8x216xbf16>, vector<216x512xbf16>, vector<8x512xf32> -> vector<8x512xf32>
    %c0_401 = arith.constant 0 : index
    %c0_402 = arith.constant 0 : index
    %321 = vector.load %arg5[%c0_401, %c0_402] : memref<8x1xf32, #tpu.memory_space<vmem>>, vector<8x1xf32>
    %322 = vector.broadcast %321 : vector<8x1xf32> to vector<8x512xf32>
    %323 = arith.addf %320, %322 : vector<8x512xf32>
    %cst_403 = arith.constant 0.000000e+00 : f32
    %324 = vector.broadcast %cst_403 : f32 to vector<8x512xf32>
    %325 = arith.cmpf oge, %323, %324 : vector<8x512xf32>
    %cst_404 = arith.constant 0.00999999977 : f32
    %326 = vector.broadcast %cst_404 : f32 to vector<8x512xf32>
    %327 = arith.mulf %326, %323 : vector<8x512xf32>
    %328 = arith.select %325, %323, %327 : vector<8x512xi1>, vector<8x512xf32>
    %c0_405 = arith.constant 0 : index
    %c0_406 = arith.constant 0 : index
    %c512_407 = arith.constant 512 : index
    %329 = vector.load %arg7[%c0_405, %c0_406, %c512_407] : memref<1x8x1024xf32, #tpu.memory_space<vmem>>, vector<1x8x512xf32>
    %330 = vector.shape_cast %329 : vector<1x8x512xf32> to vector<8x512xf32>
    %331 = vector.shape_cast %328 : vector<8x512xf32> to vector<1x8x512xf32>
    tpu.vector_store %arg7[%c0_405, %c0_406, %c512_407], %331 {strides = array<i32>} : memref<1x8x1024xf32, #tpu.memory_space<vmem>>, vector<1x8x512xf32>,
    return
  }
  func.func @transform_0(%arg0: i32) -> (i32, i32, i32) {
    %c0_i32 = arith.constant 0 : i32
    %c0_i32_0 = arith.constant 0 : i32
    %c0_i32_1 = arith.constant 0 : i32
    return %arg0, %c0_i32, %c0_i32_0 : i32, i32, i32
  }
  func.func @transform_1(%arg0: i32) -> (i32, i32) {
    %c0_i32 = arith.constant 0 : i32
    %c0_i32_0 = arith.constant 0 : i32
    %c0_i32_1 = arith.constant 0 : i32
    return %c0_i32, %c0_i32_0 : i32, i32
  }
  func.func @transform_2(%arg0: i32) -> (i32, i32) {
    %c0_i32 = arith.constant 0 : i32
    %c0_i32_0 = arith.constant 0 : i32
    %c0_i32_1 = arith.constant 0 : i32
    return %c0_i32, %c0_i32_0 : i32, i32
  }
  func.func @transform_3(%arg0: i32) -> (i32, i32) {
    %c0_i32 = arith.constant 0 : i32
    %c0_i32_0 = arith.constant 0 : i32
    %c0_i32_1 = arith.constant 0 : i32
    return %c0_i32, %c0_i32_0 : i32, i32
  }
  func.func @transform_4(%arg0: i32) -> (i32, i32) {
    %c0_i32 = arith.constant 0 : i32
    %c0_i32_0 = arith.constant 0 : i32
    %c0_i32_1 = arith.constant 0 : i32
    return %c0_i32, %c0_i32_0 : i32, i32
  }
  func.func @transform_5(%arg0: i32) -> (i32, i32) {
    %c0_i32 = arith.constant 0 : i32
    %c0_i32_0 = arith.constant 0 : i32
    %c0_i32_1 = arith.constant 0 : i32
    return %c0_i32, %c0_i32_0 : i32, i32
  }
  func.func @transform_6(%arg0: i32) -> (i32, i32, i32) {
    %c0_i32 = arith.constant 0 : i32
    %c0_i32_0 = arith.constant 0 : i32
    %c0_i32_1 = arith.constant 0 : i32
    return %arg0, %c0_i32, %c0_i32_0 : i32, i32, i32
  }
}

</mosaic_0001>

<llo_original>
// kernel: unet_box_forward.1
$region0: #{unet_box_forward.1}
  #allocation0 [shape = 'u32[]', space=smem, size = 0x4, offset = 0x4, fixed_abs, tag = 'smem constant byte address 0x4 - core index']
  #allocation1 [shape = 'u32[144,128]{1,0:T(1,128)}', space=vmem, size = 0x12000, scoped, tag = 'internal scratch']
  #allocation2 [shape = 'bf16[8,1280]{1,0:T(8,128)(2,1)}', space=vmem, size = 0x5000, scoped, tag = 'scratch operand']
  #allocation3 [shape = 'bf16[216,512]{1,0:T(8,128)(2,1)}', space=vmem, size = 0x36000, scoped, tag = 'scratch operand']
  #allocation4 [shape = 'bf16[216,512]{1,0:T(8,128)(2,1)}', space=vmem, size = 0x36000, scoped, tag = 'scratch operand']
  %s0 = inlined_call_operand.vmem [shape: bf16[2,8,1280], index: 0, kind: input, shape index: {}]
  %s1 = inlined_call_operand.vmem [shape: bf16[8,216], index: 1, kind: input, shape index: {}]
  %s2 = inlined_call_operand.vmem [shape: f32[8,1], index: 2, kind: input, shape index: {}]
  %s3 = inlined_call_operand.vmem [shape: bf16[8,216], index: 3, kind: input, shape index: {}]
  %s4 = inlined_call_operand.vmem [shape: f32[8,1], index: 4, kind: input, shape index: {}]
  %s5 = inlined_call_operand.vmem [shape: f32[1,1024], index: 5, kind: input, shape index: {}]
  %s6 = inlined_call_operand.vmem [shape: f32[2,8,1024], index: 6, kind: output, shape index: {}]
  %s7 = sld [smem:[#allocation0]]
  $region57: #{unet_box_forward.1} parent=0
    _
  %s9 = ssub.s32 1, %s7
  %s10 = scalar_select 0, %s9, %s7
  loop: start=0, step=1, limit=4
  $region2: #{unet_box_forward.1} parent=0 // loop_pre_header
    _
  $region3: #{unet_box_forward.1} parent=0 // loop_header
    %s12 = sphi 0, %s16
    %p13 = scmp.ge.s32.totalorder %s12, 4
    %s22 = sphi 0, %s24
    %s25 = sphi 0, %s22
    %s26 = sphi 0, %s25
    %s42 = sphi 0, %s26
    %s46 = sphi 0, %s46
    %s48 = sphi 0, %s46
    %s49 = sphi 0, %s48
    %s63 = sphi 0, %s49
    %s67 = sphi 0, %s67
    %s69 = sphi 0, %s67
    %s70 = sphi 0, %s69
    %s84 = sphi 0, %s70
    %s88 = sphi 0, %s88
    %s90 = sphi 0, %s88
    %s91 = sphi 0, %s90
    %s105 = sphi 0, %s91
    %s109 = sphi 0, %s109
    %s111 = sphi 0, %s109
    %s112 = sphi 0, %s111
    %s126 = sphi 0, %s112
    %s130 = sphi 0, %s130
    %s132 = sphi 0, %s130
    %s133 = sphi 0, %s132
    %s147 = sphi 0, %s133
    %s153 = sphi 0, %s155
    %s156 = sphi 0, %s153
    %s157 = sphi 0, %s156
    %s173 = sphi 0, %s157
  $region4: #{unet_box_forward.1} parent=0 // loop_header_branch
    %15 = sbr.rel (%p13) target = $region8
  $region5: #{unet_box_forward.1} parent=0 // loop_body
    %s17 = ssub.s32 %s12, 1
    %s18 = ssub.s32 %s12, 2
    %s19 = sadd.s32 %s12, 1
    %s20 = ssub.s32 %s12, %s19
    %p21 = scmp.eq.s32.totalorder %s20, 0
    %s23 = sadd.s32 %s22, 1
    %s24 = scalar_select %p21, %s22, %s23
    %p27 = pneg %p21
    %p28 = scmp.eq.s32.totalorder %s12, 1
    %p29 = por %p27, %p28
    %p30 = scmp.ne.s32.totalorder %s22, %s25
    %p31 = scmp.eq.s32.totalorder %s12, 0
    %p32 = por %p30, %p31
    %p33 = scmp.ne.s32.totalorder %s22, %s25
    %p34 = scmp.eq.s32.totalorder %s17, 1
    %p35 = por %p33, %p34
    %p36 = scmp.ne.s32.totalorder %s25, %s26
    %p37 = scmp.eq.s32.totalorder %s17, 0
    %p38 = por %p36, %p37
    %p39 = scmp.ne.s32.totalorder %s25, %s26
    %p40 = scmp.eq.s32.totalorder %s18, 1
    %p41 = por %p39, %p40
    %p43 = scmp.ne.s32.totalorder %s26, %s42
    %p44 = scmp.eq.s32.totalorder %s18, 0
    %p45 = por %p43, %p44
    %s47 = sadd.s32 %s46, 1
    %p50 = scmp.eq.s32.totalorder %s12, 1
    %p51 = scmp.ne.s32.totalorder %s46, %s48
    %p52 = scmp.eq.s32.totalorder %s12, 0
    %p53 = por %p51, %p52
    %p54 = scmp.ne.s32.totalorder %s46, %s48
    %p55 = scmp.eq.s32.totalorder %s17, 1
    %p56 = por %p54, %p55
    %p57 = scmp.ne.s32.totalorder %s48, %s49
    %p58 = scmp.eq.s32.totalorder %s17, 0
    %p59 = por %p57, %p58
    %p60 = scmp.ne.s32.totalorder %s48, %s49
    %p61 = scmp.eq.s32.totalorder %s18, 1
    %p62 = por %p60, %p61
    %p64 = scmp.ne.s32.totalorder %s49, %s63
    %p65 = scmp.eq.s32.totalorder %s18, 0
    %p66 = por %p64, %p65
    %s68 = sadd.s32 %s67, 1
    %p71 = scmp.eq.s32.totalorder %s12, 1
    %p72 = scmp.ne.s32.totalorder %s67, %s69
    %p73 = scmp.eq.s32.totalorder %s12, 0
    %p74 = por %p72, %p73
    %p75 = scmp.ne.s32.totalorder %s67, %s69
    %p76 = scmp.eq.s32.totalorder %s17, 1
    %p77 = por %p75, %p76
    %p78 = scmp.ne.s32.totalorder %s69, %s70
    %p79 = scmp.eq.s32.totalorder %s17, 0
    %p80 = por %p78, %p79
    %p81 = scmp.ne.s32.totalorder %s69, %s70
    %p82 = scmp.eq.s32.totalorder %s18, 1
    %p83 = por %p81, %p82
    %p85 = scmp.ne.s32.totalorder %s70, %s84
    %p86 = scmp.eq.s32.totalorder %s18, 0
    %p87 = por %p85, %p86
    %s89 = sadd.s32 %s88, 1
    %p92 = scmp.eq.s32.totalorder %s12, 1
    %p93 = scmp.ne.s32.totalorder %s88, %s90
    %p94 = scmp.eq.s32.totalorder %s12, 0
    %p95 = por %p93, %p94
    %p96 = scmp.ne.s32.totalorder %s88, %s90
    %p97 = scmp.eq.s32.totalorder %s17, 1
    %p98 = por %p96, %p97
    %p99 = scmp.ne.s32.totalorder %s90, %s91
    %p100 = scmp.eq.s32.totalorder %s17, 0
    %p101 = por %p99, %p100
    %p102 = scmp.ne.s32.totalorder %s90, %s91
    %p103 = scmp.eq.s32.totalorder %s18, 1
    %p104 = por %p102, %p103
    %p106 = scmp.ne.s32.totalorder %s91, %s105
    %p107 = scmp.eq.s32.totalorder %s18, 0
    %p108 = por %p106, %p107
    %s110 = sadd.s32 %s109, 1
    %p113 = scmp.eq.s32.totalorder %s12, 1
    %p114 = scmp.ne.s32.totalorder %s109, %s111
    %p115 = scmp.eq.s32.totalorder %s12, 0
    %p116 = por %p114, %p115
    %p117 = scmp.ne.s32.totalorder %s109, %s111
    %p118 = scmp.eq.s32.totalorder %s17, 1
    %p119 = por %p117, %p118
    %p120 = scmp.ne.s32.totalorder %s111, %s112
    %p121 = scmp.eq.s32.totalorder %s17, 0
    %p122 = por %p120, %p121
    %p123 = scmp.ne.s32.totalorder %s111, %s112
    %p124 = scmp.eq.s32.totalorder %s18, 1
    %p125 = por %p123, %p124
    %p127 = scmp.ne.s32.totalorder %s112, %s126
    %p128 = scmp.eq.s32.totalorder %s18, 0
    %p129 = por %p127, %p128
    %s131 = sadd.s32 %s130, 1
    %p134 = scmp.eq.s32.totalorder %s12, 1
    %p135 = scmp.ne.s32.totalorder %s130, %s132
    %p136 = scmp.eq.s32.totalorder %s12, 0
    %p137 = por %p135, %p136
    %p138 = scmp.ne.s32.totalorder %s130, %s132
    %p139 = scmp.eq.s32.totalorder %s17, 1
    %p140 = por %p138, %p139
    %p141 = scmp.ne.s32.totalorder %s132, %s133
    %p142 = scmp.eq.s32.totalorder %s17, 0
    %p143 = por %p141, %p142
    %p144 = scmp.ne.s32.totalorder %s132, %s133
    %p145 = scmp.eq.s32.totalorder %s18, 1
    %p146 = por %p144, %p145
    %p148 = scmp.ne.s32.totalorder %s133, %s147
    %p149 = scmp.eq.s32.totalorder %s18, 0
    %p150 = por %p148, %p149
    %s151 = ssub.s32 %s12, %s19
    %p152 = scmp.eq.s32.totalorder %s151, 0
    %s154 = sadd.s32 %s153, 1
    %s155 = scalar_select %p152, %s153, %s154
    %p158 = pneg %p152
    %p159 = scmp.eq.s32.totalorder %s12, 1
    %p160 = por %p158, %p159
    %p161 = scmp.ne.s32.totalorder %s153, %s156
    %p162 = scmp.eq.s32.totalorder %s12, 0
    %p163 = por %p161, %p162
    %p164 = scmp.ne.s32.totalorder %s153, %s156
    %p165 = scmp.eq.s32.totalorder %s17, 1
    %p166 = por %p164, %p165
    %p167 = scmp.ne.s32.totalorder %s156, %s157
    %p168 = scmp.eq.s32.totalorder %s17, 0
    %p169 = por %p167, %p168
    %p170 = scmp.ne.s32.totalorder %s156, %s157
    %p171 = scmp.eq.s32.totalorder %s18, 1
    %p172 = por %p170, %p171
    %p174 = scmp.ne.s32.totalorder %s157, %s173
    %p175 = scmp.eq.s32.totalorder %s18, 0
    %p176 = por %p174, %p175
    %p177 = scmp.le.s32.totalorder 1, %s12
    %p178 = scmp.lt.s32.totalorder %s12, 3
    %p179 = pnand %p177, %p178
    %p180 = pneg %p179
    // Predicated region
    $region9: #{unet_box_forward.1} parent=5 // pred_check
      _
    $region10: #{unet_box_forward.1} parent=5 // pred_check_branch
      %182 = sbr.rel (%p179) target = $region12
    $region11: #{unet_box_forward.1} parent=5 // pred_region
      %s183 = ssub.s32 %s12, 1
      // Predicated region
      $region13: #{unet_box_forward.1} parent=11 // pred_check
        %p184 = pneg %p59
      $region14: #{unet_box_forward.1} parent=11 // pred_check_branch
        %186 = sbr.rel (%p184) target = $region16
      $region15: #{unet_box_forward.1} parent=11 // pred_region
        _
      $region16: #{unet_box_forward.1} parent=11 // pred_fallthru
        _
      // Predicated region
      $region17: #{unet_box_forward.1} parent=11 // pred_check
        %p187 = pneg %p80
      $region18: #{unet_box_forward.1} parent=11 // pred_check_branch
        %189 = sbr.rel (%p187) target = $region20
      $region19: #{unet_box_forward.1} parent=11 // pred_region
        _
      $region20: #{unet_box_forward.1} parent=11 // pred_fallthru
        _
      // Predicated region
      $region21: #{unet_box_forward.1} parent=11 // pred_check
        %p190 = pneg %p101
      $region22: #{unet_box_forward.1} parent=11 // pred_check_branch
        %192 = sbr.rel (%p190) target = $region24
      $region23: #{unet_box_forward.1} parent=11 // pred_region
        _
      $region24: #{unet_box_forward.1} parent=11 // pred_fallthru
        _
      // Predicated region
      $region25: #{unet_box_forward.1} parent=11 // pred_check
        %p193 = pneg %p122
      $region26: #{unet_box_forward.1} parent=11 // pred_check_branch
        %195 = sbr.rel (%p193) target = $region28
      $region27: #{unet_box_forward.1} parent=11 // pred_region
        _
      $region28: #{unet_box_forward.1} parent=11 // pred_fallthru
        _
      // Predicated region
      $region29: #{unet_box_forward.1} parent=11 // pred_check
        %p196 = pneg %p143
      $region30: #{unet_box_forward.1} parent=11 // pred_check_branch
        %198 = sbr.rel (%p196) target = $region32
      $region31: #{unet_box_forward.1} parent=11 // pred_region
        _
      $region32: #{unet_box_forward.1} parent=11 // pred_fallthru
        _
    $region12: #{unet_box_forward.1} parent=5 // pred_fallthru
      _
    %p199 = scmp.lt.s32.totalorder %s12, 2
    // Predicated region
    $region33: #{unet_box_forward.1} parent=5 // pred_check
      %p200 = pneg %p199
    $region34: #{unet_box_forward.1} parent=5 // pred_check_branch
      %202 = sbr.rel (%p200) target = $region36
    $region35: #{unet_box_forward.1} parent=5 // pred_region
      // Predicated region
      $region37: #{unet_box_forward.1} parent=35 // pred_check
        %p203 = pneg %p32
      $region38: #{unet_box_forward.1} parent=35 // pred_check_branch
        %205 = sbr.rel (%p203) target = $region40
      $region39: #{unet_box_forward.1} parent=35 // pred_region
        %p206 = scmp.lt.s32.totalorder %s12, 1
        %s207 = scalar_select %p206, %s12, 1
        %s208 = smul.addr %s207, 10
        %s209 = smul.addr %s208, 4
        %s210 = scalar_lea.vmem %s0, %s209
      $region40: #{unet_box_forward.1} parent=35 // pred_fallthru
        _
    $region36: #{unet_box_forward.1} parent=5 // pred_fallthru
      _
    %p211 = scmp.le.s32.totalorder 1, %s12
    %p212 = scmp.lt.s32.totalorder %s12, 3
    %p213 = pnand %p211, %p212
    %p214 = pneg %p213
    // Predicated region
    $region41: #{unet_box_forward.1} parent=5 // pred_check
      _
    $region42: #{unet_box_forward.1} parent=5 // pred_check_branch
      %216 = sbr.rel (%p213) target = $region44
    $region43: #{unet_box_forward.1} parent=5 // pred_region
      %s217 = ssub.s32 %s12, 1
      %p218 = scmp.lt.s32.totalorder %s17, 1
      %s219 = scalar_select %p218, %s17, 1
      %s220 = smul.addr %s219, 10
      %s221 = smul.addr %s220, 4
      %s222 = scalar_lea.vmem %s0, %s221
      %p223 = pneg %p38
      %p224 = pneg %p35
      %p225 = pneg %p59
      %p226 = pneg %p56
      %p227 = pneg %p80
      %p228 = pneg %p77
      %p229 = pneg %p101
      %p230 = pneg %p98
      %p231 = pneg %p122
      %p232 = pneg %p119
      %p233 = pneg %p143
      %p234 = pneg %p140
      %p235 = pneg %p169
      %p236 = pneg %p166
      %p237 = scmp.lt.s32.totalorder %s17, 1
      %s238 = scalar_select %p237, %s17, 1
      %s239 = smul.addr %s238, 8
      %s240 = smul.addr %s239, 8
      %s241 = scalar_lea.vmem %s6, %s240
      %p242 = scmp.lt.s32.totalorder %s17, 1
      %s243 = scalar_select %p242, %s17, 1
      %s244 = smul.addr %s243, 10
      %s245 = smul.addr %s244, 4
      %s246 = scalar_lea.vmem %s0, %s245
      %p247 = scmp.lt.s32.totalorder %s17, 1
      %s248 = scalar_select %p247, %s17, 1
      %s249 = smul.addr %s248, 8
      %s250 = smul.addr %s249, 8
      %s251 = scalar_lea.vmem %s6, %s250
      %253 = vst [vmem:[#allocation2] sm:$0xff] 0
      %254 = vst [vmem:[#allocation2 + $0x8] sm:$0xff] 0
      %255 = vst [vmem:[#allocation2 + $0x10] sm:$0xff] 0
      %256 = vst [vmem:[#allocation2 + $0x18] sm:$0xff] 0
      %257 = vst [vmem:[#allocation2 + $0x20] sm:$0xff] 0
      %v258 = vld [vmem:[%s246] sm:$0xff]
      %v259 = vld [vmem:[%s246 + $0x8] sm:$0xff]
      %260 = vst [vmem:[#allocation3] sm:$0xff] %v258
      %261 = vst [vmem:[#allocation3 + $0x8] sm:$0xff] %v259
      %v262 = vld [vmem:[%s246] sm:$0xff]
      %v263 = vld [vmem:[%s246 + $0x8] sm:$0xff]
      %v264 = vld [vmem:[%s246 + $0x10] sm:$0xf]
      %268 = vrot.lane.b32.xlu0 %v262, 127
      %v269 = vpop.permute.xlu0 %268
      %270 = vrot.lane.b32.xlu0 %v263, 127
      %v271 = vpop.permute.xlu0 %270
      %272 = vrot.lane.b32.xlu0 %v264, 127
      %v273 = vpop.permute.xlu0 %272
      %v274 = vrot.slane %v269, 4
      %v275 = vrot.slane %v271, 4
      %v276 = vrot.slane %v273, 4
      %vm277 = vcmask 1043456
      %v278 = vsel %vm277, %v274, %v275
      %vm279 = vcmask 1039360
      %v280 = vsel %vm279, %v269, %v278
      %v281 = vsel %vm277, %v275, %v276
      %v282 = vsel %vm279, %v271, %v281
      %285 = vst [vmem:[#allocation3 + $0x10] sm:$0xff] %v280
      %286 = vst [vmem:[#allocation3 + $0x18] sm:$0xff] %v282
      %v287 = vld [vmem:[%s246] sm:$0xff]
      %v288 = vld [vmem:[%s246 + $0x8] sm:$0xff]
      %v289 = vld [vmem:[%s246 + $0x10] sm:$0xf]
      %293 = vrot.lane.b32.xlu0 %v287, 126
      %v294 = vpop.permute.xlu0 %293
      %295 = vrot.lane.b32.xlu0 %v288, 126
      %v296 = vpop.permute.xlu0 %295
      %297 = vrot.lane.b32.xlu0 %v289, 126
      %v298 = vpop.permute.xlu0 %297
      %v299 = vrot.slane %v294, 4
      %v300 = vrot.slane %v296, 4
      %v301 = vrot.slane %v298, 4
      %v302 = vsel %vm277, %v299, %v300
      %vm303 = vcmask 1031168
      %v304 = vsel %vm303, %v294, %v302
      %v305 = vsel %vm277, %v300, %v301
      %v306 = vsel %vm303, %v296, %v305
      %309 = vst [vmem:[#allocation3 + $0x20] sm:$0xff] %v304
      %310 = vst [vmem:[#allocation3 + $0x28] sm:$0xff] %v306
      %v311 = vld [vmem:[%s246] sm:$0xff]
      %v312 = vld [vmem:[%s246 + $0x8] sm:$0xff]
      %v313 = vld [vmem:[%s246 + $0x10] sm:$0xf]
      %317 = vrot.lane.b32.xlu0 %v311, 118
      %v318 = vpop.permute.xlu0 %317
      %319 = vrot.lane.b32.xlu0 %v312, 118
      %v320 = vpop.permute.xlu0 %319
      %321 = vrot.lane.b32.xlu0 %v313, 118
      %v322 = vpop.permute.xlu0 %321
      %v323 = vrot.slane %v318, 4
      %v324 = vrot.slane %v320, 4
      %v325 = vrot.slane %v322, 4
      %v326 = vsel %vm277, %v323, %v324
      %vm327 = vcmask 965632
      %v328 = vsel %vm327, %v318, %v326
      %v329 = vsel %vm277, %v324, %v325
      %v330 = vsel %vm327, %v320, %v329
      %333 = vst [vmem:[#allocation3 + $0x30] sm:$0xff] %v328
      %334 = vst [vmem:[#allocation3 + $0x38] sm:$0xff] %v330
      %v335 = vld [vmem:[%s246] sm:$0xff]
      %v336 = vld [vmem:[%s246 + $0x8] sm:$0xff]
      %v337 = vld [vmem:[%s246 + $0x10] sm:$0xf]
      %341 = vrot.lane.b32.xlu0 %v335, 117
      %v342 = vpop.permute.xlu0 %341
      %343 = vrot.lane.b32.xlu0 %v336, 117
      %v344 = vpop.permute.xlu0 %343
      %345 = vrot.lane.b32.xlu0 %v337, 117
      %v346 = vpop.permute.xlu0 %345
      %v347 = vrot.slane %v342, 4
      %v348 = vrot.slane %v344, 4
      %v349 = vrot.slane %v346, 4
      %v350 = vsel %vm277, %v347, %v348
      %vm351 = vcmask 957440
      %v352 = vsel %vm351, %v342, %v350
      %v353 = vsel %vm277, %v348, %v349
      %v354 = vsel %vm351, %v344, %v353
      %357 = vst [vmem:[#allocation3 + $0x40] sm:$0xff] %v352
      %358 = vst [vmem:[#allocation3 + $0x48] sm:$0xff] %v354
      %v359 = vld [vmem:[%s246] sm:$0xff]
      %v360 = vld [vmem:[%s246 + $0x8] sm:$0xff]
      %v361 = vld [vmem:[%s246 + $0x10] sm:$0xf]
      %365 = vrot.lane.b32.xlu0 %v359, 116
      %v366 = vpop.permute.xlu0 %365
      %367 = vrot.lane.b32.xlu0 %v360, 116
      %v368 = vpop.permute.xlu0 %367
      %369 = vrot.lane.b32.xlu0 %v361, 116
      %v370 = vpop.permute.xlu0 %369
      %v371 = vrot.slane %v366, 4
      %v372 = vrot.slane %v368, 4
      %v373 = vrot.slane %v370, 4
      %v374 = vsel %vm277, %v371, %v372
      %vm375 = vcmask 949248
      %v376 = vsel %vm375, %v366, %v374
      %v377 = vsel %vm277, %v372, %v373
      %v378 = vsel %vm375, %v368, %v377
      %381 = vst [vmem:[#allocation3 + $0x50] sm:$0xff] %v376
      %382 = vst [vmem:[#allocation3 + $0x58] sm:$0xff] %v378
      %v383 = vld [vmem:[%s246] sm:$0xff]
      %v384 = vld [vmem:[%s246 + $0x8] sm:$0xff]
      %v385 = vld [vmem:[%s246 + $0x10] sm:$0xf]
      %389 = vrot.lane.b32.xlu0 %v383, 108
      %v390 = vpop.permute.xlu0 %389
      %391 = vrot.lane.b32.xlu0 %v384, 108
      %v392 = vpop.permute.xlu0 %391
      %393 = vrot.lane.b32.xlu0 %v385, 108
      %v394 = vpop.permute.xlu0 %393
      %v395 = vrot.slane %v390, 4
      %v396 = vrot.slane %v392, 4
      %v397 = vrot.slane %v394, 4
      %v398 = vsel %vm277, %v395, %v396
      %vm399 = vcmask 883712
      %v400 = vsel %vm399, %v390, %v398
      %v401 = vsel %vm277, %v396, %v397
      %v402 = vsel %vm399, %v392, %v401
      %405 = vst [vmem:[#allocation3 + $0x60] sm:$0xff] %v400
      %406 = vst [vmem:[#allocation3 + $0x68] sm:$0xff] %v402
      %v407 = vld [vmem:[%s246] sm:$0xff]
      %v408 = vld [vmem:[%s246 + $0x8] sm:$0xff]
      %v409 = vld [vmem:[%s246 + $0x10] sm:$0xf]
      %413 = vrot.lane.b32.xlu0 %v407, 107
      %v414 = vpop.permute.xlu0 %413
      %415 = vrot.lane.b32.xlu0 %v408, 107
      %v416 = vpop.permute.xlu0 %415
      %417 = vrot.lane.b32.xlu0 %v409, 107
      %v418 = vpop.permute.xlu0 %417
      %v419 = vrot.slane %v414, 4
      %v420 = vrot.slane %v416, 4
      %v421 = vrot.slane %v418, 4
      %v422 = vsel %vm277, %v419, %v420
      %vm423 = vcmask 875520
      %v424 = vsel %vm423, %v414, %v422
      %v425 = vsel %vm277, %v420, %v421
      %v426 = vsel %vm423, %v416, %v425
      %429 = vst [vmem:[#allocation3 + $0x70] sm:$0xff] %v424
      %430 = vst [vmem:[#allocation3 + $0x78] sm:$0xff] %v426
      %v431 = vld [vmem:[%s246] sm:$0xff]
      %v432 = vld [vmem:[%s246 + $0x8] sm:$0xff]
      %v433 = vld [vmem:[%s246 + $0x10] sm:$0xf]
      %437 = vrot.lane.b32.xlu0 %v431, 106
      %v438 = vpop.permute.xlu0 %437
      %439 = vrot.lane.b32.xlu0 %v432, 106
      %v440 = vpop.permute.xlu0 %439
      %441 = vrot.lane.b32.xlu0 %v433, 106
      %v442 = vpop.permute.xlu0 %441
      %v443 = vrot.slane %v438, 4
      %v444 = vrot.slane %v440, 4
      %v445 = vrot.slane %v442, 4
      %v446 = vsel %vm277, %v443, %v444
      %vm447 = vcmask 867328
      %v448 = vsel %vm447, %v438, %v446
      %v449 = vsel %vm277, %v444, %v445
      %v450 = vsel %vm447, %v440, %v449
      %453 = vst [vmem:[#allocation3 + $0x80] sm:$0xff] %v448
      %454 = vst [vmem:[#allocation3 + $0x88] sm:$0xff] %v450
      %v455 = vld [vmem:[%s246] sm:$0xff]
      %v456 = vld [vmem:[%s246 + $0x8] sm:$0xff]
      %v457 = vld [vmem:[%s246 + $0x10] sm:$0xf]
      %461 = vrot.lane.b32.xlu0 %v455, 28
      %v462 = vpop.permute.xlu0 %461
      %463 = vrot.lane.b32.xlu0 %v456, 28
      %v464 = vpop.permute.xlu0 %463
      %465 = vrot.lane.b32.xlu0 %v457, 28
      %v466 = vpop.permute.xlu0 %465
      %v467 = vrot.slane %v462, 4
      %v468 = vrot.slane %v464, 4
      %v469 = vrot.slane %v466, 4
      %v470 = vsel %vm277, %v467, %v468
      %vm471 = vcmask 228352
      %v472 = vsel %vm471, %v462, %v470
      %v473 = vsel %vm277, %v468, %v469
      %v474 = vsel %vm471, %v464, %v473
      %477 = vst [vmem:[#allocation3 + $0x90] sm:$0xff] %v472
      %478 = vst [vmem:[#allocation3 + $0x98] sm:$0xff] %v474
      %v479 = vld [vmem:[%s246] sm:$0xff]
      %v480 = vld [vmem:[%s246 + $0x8] sm:$0xff]
      %v481 = vld [vmem:[%s246 + $0x10] sm:$0xf]
      %485 = vrot.lane.b32.xlu0 %v479, 27
      %v486 = vpop.permute.xlu0 %485
      %487 = vrot.lane.b32.xlu0 %v480, 27
      %v488 = vpop.permute.xlu0 %487
      %489 = vrot.lane.b32.xlu0 %v481, 27
      %v490 = vpop.permute.xlu0 %489
      %v491 = vrot.slane %v486, 4
      %v492 = vrot.slane %v488, 4
      %v493 = vrot.slane %v490, 4
      %v494 = vsel %vm277, %v491, %v492
      %vm495 = vcmask 220160
      %v496 = vsel %vm495, %v486, %v494
      %v497 = vsel %vm277, %v492, %v493
      %v498 = vsel %vm495, %v488, %v497
      %501 = vst [vmem:[#allocation3 + $0xa0] sm:$0xff] %v496
      %502 = vst [vmem:[#allocation3 + $0xa8] sm:$0xff] %v498
      %v503 = vld [vmem:[%s246] sm:$0xff]
      %v504 = vld [vmem:[%s246 + $0x8] sm:$0xff]
      %v505 = vld [vmem:[%s246 + $0x10] sm:$0xf]
      %509 = vrot.lane.b32.xlu0 %v503, 26
      %v510 = vpop.permute.xlu0 %509
      %511 = vrot.lane.b32.xlu0 %v504, 26
      %v512 = vpop.permute.xlu0 %511
      %513 = vrot.lane.b32.xlu0 %v505, 26
      %v514 = vpop.permute.xlu0 %513
      %v515 = vrot.slane %v510, 4
      %v516 = vrot.slane %v512, 4
      %v517 = vrot.slane %v514, 4
      %v518 = vsel %vm277, %v515, %v516
      %vm519 = vcmask 211968
      %v520 = vsel %vm519, %v510, %v518
      %v521 = vsel %vm277, %v516, %v517
      %v522 = vsel %vm519, %v512, %v521
      %525 = vst [vmem:[#allocation3 + $0xb0] sm:$0xff] %v520
      %526 = vst [vmem:[#allocation3 + $0xb8] sm:$0xff] %v522
      %v527 = vld [vmem:[%s246] sm:$0xff]
      %v528 = vld [vmem:[%s246 + $0x8] sm:$0xff]
      %v529 = vld [vmem:[%s246 + $0x10] sm:$0xf]
      %533 = vrot.lane.b32.xlu0 %v527, 18
      %v534 = vpop.permute.xlu0 %533
      %535 = vrot.lane.b32.xlu0 %v528, 18
      %v536 = vpop.permute.xlu0 %535
      %537 = vrot.lane.b32.xlu0 %v529, 18
      %v538 = vpop.permute.xlu0 %537
      %v539 = vrot.slane %v534, 4
      %v540 = vrot.slane %v536, 4
      %v541 = vrot.slane %v538, 4
      %v542 = vsel %vm277, %v539, %v540
      %vm543 = vcmask 146432
      %v544 = vsel %vm543, %v534, %v542
      %v545 = vsel %vm277, %v540, %v541
      %v546 = vsel %vm543, %v536, %v545
      %549 = vst [vmem:[#allocation3 + $0xc0] sm:$0xff] %v544
      %550 = vst [vmem:[#allocation3 + $0xc8] sm:$0xff] %v546
      %v551 = vld [vmem:[%s246] sm:$0xff]
      %v552 = vld [vmem:[%s246 + $0x8] sm:$0xff]
      %v553 = vld [vmem:[%s246 + $0x10] sm:$0xf]
      %557 = vrot.lane.b32.xlu0 %v551, 17
      %v558 = vpop.permute.xlu0 %557
      %559 = vrot.lane.b32.xlu0 %v552, 17
      %v560 = vpop.permute.xlu0 %559
      %561 = vrot.lane.b32.xlu0 %v553, 17
      %v562 = vpop.permute.xlu0 %561
      %v563 = vrot.slane %v558, 4
      %v564 = vrot.slane %v560, 4
      %v565 = vrot.slane %v562, 4
      %v566 = vsel %vm277, %v563, %v564
      %vm567 = vcmask 138240
      %v568 = vsel %vm567, %v558, %v566
      %v569 = vsel %vm277, %v564, %v565
      %v570 = vsel %vm567, %v560, %v569
      %573 = vst [vmem:[#allocation3 + $0xd0] sm:$0xff] %v568
      %574 = vst [vmem:[#allocation3 + $0xd8] sm:$0xff] %v570
      %v575 = vld [vmem:[%s246] sm:$0xff]
      %v576 = vld [vmem:[%s246 + $0x8] sm:$0xff]
      %v577 = vld [vmem:[%s246 + $0x10] sm:$0xf]
      %581 = vrot.lane.b32.xlu0 %v575, 16
      %v582 = vpop.permute.xlu0 %581
      %583 = vrot.lane.b32.xlu0 %v576, 16
      %v584 = vpop.permute.xlu0 %583
      %585 = vrot.lane.b32.xlu0 %v577, 16
      %v586 = vpop.permute.xlu0 %585
      %v587 = vrot.slane %v582, 4
      %v588 = vrot.slane %v584, 4
      %v589 = vrot.slane %v586, 4
      %v590 = vsel %vm277, %v587, %v588
      %vm591 = vcmask 130048
      %v592 = vsel %vm591, %v582, %v590
      %v593 = vsel %vm277, %v588, %v589
      %v594 = vsel %vm591, %v584, %v593
      %597 = vst [vmem:[#allocation3 + $0xe0] sm:$0xff] %v592
      %598 = vst [vmem:[#allocation3 + $0xe8] sm:$0xff] %v594
      %v599 = vld [vmem:[%s246] sm:$0xff]
      %v600 = vld [vmem:[%s246 + $0x8] sm:$0xff]
      %v601 = vld [vmem:[%s246 + $0x10] sm:$0xf]
      %605 = vrot.lane.b32.xlu0 %v599, 8
      %v606 = vpop.permute.xlu0 %605
      %607 = vrot.lane.b32.xlu0 %v600, 8
      %v608 = vpop.permute.xlu0 %607
      %609 = vrot.lane.b32.xlu0 %v601, 8
      %v610 = vpop.permute.xlu0 %609
      %v611 = vrot.slane %v606, 4
      %v612 = vrot.slane %v608, 4
      %v613 = vrot.slane %v610, 4
      %v614 = vsel %vm277, %v611, %v612
      %vm615 = vcmask 64512
      %v616 = vsel %vm615, %v606, %v614
      %v617 = vsel %vm277, %v612, %v613
      %v618 = vsel %vm615, %v608, %v617
      %621 = vst [vmem:[#allocation3 + $0xf0] sm:$0xff] %v616
      %622 = vst [vmem:[#allocation3 + $0xf8] sm:$0xff] %v618
      %v623 = vld [vmem:[%s246] sm:$0xff]
      %v624 = vld [vmem:[%s246 + $0x8] sm:$0xff]
      %v625 = vld [vmem:[%s246 + $0x10] sm:$0xf]
      %629 = vrot.lane.b32.xlu0 %v623, 7
      %v630 = vpop.permute.xlu0 %629
      %631 = vrot.lane.b32.xlu0 %v624, 7
      %v632 = vpop.permute.xlu0 %631
      %633 = vrot.lane.b32.xlu0 %v625, 7
      %v634 = vpop.permute.xlu0 %633
      %v635 = vrot.slane %v630, 4
      %v636 = vrot.slane %v632, 4
      %v637 = vrot.slane %v634, 4
      %v638 = vsel %vm277, %v635, %v636
      %vm639 = vcmask 56320
      %v640 = vsel %vm639, %v630, %v638
      %v641 = vsel %vm277, %v636, %v637
      %v642 = vsel %vm639, %v632, %v641
      %645 = vst [vmem:[#allocation3 + $0x100] sm:$0xff] %v640
      %646 = vst [vmem:[#allocation3 + $0x108] sm:$0xff] %v642
      %v647 = vld [vmem:[%s246] sm:$0xff]
      %v648 = vld [vmem:[%s246 + $0x8] sm:$0xff]
      %v649 = vld [vmem:[%s246 + $0x10] sm:$0xf]
      %653 = vrot.lane.b32.xlu0 %v647, 6
      %v654 = vpop.permute.xlu0 %653
      %655 = vrot.lane.b32.xlu0 %v648, 6
      %v656 = vpop.permute.xlu0 %655
      %657 = vrot.lane.b32.xlu0 %v649, 6
      %v658 = vpop.permute.xlu0 %657
      %v659 = vrot.slane %v654, 4
      %v660 = vrot.slane %v656, 4
      %v661 = vrot.slane %v658, 4
      %v662 = vsel %vm277, %v659, %v660
      %vm663 = vcmask 48128
      %v664 = vsel %vm663, %v654, %v662
      %v665 = vsel %vm277, %v660, %v661
      %v666 = vsel %vm663, %v656, %v665
      %669 = vst [vmem:[#allocation3 + $0x110] sm:$0xff] %v664
      %670 = vst [vmem:[#allocation3 + $0x118] sm:$0xff] %v666
      %v671 = vld [vmem:[%s246 + $0x4] sm:$0xff]
      %v672 = vld [vmem:[%s246 + $0xc] sm:$0xff]
      %v673 = vld [vmem:[%s246 + $0x14] sm:$0xf]
      %677 = vrot.lane.b32.xlu0 %v671, 56
      %v678 = vpop.permute.xlu0 %677
      %679 = vrot.lane.b32.xlu0 %v672, 56
      %v680 = vpop.permute.xlu0 %679
      %681 = vrot.lane.b32.xlu0 %v673, 56
      %v682 = vpop.permute.xlu0 %681
      %v683 = vrot.slane %v678, 4
      %v684 = vrot.slane %v680, 4
      %v685 = vrot.slane %v682, 4
      %v686 = vsel %vm277, %v683, %v684
      %vm687 = vcmask 457728
      %v688 = vsel %vm687, %v678, %v686
      %v689 = vsel %vm277, %v684, %v685
      %v690 = vsel %vm687, %v680, %v689
      %693 = vst [vmem:[#allocation3 + $0x120] sm:$0xff] %v688
      %694 = vst [vmem:[#allocation3 + $0x128] sm:$0xff] %v690
      %v695 = vld [vmem:[%s246 + $0x4] sm:$0xff]
      %v696 = vld [vmem:[%s246 + $0xc] sm:$0xff]
      %v697 = vld [vmem:[%s246 + $0x14] sm:$0xf]
      %701 = vrot.lane.b32.xlu0 %v695, 55
      %v702 = vpop.permute.xlu0 %701
      %703 = vrot.lane.b32.xlu0 %v696, 55
      %v704 = vpop.permute.xlu0 %703
      %705 = vrot.lane.b32.xlu0 %v697, 55
      %v706 = vpop.permute.xlu0 %705
      %v707 = vrot.slane %v702, 4
      %v708 = vrot.slane %v704, 4
      %v709 = vrot.slane %v706, 4
      %v710 = vsel %vm277, %v707, %v708
      %vm711 = vcmask 449536
      %v712 = vsel %vm711, %v702, %v710
      %v713 = vsel %vm277, %v708, %v709
      %v714 = vsel %vm711, %v704, %v713
      %717 = vst [vmem:[#allocation3 + $0x130] sm:$0xff] %v712
      %718 = vst [vmem:[#allocation3 + $0x138] sm:$0xff] %v714
      %v719 = vld [vmem:[%s246 + $0x4] sm:$0xff]
      %v720 = vld [vmem:[%s246 + $0xc] sm:$0xff]
      %v721 = vld [vmem:[%s246 + $0x14] sm:$0xf]
      %725 = vrot.lane.b32.xlu0 %v719, 54
      %v726 = vpop.permute.xlu0 %725
      %727 = vrot.lane.b32.xlu0 %v720, 54
      %v728 = vpop.permute.xlu0 %727
      %729 = vrot.lane.b32.xlu0 %v721, 54
      %v730 = vpop.permute.xlu0 %729
      %v731 = vrot.slane %v726, 4
      %v732 = vrot.slane %v728, 4
      %v733 = vrot.slane %v730, 4
      %v734 = vsel %vm277, %v731, %v732
      %vm735 = vcmask 441344
      %v736 = vsel %vm735, %v726, %v734
      %v737 = vsel %vm277, %v732, %v733
      %v738 = vsel %vm735, %v728, %v737
      %741 = vst [vmem:[#allocation3 + $0x140] sm:$0xff] %v736
      %742 = vst [vmem:[#allocation3 + $0x148] sm:$0xff] %v738
      %v743 = vld [vmem:[%s246 + $0x4] sm:$0xff]
      %v744 = vld [vmem:[%s246 + $0xc] sm:$0xff]
      %v745 = vld [vmem:[%s246 + $0x14] sm:$0xf]
      %749 = vrot.lane.b32.xlu0 %v743, 46
      %v750 = vpop.permute.xlu0 %749
      %751 = vrot.lane.b32.xlu0 %v744, 46
      %v752 = vpop.permute.xlu0 %751
      %753 = vrot.lane.b32.xlu0 %v745, 46
      %v754 = vpop.permute.xlu0 %753
      %v755 = vrot.slane %v750, 4
      %v756 = vrot.slane %v752, 4
      %v757 = vrot.slane %v754, 4
      %v758 = vsel %vm277, %v755, %v756
      %vm759 = vcmask 375808
      %v760 = vsel %vm759, %v750, %v758
      %v761 = vsel %vm277, %v756, %v757
      %v762 = vsel %vm759, %v752, %v761
      %765 = vst [vmem:[#allocation3 + $0x150] sm:$0xff] %v760
      %766 = vst [vmem:[#allocation3 + $0x158] sm:$0xff] %v762
      %v767 = vld [vmem:[%s246 + $0x4] sm:$0xff]
      %v768 = vld [vmem:[%s246 + $0xc] sm:$0xff]
      %v769 = vld [vmem:[%s246 + $0x14] sm:$0xf]
      %773 = vrot.lane.b32.xlu0 %v767, 45
      %v774 = vpop.permute.xlu0 %773
      %775 = vrot.lane.b32.xlu0 %v768, 45
      %v776 = vpop.permute.xlu0 %775
      %777 = vrot.lane.b32.xlu0 %v769, 45
      %v778 = vpop.permute.xlu0 %777
      %v779 = vrot.slane %v774, 4
      %v780 = vrot.slane %v776, 4
      %v781 = vrot.slane %v778, 4
      %v782 = vsel %vm277, %v779, %v780
      %vm783 = vcmask 367616
      %v784 = vsel %vm783, %v774, %v782
      %v785 = vsel %vm277, %v780, %v781
      %v786 = vsel %vm783, %v776, %v785
      %789 = vst [vmem:[#allocation3 + $0x160] sm:$0xff] %v784
      %790 = vst [vmem:[#allocation3 + $0x168] sm:$0xff] %v786
      %v791 = vld [vmem:[%s246 + $0x4] sm:$0xff]
      %v792 = vld [vmem:[%s246 + $0xc] sm:$0xff]
      %v793 = vld [vmem:[%s246 + $0x14] sm:$0xf]
      %797 = vrot.lane.b32.xlu0 %v791, 44
      %v798 = vpop.permute.xlu0 %797
      %799 = vrot.lane.b32.xlu0 %v792, 44
      %v800 = vpop.permute.xlu0 %799
      %801 = vrot.lane.b32.xlu0 %v793, 44
      %v802 = vpop.permute.xlu0 %801
      %v803 = vrot.slane %v798, 4
      %v804 = vrot.slane %v800, 4
      %v805 = vrot.slane %v802, 4
      %v806 = vsel %vm277, %v803, %v804
      %vm807 = vcmask 359424
      %v808 = vsel %vm807, %v798, %v806
      %v809 = vsel %vm277, %v804, %v805
      %v810 = vsel %vm807, %v800, %v809
      %813 = vst [vmem:[#allocation3 + $0x170] sm:$0xff] %v808
      %814 = vst [vmem:[#allocation3 + $0x178] sm:$0xff] %v810
      %v815 = vld [vmem:[%s246 + $0x4] sm:$0xff]
      %v816 = vld [vmem:[%s246 + $0xc] sm:$0xff]
      %v817 = vld [vmem:[%s246 + $0x14] sm:$0xf]
      %821 = vrot.lane.b32.xlu0 %v815, 36
      %v822 = vpop.permute.xlu0 %821
      %823 = vrot.lane.b32.xlu0 %v816, 36
      %v824 = vpop.permute.xlu0 %823
      %825 = vrot.lane.b32.xlu0 %v817, 36
      %v826 = vpop.permute.xlu0 %825
      %v827 = vrot.slane %v822, 4
      %v828 = vrot.slane %v824, 4
      %v829 = vrot.slane %v826, 4
      %v830 = vsel %vm277, %v827, %v828
      %vm831 = vcmask 293888
      %v832 = vsel %vm831, %v822, %v830
      %v833 = vsel %vm277, %v828, %v829
      %v834 = vsel %vm831, %v824, %v833
      %837 = vst [vmem:[#allocation3 + $0x180] sm:$0xff] %v832
      %838 = vst [vmem:[#allocation3 + $0x188] sm:$0xff] %v834
      %v839 = vld [vmem:[%s246 + $0x4] sm:$0xff]
      %v840 = vld [vmem:[%s246 + $0xc] sm:$0xff]
      %v841 = vld [vmem:[%s246 + $0x14] sm:$0xf]
      %845 = vrot.lane.b32.xlu0 %v839, 35
      %v846 = vpop.permute.xlu0 %845
      %847 = vrot.lane.b32.xlu0 %v840, 35
      %v848 = vpop.permute.xlu0 %847
      %849 = vrot.lane.b32.xlu0 %v841, 35
      %v850 = vpop.permute.xlu0 %849
      %v851 = vrot.slane %v846, 4
      %v852 = vrot.slane %v848, 4
      %v853 = vrot.slane %v850, 4
      %v854 = vsel %vm277, %v851, %v852
      %vm855 = vcmask 285696
      %v856 = vsel %vm855, %v846, %v854
      %v857 = vsel %vm277, %v852, %v853
      %v858 = vsel %vm855, %v848, %v857
      %861 = vst [vmem:[#allocation3 + $0x190] sm:$0xff] %v856
      %862 = vst [vmem:[#allocation3 + $0x198] sm:$0xff] %v858
      %v863 = vld [vmem:[%s246 + $0x4] sm:$0xff]
      %v864 = vld [vmem:[%s246 + $0xc] sm:$0xff]
      %v865 = vld [vmem:[%s246 + $0x14] sm:$0xf]
      %869 = vrot.lane.b32.xlu0 %v863, 34
      %v870 = vpop.permute.xlu0 %869
      %871 = vrot.lane.b32.xlu0 %v864, 34
      %v872 = vpop.permute.xlu0 %871
      %873 = vrot.lane.b32.xlu0 %v865, 34
      %v874 = vpop.permute.xlu0 %873
      %v875 = vrot.slane %v870, 4
      %v876 = vrot.slane %v872, 4
      %v877 = vrot.slane %v874, 4
      %v878 = vsel %vm277, %v875, %v876
      %vm879 = vcmask 277504
      %v880 = vsel %vm879, %v870, %v878
      %v881 = vsel %vm277, %v876, %v877
      %v882 = vsel %vm879, %v872, %v881
      %885 = vst [vmem:[#allocation3 + $0x1a0] sm:$0xff] %v880
      %886 = vst [vmem:[#allocation3 + $0x1a8] sm:$0xff] %v882
      %v887 = vld [vmem:[%s1] sm:$0xff]
      %v888 = vld [vmem:[#allocation3] sm:$0xff]
      %v889 = vld [vmem:[#allocation3 + $0x8] sm:$0xff]
      %v890 = vld [vmem:[#allocation3 + $0x10] sm:$0xff]
      %v891 = vld [vmem:[#allocation3 + $0x18] sm:$0xff]
      %v892 = vld [vmem:[#allocation3 + $0x20] sm:$0xff]
      %v893 = vld [vmem:[#allocation3 + $0x28] sm:$0xff]
      %v894 = vld [vmem:[#allocation3 + $0x30] sm:$0xff]
      %v895 = vld [vmem:[#allocation3 + $0x38] sm:$0xff]
      %v896 = vld [vmem:[#allocation3 + $0x40] sm:$0xff]
      %v897 = vld [vmem:[#allocation3 + $0x48] sm:$0xff]
      %v898 = vld [vmem:[#allocation3 + $0x50] sm:$0xff]
      %v899 = vld [vmem:[#allocation3 + $0x58] sm:$0xff]
      %v900 = vld [vmem:[#allocation3 + $0x60] sm:$0xff]
      %v901 = vld [vmem:[#allocation3 + $0x68] sm:$0xff]
      %v902 = vld [vmem:[#allocation3 + $0x70] sm:$0xff]
      %v903 = vld [vmem:[#allocation3 + $0x78] sm:$0xff]
      %v904 = vld [vmem:[#allocation3 + $0x80] sm:$0xff]
      %v905 = vld [vmem:[#allocation3 + $0x88] sm:$0xff]
      %v906 = vld [vmem:[#allocation3 + $0x90] sm:$0xff]
      %v907 = vld [vmem:[#allocation3 + $0x98] sm:$0xff]
      %v908 = vld [vmem:[#allocation3 + $0xa0] sm:$0xff]
      %v909 = vld [vmem:[#allocation3 + $0xa8] sm:$0xff]
      %v910 = vld [vmem:[#allocation3 + $0xb0] sm:$0xff]
      %v911 = vld [vmem:[#allocation3 + $0xb8] sm:$0xff]
      %v912 = vld [vmem:[#allocation3 + $0xc0] sm:$0xff]
      %v913 = vld [vmem:[#allocation3 + $0xc8] sm:$0xff]
      %v914 = vld [vmem:[#allocation3 + $0xd0] sm:$0xff]
      %v915 = vld [vmem:[#allocation3 + $0xd8] sm:$0xff]
      %v916 = vld [vmem:[#allocation3 + $0xe0] sm:$0xff]
      %v917 = vld [vmem:[#allocation3 + $0xe8] sm:$0xff]
      %v918 = vld [vmem:[#allocation3 + $0xf0] sm:$0xff]
      %v919 = vld [vmem:[#allocation3 + $0xf8] sm:$0xff]
      %v920 = vld [vmem:[#allocation3 + $0x100] sm:$0xff]
      %v921 = vld [vmem:[#allocation3 + $0x108] sm:$0xff]
      %v922 = vld [vmem:[#allocation3 + $0x110] sm:$0xff]
      %v923 = vld [vmem:[#allocation3 + $0x118] sm:$0xff]
      %v924 = vld [vmem:[#allocation3 + $0x120] sm:$0xff]
      %v925 = vld [vmem:[#allocation3 + $0x128] sm:$0xff]
      %v926 = vld [vmem:[#allocation3 + $0x130] sm:$0xff]
      %v927 = vld [vmem:[#allocation3 + $0x138] sm:$0xff]
      %v928 = vld [vmem:[#allocation3 + $0x140] sm:$0xff]
      %v929 = vld [vmem:[#allocation3 + $0x148] sm:$0xff]
      %v930 = vld [vmem:[#allocation3 + $0x150] sm:$0xff]
      %v931 = vld [vmem:[#allocation3 + $0x158] sm:$0xff]
      %v932 = vld [vmem:[#allocation3 + $0x160] sm:$0xff]
      %v933 = vld [vmem:[#allocation3 + $0x168] sm:$0xff]
      %v934 = vld [vmem:[#allocation3 + $0x170] sm:$0xff]
      %v935 = vld [vmem:[#allocation3 + $0x178] sm:$0xff]
      %v936 = vld [vmem:[#allocation3 + $0x180] sm:$0xff]
      %v937 = vld [vmem:[#allocation3 + $0x188] sm:$0xff]
      %v938 = vld [vmem:[#allocation3 + $0x190] sm:$0xff]
      %v939 = vld [vmem:[#allocation3 + $0x198] sm:$0xff]
      %v940 = vld [vmem:[#allocation3 + $0x1a0] sm:$0xff]
      %v941 = vld [vmem:[#allocation3 + $0x1a8] sm:$0xff]
      %v942 = vld [vmem:[%s2] sm:$0xff]
      %944 = vset.pattern.permute.xlu0 0
      %945 = vperm.xlu0 %944, %v942
      %v946 = vpop.permute.xlu0 %945
      %v949 = vunpack.c.l.b16 %v887
      %v950 = vunpack.c.h.b16 %v887
      %v951 = vpack.c.b16 %v949, %v949
      %v952 = vpack.c.b16 %v950, %v950
      %v1008 = vunpack.c.l.b16 %v888
      %v1009 = vunpack.c.h.b16 %v888
      %v1010 = vunpack.c.l.b16 %v889
      %v1011 = vunpack.c.h.b16 %v889
      %v1012 = vunpack.c.l.b16 %v890
      %v1013 = vunpack.c.h.b16 %v890
      %v1014 = vunpack.c.l.b16 %v891
      %v1015 = vunpack.c.h.b16 %v891
      %v1016 = vunpack.c.l.b16 %v892
      %v1017 = vunpack.c.h.b16 %v892
      %v1018 = vunpack.c.l.b16 %v893
      %v1019 = vunpack.c.h.b16 %v893
      %v1020 = vunpack.c.l.b16 %v894
      %v1021 = vunpack.c.h.b16 %v894
      %v1022 = vunpack.c.l.b16 %v895
      %v1023 = vunpack.c.h.b16 %v895
      %v1024 = vunpack.c.l.b16 %v896
      %v1025 = vunpack.c.h.b16 %v896
      %v1026 = vunpack.c.l.b16 %v897
      %v1027 = vunpack.c.h.b16 %v897
      %v1028 = vunpack.c.l.b16 %v898
      %v1029 = vunpack.c.h.b16 %v898
      %v1030 = vunpack.c.l.b16 %v899
      %v1031 = vunpack.c.h.b16 %v899
      %v1032 = vunpack.c.l.b16 %v900
      %v1033 = vunpack.c.h.b16 %v900
      %v1034 = vunpack.c.l.b16 %v901
      %v1035 = vunpack.c.h.b16 %v901
      %v1036 = vunpack.c.l.b16 %v902
      %v1037 = vunpack.c.h.b16 %v902
      %v1038 = vunpack.c.l.b16 %v903
      %v1039 = vunpack.c.h.b16 %v903
      %v1040 = vunpack.c.l.b16 %v904
      %v1041 = vunpack.c.h.b16 %v904
      %v1042 = vunpack.c.l.b16 %v905
      %v1043 = vunpack.c.h.b16 %v905
      %v1044 = vunpack.c.l.b16 %v906
      %v1045 = vunpack.c.h.b16 %v906
      %v1046 = vunpack.c.l.b16 %v907
      %v1047 = vunpack.c.h.b16 %v907
      %v1048 = vunpack.c.l.b16 %v908
      %v1049 = vunpack.c.h.b16 %v908
      %v1050 = vunpack.c.l.b16 %v909
      %v1051 = vunpack.c.h.b16 %v909
      %v1052 = vunpack.c.l.b16 %v910
      %v1053 = vunpack.c.h.b16 %v910
      %v1054 = vunpack.c.l.b16 %v911
      %v1055 = vunpack.c.h.b16 %v911
      %v1056 = vunpack.c.l.b16 %v912
      %v1057 = vunpack.c.h.b16 %v912
      %v1058 = vunpack.c.l.b16 %v913
      %v1059 = vunpack.c.h.b16 %v913
      %v1060 = vunpack.c.l.b16 %v914
      %v1061 = vunpack.c.h.b16 %v914
      %v1062 = vunpack.c.l.b16 %v915
      %v1063 = vunpack.c.h.b16 %v915
      %v1064 = vunpack.c.l.b16 %v916
      %v1065 = vunpack.c.h.b16 %v916
      %v1066 = vunpack.c.l.b16 %v917
      %v1067 = vunpack.c.h.b16 %v917
      %v1068 = vunpack.c.l.b16 %v918
      %v1069 = vunpack.c.h.b16 %v918
      %v1070 = vunpack.c.l.b16 %v919
      %v1071 = vunpack.c.h.b16 %v919
      %v1072 = vunpack.c.l.b16 %v920
      %v1073 = vunpack.c.h.b16 %v920
      %v1074 = vunpack.c.l.b16 %v921
      %v1075 = vunpack.c.h.b16 %v921
      %v1076 = vunpack.c.l.b16 %v922
      %v1077 = vunpack.c.h.b16 %v922
      %v1078 = vunpack.c.l.b16 %v923
      %v1079 = vunpack.c.h.b16 %v923
      %v1080 = vunpack.c.l.b16 %v924
      %v1081 = vunpack.c.h.b16 %v924
      %v1082 = vunpack.c.l.b16 %v925
      %v1083 = vunpack.c.h.b16 %v925
      %v1084 = vunpack.c.l.b16 %v926
      %v1085 = vunpack.c.h.b16 %v926
      %v1086 = vunpack.c.l.b16 %v927
      %v1087 = vunpack.c.h.b16 %v927
      %v1088 = vunpack.c.l.b16 %v928
      %v1089 = vunpack.c.h.b16 %v928
      %v1090 = vunpack.c.l.b16 %v929
      %v1091 = vunpack.c.h.b16 %v929
      %v1092 = vunpack.c.l.b16 %v930
      %v1093 = vunpack.c.h.b16 %v930
      %v1094 = vunpack.c.l.b16 %v931
      %v1095 = vunpack.c.h.b16 %v931
      %v1096 = vunpack.c.l.b16 %v932
      %v1097 = vunpack.c.h.b16 %v932
      %v1098 = vunpack.c.l.b16 %v933
      %v1099 = vunpack.c.h.b16 %v933
      %v1100 = vunpack.c.l.b16 %v934
      %v1101 = vunpack.c.h.b16 %v934
      %v1102 = vunpack.c.l.b16 %v935
      %v1103 = vunpack.c.h.b16 %v935
      %v1104 = vunpack.c.l.b16 %v936
      %v1105 = vunpack.c.h.b16 %v936
      %v1106 = vunpack.c.l.b16 %v937
      %v1107 = vunpack.c.h.b16 %v937
      %v1108 = vunpack.c.l.b16 %v938
      %v1109 = vunpack.c.h.b16 %v938
      %v1110 = vunpack.c.l.b16 %v939
      %v1111 = vunpack.c.h.b16 %v939
      %v1112 = vunpack.c.l.b16 %v940
      %v1113 = vunpack.c.h.b16 %v940
      %v1114 = vunpack.c.l.b16 %v941
      %v1115 = vunpack.c.h.b16 %v941
      %v1116 = vpack.c.b16 %v1012, %v1008
      %v1117 = vpack.c.b16 %v1013, %v1009
      %v1118 = vpack.c.b16 %v1014, %v1010
      %v1119 = vpack.c.b16 %v1015, %v1011
      %v1120 = vpack.c.b16 %v1020, %v1016
      %v1121 = vpack.c.b16 %v1021, %v1017
      %v1122 = vpack.c.b16 %v1022, %v1018
      %v1123 = vpack.c.b16 %v1023, %v1019
      %v1124 = vpack.c.b16 %v1028, %v1024
      %v1125 = vpack.c.b16 %v1029, %v1025
      %v1126 = vpack.c.b16 %v1030, %v1026
      %v1127 = vpack.c.b16 %v1031, %v1027
      %v1128 = vpack.c.b16 %v1036, %v1032
      %v1129 = vpack.c.b16 %v1037, %v1033
      %v1130 = vpack.c.b16 %v1038, %v1034
      %v1131 = vpack.c.b16 %v1039, %v1035
      %v1132 = vpack.c.b16 %v1044, %v1040
      %v1133 = vpack.c.b16 %v1045, %v1041
      %v1134 = vpack.c.b16 %v1046, %v1042
      %v1135 = vpack.c.b16 %v1047, %v1043
      %v1136 = vpack.c.b16 %v1052, %v1048
      %v1137 = vpack.c.b16 %v1053, %v1049
      %v1138 = vpack.c.b16 %v1054, %v1050
      %v1139 = vpack.c.b16 %v1055, %v1051
      %v1140 = vpack.c.b16 %v1060, %v1056
      %v1141 = vpack.c.b16 %v1061, %v1057
      %v1142 = vpack.c.b16 %v1062, %v1058
      %v1143 = vpack.c.b16 %v1063, %v1059
      %v1144 = vpack.c.b16 %v1068, %v1064
      %v1145 = vpack.c.b16 %v1069, %v1065
      %v1146 = vpack.c.b16 %v1070, %v1066
      %v1147 = vpack.c.b16 %v1071, %v1067
      %v1148 = vpack.c.b16 %v1076, %v1072
      %v1149 = vpack.c.b16 %v1077, %v1073
      %v1150 = vpack.c.b16 %v1078, %v1074
      %v1151 = vpack.c.b16 %v1079, %v1075
      %v1152 = vpack.c.b16 %v1084, %v1080
      %v1153 = vpack.c.b16 %v1085, %v1081
      %v1154 = vpack.c.b16 %v1086, %v1082
      %v1155 = vpack.c.b16 %v1087, %v1083
      %v1156 = vpack.c.b16 %v1092, %v1088
      %v1157 = vpack.c.b16 %v1093, %v1089
      %v1158 = vpack.c.b16 %v1094, %v1090
      %v1159 = vpack.c.b16 %v1095, %v1091
      %v1160 = vpack.c.b16 %v1100, %v1096
      %v1161 = vpack.c.b16 %v1101, %v1097
      %v1162 = vpack.c.b16 %v1102, %v1098
      %v1163 = vpack.c.b16 %v1103, %v1099
      %v1164 = vpack.c.b16 %v1108, %v1104
      %v1165 = vpack.c.b16 %v1109, %v1105
      %v1166 = vpack.c.b16 %v1110, %v1106
      %v1167 = vpack.c.b16 %v1111, %v1107
      %v1168 = vpack.c.b16 %v1112, %v1112
      %v1169 = vpack.c.b16 %v1113, %v1113
      %v1170 = vpack.c.b16 %v1114, %v1114
      %v1171 = vpack.c.b16 %v1115, %v1115
      %vm1224 = vcmask 719872
      %v1226 = vsel %vm1224, %v952, 0
      %vm1228 = vcmask 1043456
      %v1230 = vsel %vm1228, %v1168, 0
      %v1233 = vsel %vm1228, %v1169, 0
      %v1236 = vsel %vm1228, %v1170, 0
      %v1239 = vsel %vm1228, %v1171, 0
      %1241 = vmatprep.subr.bf16.mxu0 %v1145
      %1242 = vmatpush1.bf16.msra.mxu0 %v1144
      %1243 = vmatprep.subr.bf16.mxu0 %v1141
      %1244 = vmatpush1.bf16.msra.mxu0 %v1140
      %1245 = vmatprep.subr.bf16.mxu0 %v1137
      %1246 = vmatpush1.bf16.msra.mxu0 %v1136
      %1247 = vmatprep.subr.bf16.mxu0 %v1133
      %1248 = vmatpush1.bf16.msra.mxu0 %v1132
      %1249 = vmatprep.subr.bf16.mxu0 %v1129
      %1250 = vmatpush1.bf16.msra.mxu0 %v1128
      %1251 = vmatprep.subr.bf16.mxu0 %v1125
      %1252 = vmatpush1.bf16.msra.mxu0 %v1124
      %1253 = vmatprep.subr.bf16.mxu0 %v1121
      %1254 = vmatpush1.bf16.msra.mxu0 %v1120
      %1255 = vmatprep.subr.bf16.mxu0 %v1117
      %1256 = vmatpush1.bf16.msra.mxu0 %v1116
      %1257 = vmatprep.subr.bf16.mxu0 0
      %1258 = vmatpush2.bf16.msra.mxu0 0
      %1259 = vmatprep.subr.bf16.mxu0 0
      %1260 = vmatpush2.bf16.msra.mxu0 0
      %1261 = vmatprep.subr.bf16.mxu0 %v1233
      %1262 = vmatpush2.bf16.msra.mxu0 %v1230
      %1263 = vmatprep.subr.bf16.mxu0 %v1165
      %1264 = vmatpush2.bf16.msra.mxu0 %v1164
      %1265 = vmatprep.subr.bf16.mxu0 %v1161
      %1266 = vmatpush2.bf16.msra.mxu0 %v1160
      %1267 = vmatprep.subr.bf16.mxu0 %v1157
      %1268 = vmatpush2.bf16.msra.mxu0 %v1156
      %1269 = vmatprep.subr.bf16.mxu0 %v1153
      %1270 = vmatpush2.bf16.msra.mxu0 %v1152
      %1271 = vmatprep.subr.bf16.mxu0 %v1149
      %1272 = vmatpush2.bf16.msra.mxu0 %v1148
      %1273 = vmatprep.mubr.bf16.mxu0 %v1226
      %1274 = vmatmul.mubr.bf16.gmra.mxu0 %v951
      %v1275 = vpop.f32.mrf.mxu0
      %v1276 = vadd.f32 %v946, %v1275
      %v1277 = vpop.f32.mrf.mxu0
      %v1278 = vadd.f32 %v946, %v1277
      %v1279 = vpop.f32.mrf.mxu0
      %v1280 = vpop.f32.mrf.mxu0
      %1281 = vdwg.mxu0
      %1282 = vmatprep.subr.bf16.mxu0 %v1147
      %1283 = vmatpush1.bf16.msra.mxu0 %v1146
      %1284 = vmatprep.subr.bf16.mxu0 %v1143
      %1285 = vmatpush1.bf16.msra.mxu0 %v1142
      %1286 = vmatprep.subr.bf16.mxu0 %v1139
      %1287 = vmatpush1.bf16.msra.mxu0 %v1138
      %1288 = vmatprep.subr.bf16.mxu0 %v1135
      %1289 = vmatpush1.bf16.msra.mxu0 %v1134
      %1290 = vmatprep.subr.bf16.mxu0 %v1131
      %1291 = vmatpush1.bf16.msra.mxu0 %v1130
      %1292 = vmatprep.subr.bf16.mxu0 %v1127
      %1293 = vmatpush1.bf16.msra.mxu0 %v1126
      %1294 = vmatprep.subr.bf16.mxu0 %v1123
      %1295 = vmatpush1.bf16.msra.mxu0 %v1122
      %1296 = vmatprep.subr.bf16.mxu0 %v1119
      %1297 = vmatpush1.bf16.msra.mxu0 %v1118
      %1298 = vmatprep.subr.bf16.mxu0 0
      %1299 = vmatpush2.bf16.msra.mxu0 0
      %1300 = vmatprep.subr.bf16.mxu0 0
      %1301 = vmatpush2.bf16.msra.mxu0 0
      %1302 = vmatprep.subr.bf16.mxu0 %v1239
      %1303 = vmatpush2.bf16.msra.mxu0 %v1236
      %1304 = vmatprep.subr.bf16.mxu0 %v1167
      %1305 = vmatpush2.bf16.msra.mxu0 %v1166
      %1306 = vmatprep.subr.bf16.mxu0 %v1163
      %1307 = vmatpush2.bf16.msra.mxu0 %v1162
      %1308 = vmatprep.subr.bf16.mxu0 %v1159
      %1309 = vmatpush2.bf16.msra.mxu0 %v1158
      %1310 = vmatprep.subr.bf16.mxu0 %v1155
      %1311 = vmatpush2.bf16.msra.mxu0 %v1154
      %1312 = vmatprep.subr.bf16.mxu0 %v1151
      %1313 = vmatpush2.bf16.msra.mxu0 %v1150
      %1314 = vmatprep.mubr.bf16.mxu0 %v1226
      %1315 = vmatmul.mubr.bf16.gmra.mxu0 %v951
      %v1316 = vpop.f32.mrf.mxu0
      %v1317 = vadd.f32 %v946, %v1316
      %v1318 = vpop.f32.mrf.mxu0
      %v1319 = vadd.f32 %v946, %v1318
      %v1320 = vpop.f32.mrf.mxu0
      %v1321 = vpop.f32.mrf.mxu0
      %1322 = vdwg.mxu0
      %vm1323 = vcmp.ge.f32.partialorder %v1276, 0.0
      %vm1324 = vcmp.ge.f32.partialorder %v1278, 0.0
      %vm1325 = vcmp.ge.f32.partialorder %v1317, 0.0
      %vm1326 = vcmp.ge.f32.partialorder %v1319, 0.0
      %v1327 = vmul.f32 %v1276, 0.01
      %v1328 = vmul.f32 %v1278, 0.01
      %v1329 = vmul.f32 %v1317, 0.01
      %v1330 = vmul.f32 %v1319, 0.01
      %v1331 = vsel %vm1323, %v1276, %v1327
      %v1332 = vsel %vm1324, %v1278, %v1328
      %v1333 = vsel %vm1325, %v1317, %v1329
      %v1334 = vsel %vm1326, %v1319, %v1330
      %v1335 = vld [vmem:[%s5] sm:$0xf]
      %v1337 = vlaneseq
      %v1338 = vshrl.u32 %v1337, 7
      %v1339 = vsub.s32 0, %v1338
      %v1340 = vrot.slane %v1335, %v1339
      %v1341 = vlaneseq
      %v1342 = vshrl.u32 %v1341, 7
      %v1343 = vsub.s32 1, %v1342
      %v1344 = vrot.slane %v1335, %v1343
      %v1345 = vlaneseq
      %v1346 = vshrl.u32 %v1345, 7
      %v1347 = vsub.s32 2, %v1346
      %v1348 = vrot.slane %v1335, %v1347
      %v1349 = vlaneseq
      %v1350 = vshrl.u32 %v1349, 7
      %v1351 = vsub.s32 3, %v1350
      %v1352 = vrot.slane %v1335, %v1351
      %v1357 = vmul.f32 %v1331, %v1340
      %v1358 = vmul.f32 %v1332, %v1344
      %v1359 = vmul.f32 %v1333, %v1348
      %v1360 = vmul.f32 %v1334, %v1352
      %v1361 = vpack.c.bf16 %v1357, %v1357
      %v1362 = vpack.c.bf16 %v1358, %v1358
      %v1363 = vpack.c.bf16 %v1359, %v1359
      %v1364 = vpack.c.bf16 %v1360, %v1360
      %v1369 = vunpack.c.l.b16 %v1361
      %v1370 = vunpack.c.l.b16 %v1362
      %v1371 = vunpack.c.l.b16 %v1363
      %v1372 = vunpack.c.l.b16 %v1364
      %v1373 = vpack.c.b16 %v1370, %v1369
      %v1374 = vpack.c.b16 %v1372, %v1371
      %1377 = vst [vmem:[#allocation2 + $0x4] sm:$0xff] %v1373
      %1378 = vst [vmem:[#allocation2 + $0xc] sm:$0xff] %v1374
      %v1379 = vld [vmem:[%s246 + $0x10] sm:$0xff]
      %v1380 = vld [vmem:[%s246 + $0x18] sm:$0xff]
      %1381 = vst [vmem:[#allocation3] sm:$0xff] %v1379
      %1382 = vst [vmem:[#allocation3 + $0x8] sm:$0xff] %v1380
      %v1383 = vld [vmem:[%s246 + $0x10] sm:$0xff]
      %v1384 = vld [vmem:[%s246 + $0x18] sm:$0xff]
      %v1385 = vld [vmem:[%s246 + $0x20] sm:$0xf]
      %1389 = vrot.lane.b32.xlu0 %v1383, 127
      %v1390 = vpop.permute.xlu0 %1389
      %1391 = vrot.lane.b32.xlu0 %v1384, 127
      %v1392 = vpop.permute.xlu0 %1391
      %1393 = vrot.lane.b32.xlu0 %v1385, 127
      %v1394 = vpop.permute.xlu0 %1393
      %v1395 = vrot.slane %v1390, 4
      %v1396 = vrot.slane %v1392, 4
      %v1397 = vrot.slane %v1394, 4
      %v1398 = vsel %vm277, %v1395, %v1396
      %v1399 = vsel %vm279, %v1390, %v1398
      %v1400 = vsel %vm277, %v1396, %v1397
      %v1401 = vsel %vm279, %v1392, %v1400
      %1404 = vst [vmem:[#allocation3 + $0x10] sm:$0xff] %v1399
      %1405 = vst [vmem:[#allocation3 + $0x18] sm:$0xff] %v1401
      %v1406 = vld [vmem:[%s246 + $0x10] sm:$0xff]
      %v1407 = vld [vmem:[%s246 + $0x18] sm:$0xff]
      %v1408 = vld [vmem:[%s246 + $0x20] sm:$0xf]
      %1412 = vrot.lane.b32.xlu0 %v1406, 126
      %v1413 = vpop.permute.xlu0 %1412
      %1414 = vrot.lane.b32.xlu0 %v1407, 126
      %v1415 = vpop.permute.xlu0 %1414
      %1416 = vrot.lane.b32.xlu0 %v1408, 126
      %v1417 = vpop.permute.xlu0 %1416
      %v1418 = vrot.slane %v1413, 4
      %v1419 = vrot.slane %v1415, 4
      %v1420 = vrot.slane %v1417, 4
      %v1421 = vsel %vm277, %v1418, %v1419
      %v1422 = vsel %vm303, %v1413, %v1421
      %v1423 = vsel %vm277, %v1419, %v1420
      %v1424 = vsel %vm303, %v1415, %v1423
      %1427 = vst [vmem:[#allocation3 + $0x20] sm:$0xff] %v1422
      %1428 = vst [vmem:[#allocation3 + $0x28] sm:$0xff] %v1424
      %v1429 = vld [vmem:[%s246 + $0x10] sm:$0xff]
      %v1430 = vld [vmem:[%s246 + $0x18] sm:$0xff]
      %v1431 = vld [vmem:[%s246 + $0x20] sm:$0xf]
      %1435 = vrot.lane.b32.xlu0 %v1429, 118
      %v1436 = vpop.permute.xlu0 %1435
      %1437 = vrot.lane.b32.xlu0 %v1430, 118
      %v1438 = vpop.permute.xlu0 %1437
      %1439 = vrot.lane.b32.xlu0 %v1431, 118
      %v1440 = vpop.permute.xlu0 %1439
      %v1441 = vrot.slane %v1436, 4
      %v1442 = vrot.slane %v1438, 4
      %v1443 = vrot.slane %v1440, 4
      %v1444 = vsel %vm277, %v1441, %v1442
      %v1445 = vsel %vm327, %v1436, %v1444
      %v1446 = vsel %vm277, %v1442, %v1443
      %v1447 = vsel %vm327, %v1438, %v1446
      %1450 = vst [vmem:[#allocation3 + $0x30] sm:$0xff] %v1445
      %1451 = vst [vmem:[#allocation3 + $0x38] sm:$0xff] %v1447
      %v1452 = vld [vmem:[%s246 + $0x10] sm:$0xff]
      %v1453 = vld [vmem:[%s246 + $0x18] sm:$0xff]
      %v1454 = vld [vmem:[%s246 + $0x20] sm:$0xf]
      %1458 = vrot.lane.b32.xlu0 %v1452, 117
      %v1459 = vpop.permute.xlu0 %1458
      %1460 = vrot.lane.b32.xlu0 %v1453, 117
      %v1461 = vpop.permute.xlu0 %1460
      %1462 = vrot.lane.b32.xlu0 %v1454, 117
      %v1463 = vpop.permute.xlu0 %1462
      %v1464 = vrot.slane %v1459, 4
      %v1465 = vrot.slane %v1461, 4
      %v1466 = vrot.slane %v1463, 4
      %v1467 = vsel %vm277, %v1464, %v1465
      %v1468 = vsel %vm351, %v1459, %v1467
      %v1469 = vsel %vm277, %v1465, %v1466
      %v1470 = vsel %vm351, %v1461, %v1469
      %1473 = vst [vmem:[#allocation3 + $0x40] sm:$0xff] %v1468
      %1474 = vst [vmem:[#allocation3 + $0x48] sm:$0xff] %v1470
      %v1475 = vld [vmem:[%s246 + $0x10] sm:$0xff]
      %v1476 = vld [vmem:[%s246 + $0x18] sm:$0xff]
      %v1477 = vld [vmem:[%s246 + $0x20] sm:$0xf]
      %1481 = vrot.lane.b32.xlu0 %v1475, 116
      %v1482 = vpop.permute.xlu0 %1481
      %1483 = vrot.lane.b32.xlu0 %v1476, 116
      %v1484 = vpop.permute.xlu0 %1483
      %1485 = vrot.lane.b32.xlu0 %v1477, 116
      %v1486 = vpop.permute.xlu0 %1485
      %v1487 = vrot.slane %v1482, 4
      %v1488 = vrot.slane %v1484, 4
      %v1489 = vrot.slane %v1486, 4
      %v1490 = vsel %vm277, %v1487, %v1488
      %v1491 = vsel %vm375, %v1482, %v1490
      %v1492 = vsel %vm277, %v1488, %v1489
      %v1493 = vsel %vm375, %v1484, %v1492
      %1496 = vst [vmem:[#allocation3 + $0x50] sm:$0xff] %v1491
      %1497 = vst [vmem:[#allocation3 + $0x58] sm:$0xff] %v1493
      %v1498 = vld [vmem:[%s246 + $0x10] sm:$0xff]
      %v1499 = vld [vmem:[%s246 + $0x18] sm:$0xff]
      %v1500 = vld [vmem:[%s246 + $0x20] sm:$0xf]
      %1504 = vrot.lane.b32.xlu0 %v1498, 108
      %v1505 = vpop.permute.xlu0 %1504
      %1506 = vrot.lane.b32.xlu0 %v1499, 108
      %v1507 = vpop.permute.xlu0 %1506
      %1508 = vrot.lane.b32.xlu0 %v1500, 108
      %v1509 = vpop.permute.xlu0 %1508
      %v1510 = vrot.slane %v1505, 4
      %v1511 = vrot.slane %v1507, 4
      %v1512 = vrot.slane %v1509, 4
      %v1513 = vsel %vm277, %v1510, %v1511
      %v1514 = vsel %vm399, %v1505, %v1513
      %v1515 = vsel %vm277, %v1511, %v1512
      %v1516 = vsel %vm399, %v1507, %v1515
      %1519 = vst [vmem:[#allocation3 + $0x60] sm:$0xff] %v1514
      %1520 = vst [vmem:[#allocation3 + $0x68] sm:$0xff] %v1516
      %v1521 = vld [vmem:[%s246 + $0x10] sm:$0xff]
      %v1522 = vld [vmem:[%s246 + $0x18] sm:$0xff]
      %v1523 = vld [vmem:[%s246 + $0x20] sm:$0xf]
      %1527 = vrot.lane.b32.xlu0 %v1521, 107
      %v1528 = vpop.permute.xlu0 %1527
      %1529 = vrot.lane.b32.xlu0 %v1522, 107
      %v1530 = vpop.permute.xlu0 %1529
      %1531 = vrot.lane.b32.xlu0 %v1523, 107
      %v1532 = vpop.permute.xlu0 %1531
      %v1533 = vrot.slane %v1528, 4
      %v1534 = vrot.slane %v1530, 4
      %v1535 = vrot.slane %v1532, 4
      %v1536 = vsel %vm277, %v1533, %v1534
      %v1537 = vsel %vm423, %v1528, %v1536
      %v1538 = vsel %vm277, %v1534, %v1535
      %v1539 = vsel %vm423, %v1530, %v1538
      %1542 = vst [vmem:[#allocation3 + $0x70] sm:$0xff] %v1537
      %1543 = vst [vmem:[#allocation3 + $0x78] sm:$0xff] %v1539
      %v1544 = vld [vmem:[%s246 + $0x10] sm:$0xff]
      %v1545 = vld [vmem:[%s246 + $0x18] sm:$0xff]
      %v1546 = vld [vmem:[%s246 + $0x20] sm:$0xf]
      %1550 = vrot.lane.b32.xlu0 %v1544, 106
      %v1551 = vpop.permute.xlu0 %1550
      %1552 = vrot.lane.b32.xlu0 %v1545, 106
      %v1553 = vpop.permute.xlu0 %1552
      %1554 = vrot.lane.b32.xlu0 %v1546, 106
      %v1555 = vpop.permute.xlu0 %1554
      %v1556 = vrot.slane %v1551, 4
      %v1557 = vrot.slane %v1553, 4
      %v1558 = vrot.slane %v1555, 4
      %v1559 = vsel %vm277, %v1556, %v1557
      %v1560 = vsel %vm447, %v1551, %v1559
      %v1561 = vsel %vm277, %v1557, %v1558
      %v1562 = vsel %vm447, %v1553, %v1561
      %1565 = vst [vmem:[#allocation3 + $0x80] sm:$0xff] %v1560
      %1566 = vst [vmem:[#allocation3 + $0x88] sm:$0xff] %v1562
      %v1567 = vld [vmem:[%s246 + $0x10] sm:$0xff]
      %v1568 = vld [vmem:[%s246 + $0x18] sm:$0xff]
      %v1569 = vld [vmem:[%s246 + $0x20] sm:$0xf]
      %1573 = vrot.lane.b32.xlu0 %v1567, 28
      %v1574 = vpop.permute.xlu0 %1573
      %1575 = vrot.lane.b32.xlu0 %v1568, 28
      %v1576 = vpop.permute.xlu0 %1575
      %1577 = vrot.lane.b32.xlu0 %v1569, 28
      %v1578 = vpop.permute.xlu0 %1577
      %v1579 = vrot.slane %v1574, 4
      %v1580 = vrot.slane %v1576, 4
      %v1581 = vrot.slane %v1578, 4
      %v1582 = vsel %vm277, %v1579, %v1580
      %v1583 = vsel %vm471, %v1574, %v1582
      %v1584 = vsel %vm277, %v1580, %v1581
      %v1585 = vsel %vm471, %v1576, %v1584
      %1588 = vst [vmem:[#allocation3 + $0x90] sm:$0xff] %v1583
      %1589 = vst [vmem:[#allocation3 + $0x98] sm:$0xff] %v1585
      %v1590 = vld [vmem:[%s246 + $0x10] sm:$0xff]
      %v1591 = vld [vmem:[%s246 + $0x18] sm:$0xff]
      %v1592 = vld [vmem:[%s246 + $0x20] sm:$0xf]
      %1596 = vrot.lane.b32.xlu0 %v1590, 27
      %v1597 = vpop.permute.xlu0 %1596
      %1598 = vrot.lane.b32.xlu0 %v1591, 27
      %v1599 = vpop.permute.xlu0 %1598
      %1600 = vrot.lane.b32.xlu0 %v1592, 27
      %v1601 = vpop.permute.xlu0 %1600
      %v1602 = vrot.slane %v1597, 4
      %v1603 = vrot.slane %v1599, 4
      %v1604 = vrot.slane %v1601, 4
      %v1605 = vsel %vm277, %v1602, %v1603
      %v1606 = vsel %vm495, %v1597, %v1605
      %v1607 = vsel %vm277, %v1603, %v1604
      %v1608 = vsel %vm495, %v1599, %v1607
      %1611 = vst [vmem:[#allocation3 + $0xa0] sm:$0xff] %v1606
      %1612 = vst [vmem:[#allocation3 + $0xa8] sm:$0xff] %v1608
      %v1613 = vld [vmem:[%s246 + $0x10] sm:$0xff]
      %v1614 = vld [vmem:[%s246 + $0x18] sm:$0xff]
      %v1615 = vld [vmem:[%s246 + $0x20] sm:$0xf]
      %1619 = vrot.lane.b32.xlu0 %v1613, 26
      %v1620 = vpop.permute.xlu0 %1619
      %1621 = vrot.lane.b32.xlu0 %v1614, 26
      %v1622 = vpop.permute.xlu0 %1621
      %1623 = vrot.lane.b32.xlu0 %v1615, 26
      %v1624 = vpop.permute.xlu0 %1623
      %v1625 = vrot.slane %v1620, 4
      %v1626 = vrot.slane %v1622, 4
      %v1627 = vrot.slane %v1624, 4
      %v1628 = vsel %vm277, %v1625, %v1626
      %v1629 = vsel %vm519, %v1620, %v1628
      %v1630 = vsel %vm277, %v1626, %v1627
      %v1631 = vsel %vm519, %v1622, %v1630
      %1634 = vst [vmem:[#allocation3 + $0xb0] sm:$0xff] %v1629
      %1635 = vst [vmem:[#allocation3 + $0xb8] sm:$0xff] %v1631
      %v1636 = vld [vmem:[%s246 + $0x10] sm:$0xff]
      %v1637 = vld [vmem:[%s246 + $0x18] sm:$0xff]
      %v1638 = vld [vmem:[%s246 + $0x20] sm:$0xf]
      %1642 = vrot.lane.b32.xlu0 %v1636, 18
      %v1643 = vpop.permute.xlu0 %1642
      %1644 = vrot.lane.b32.xlu0 %v1637, 18
      %v1645 = vpop.permute.xlu0 %1644
      %1646 = vrot.lane.b32.xlu0 %v1638, 18
      %v1647 = vpop.permute.xlu0 %1646
      %v1648 = vrot.slane %v1643, 4
      %v1649 = vrot.slane %v1645, 4
      %v1650 = vrot.slane %v1647, 4
      %v1651 = vsel %vm277, %v1648, %v1649
      %v1652 = vsel %vm543, %v1643, %v1651
      %v1653 = vsel %vm277, %v1649, %v1650
      %v1654 = vsel %vm543, %v1645, %v1653
      %1657 = vst [vmem:[#allocation3 + $0xc0] sm:$0xff] %v1652
      %1658 = vst [vmem:[#allocation3 + $0xc8] sm:$0xff] %v1654
      %v1659 = vld [vmem:[%s246 + $0x10] sm:$0xff]
      %v1660 = vld [vmem:[%s246 + $0x18] sm:$0xff]
      %v1661 = vld [vmem:[%s246 + $0x20] sm:$0xf]
      %1665 = vrot.lane.b32.xlu0 %v1659, 17
      %v1666 = vpop.permute.xlu0 %1665
      %1667 = vrot.lane.b32.xlu0 %v1660, 17
      %v1668 = vpop.permute.xlu0 %1667
      %1669 = vrot.lane.b32.xlu0 %v1661, 17
      %v1670 = vpop.permute.xlu0 %1669
      %v1671 = vrot.slane %v1666, 4
      %v1672 = vrot.slane %v1668, 4
      %v1673 = vrot.slane %v1670, 4
      %v1674 = vsel %vm277, %v1671, %v1672
      %v1675 = vsel %vm567, %v1666, %v1674
      %v1676 = vsel %vm277, %v1672, %v1673
      %v1677 = vsel %vm567, %v1668, %v1676
      %1680 = vst [vmem:[#allocation3 + $0xd0] sm:$0xff] %v1675
      %1681 = vst [vmem:[#allocation3 + $0xd8] sm:$0xff] %v1677
      %v1682 = vld [vmem:[%s246 + $0x10] sm:$0xff]
      %v1683 = vld [vmem:[%s246 + $0x18] sm:$0xff]
      %v1684 = vld [vmem:[%s246 + $0x20] sm:$0xf]
      %1688 = vrot.lane.b32.xlu0 %v1682, 16
      %v1689 = vpop.permute.xlu0 %1688
      %1690 = vrot.lane.b32.xlu0 %v1683, 16
      %v1691 = vpop.permute.xlu0 %1690
      %1692 = vrot.lane.b32.xlu0 %v1684, 16
      %v1693 = vpop.permute.xlu0 %1692
      %v1694 = vrot.slane %v1689, 4
      %v1695 = vrot.slane %v1691, 4
      %v1696 = vrot.slane %v1693, 4
      %v1697 = vsel %vm277, %v1694, %v1695
      %v1698 = vsel %vm591, %v1689, %v1697
      %v1699 = vsel %vm277, %v1695, %v1696
      %v1700 = vsel %vm591, %v1691, %v1699
      %1703 = vst [vmem:[#allocation3 + $0xe0] sm:$0xff] %v1698
      %1704 = vst [vmem:[#allocation3 + $0xe8] sm:$0xff] %v1700
      %v1705 = vld [vmem:[%s246 + $0x10] sm:$0xff]
      %v1706 = vld [vmem:[%s246 + $0x18] sm:$0xff]
      %v1707 = vld [vmem:[%s246 + $0x20] sm:$0xf]
      %1711 = vrot.lane.b32.xlu0 %v1705, 8
      %v1712 = vpop.permute.xlu0 %1711
      %1713 = vrot.lane.b32.xlu0 %v1706, 8
      %v1714 = vpop.permute.xlu0 %1713
      %1715 = vrot.lane.b32.xlu0 %v1707, 8
      %v1716 = vpop.permute.xlu0 %1715
      %v1717 = vrot.slane %v1712, 4
      %v1718 = vrot.slane %v1714, 4
      %v1719 = vrot.slane %v1716, 4
      %v1720 = vsel %vm277, %v1717, %v1718
      %v1721 = vsel %vm615, %v1712, %v1720
      %v1722 = vsel %vm277, %v1718, %v1719
      %v1723 = vsel %vm615, %v1714, %v1722
      %1726 = vst [vmem:[#allocation3 + $0xf0] sm:$0xff] %v1721
      %1727 = vst [vmem:[#allocation3 + $0xf8] sm:$0xff] %v1723
      %v1728 = vld [vmem:[%s246 + $0x10] sm:$0xff]
      %v1729 = vld [vmem:[%s246 + $0x18] sm:$0xff]
      %v1730 = vld [vmem:[%s246 + $0x20] sm:$0xf]
      %1734 = vrot.lane.b32.xlu0 %v1728, 7
      %v1735 = vpop.permute.xlu0 %1734
      %1736 = vrot.lane.b32.xlu0 %v1729, 7
      %v1737 = vpop.permute.xlu0 %1736
      %1738 = vrot.lane.b32.xlu0 %v1730, 7
      %v1739 = vpop.permute.xlu0 %1738
      %v1740 = vrot.slane %v1735, 4
      %v1741 = vrot.slane %v1737, 4
      %v1742 = vrot.slane %v1739, 4
      %v1743 = vsel %vm277, %v1740, %v1741
      %v1744 = vsel %vm639, %v1735, %v1743
      %v1745 = vsel %vm277, %v1741, %v1742
      %v1746 = vsel %vm639, %v1737, %v1745
      %1749 = vst [vmem:[#allocation3 + $0x100] sm:$0xff] %v1744
      %1750 = vst [vmem:[#allocation3 + $0x108] sm:$0xff] %v1746
      %v1751 = vld [vmem:[%s246 + $0x10] sm:$0xff]
      %v1752 = vld [vmem:[%s246 + $0x18] sm:$0xff]
      %v1753 = vld [vmem:[%s246 + $0x20] sm:$0xf]
      %1757 = vrot.lane.b32.xlu0 %v1751, 6
      %v1758 = vpop.permute.xlu0 %1757
      %1759 = vrot.lane.b32.xlu0 %v1752, 6
      %v1760 = vpop.permute.xlu0 %1759
      %1761 = vrot.lane.b32.xlu0 %v1753, 6
      %v1762 = vpop.permute.xlu0 %1761
      %v1763 = vrot.slane %v1758, 4
      %v1764 = vrot.slane %v1760, 4
      %v1765 = vrot.slane %v1762, 4
      %v1766 = vsel %vm277, %v1763, %v1764
      %v1767 = vsel %vm663, %v1758, %v1766
      %v1768 = vsel %vm277, %v1764, %v1765
      %v1769 = vsel %vm663, %v1760, %v1768
      %1772 = vst [vmem:[#allocation3 + $0x110] sm:$0xff] %v1767
      %1773 = vst [vmem:[#allocation3 + $0x118] sm:$0xff] %v1769
      %v1774 = vld [vmem:[%s246 + $0x14] sm:$0xff]
      %v1775 = vld [vmem:[%s246 + $0x1c] sm:$0xff]
      %v1776 = vld [vmem:[%s246 + $0x24] sm:$0xf]
      %1780 = vrot.lane.b32.xlu0 %v1774, 56
      %v1781 = vpop.permute.xlu0 %1780
      %1782 = vrot.lane.b32.xlu0 %v1775, 56
      %v1783 = vpop.permute.xlu0 %1782
      %1784 = vrot.lane.b32.xlu0 %v1776, 56
      %v1785 = vpop.permute.xlu0 %1784
      %v1786 = vrot.slane %v1781, 4
      %v1787 = vrot.slane %v1783, 4
      %v1788 = vrot.slane %v1785, 4
      %v1789 = vsel %vm277, %v1786, %v1787
      %v1790 = vsel %vm687, %v1781, %v1789
      %v1791 = vsel %vm277, %v1787, %v1788
      %v1792 = vsel %vm687, %v1783, %v1791
      %1795 = vst [vmem:[#allocation3 + $0x120] sm:$0xff] %v1790
      %1796 = vst [vmem:[#allocation3 + $0x128] sm:$0xff] %v1792
      %v1797 = vld [vmem:[%s246 + $0x14] sm:$0xff]
      %v1798 = vld [vmem:[%s246 + $0x1c] sm:$0xff]
      %v1799 = vld [vmem:[%s246 + $0x24] sm:$0xf]
      %1803 = vrot.lane.b32.xlu0 %v1797, 55
      %v1804 = vpop.permute.xlu0 %1803
      %1805 = vrot.lane.b32.xlu0 %v1798, 55
      %v1806 = vpop.permute.xlu0 %1805
      %1807 = vrot.lane.b32.xlu0 %v1799, 55
      %v1808 = vpop.permute.xlu0 %1807
      %v1809 = vrot.slane %v1804, 4
      %v1810 = vrot.slane %v1806, 4
      %v1811 = vrot.slane %v1808, 4
      %v1812 = vsel %vm277, %v1809, %v1810
      %v1813 = vsel %vm711, %v1804, %v1812
      %v1814 = vsel %vm277, %v1810, %v1811
      %v1815 = vsel %vm711, %v1806, %v1814
      %1818 = vst [vmem:[#allocation3 + $0x130] sm:$0xff] %v1813
      %1819 = vst [vmem:[#allocation3 + $0x138] sm:$0xff] %v1815
      %v1820 = vld [vmem:[%s246 + $0x14] sm:$0xff]
      %v1821 = vld [vmem:[%s246 + $0x1c] sm:$0xff]
      %v1822 = vld [vmem:[%s246 + $0x24] sm:$0xf]
      %1826 = vrot.lane.b32.xlu0 %v1820, 54
      %v1827 = vpop.permute.xlu0 %1826
      %1828 = vrot.lane.b32.xlu0 %v1821, 54
      %v1829 = vpop.permute.xlu0 %1828
      %1830 = vrot.lane.b32.xlu0 %v1822, 54
      %v1831 = vpop.permute.xlu0 %1830
      %v1832 = vrot.slane %v1827, 4
      %v1833 = vrot.slane %v1829, 4
      %v1834 = vrot.slane %v1831, 4
      %v1835 = vsel %vm277, %v1832, %v1833
      %v1836 = vsel %vm735, %v1827, %v1835
      %v1837 = vsel %vm277, %v1833, %v1834
      %v1838 = vsel %vm735, %v1829, %v1837
      %1841 = vst [vmem:[#allocation3 + $0x140] sm:$0xff] %v1836
      %1842 = vst [vmem:[#allocation3 + $0x148] sm:$0xff] %v1838
      %v1843 = vld [vmem:[%s246 + $0x14] sm:$0xff]
      %v1844 = vld [vmem:[%s246 + $0x1c] sm:$0xff]
      %v1845 = vld [vmem:[%s246 + $0x24] sm:$0xf]
      %1849 = vrot.lane.b32.xlu0 %v1843, 46
      %v1850 = vpop.permute.xlu0 %1849
      %1851 = vrot.lane.b32.xlu0 %v1844, 46
      %v1852 = vpop.permute.xlu0 %1851
      %1853 = vrot.lane.b32.xlu0 %v1845, 46
      %v1854 = vpop.permute.xlu0 %1853
      %v1855 = vrot.slane %v1850, 4
      %v1856 = vrot.slane %v1852, 4
      %v1857 = vrot.slane %v1854, 4
      %v1858 = vsel %vm277, %v1855, %v1856
      %v1859 = vsel %vm759, %v1850, %v1858
      %v1860 = vsel %vm277, %v1856, %v1857
      %v1861 = vsel %vm759, %v1852, %v1860
      %1864 = vst [vmem:[#allocation3 + $0x150] sm:$0xff] %v1859
      %1865 = vst [vmem:[#allocation3 + $0x158] sm:$0xff] %v1861
      %v1866 = vld [vmem:[%s246 + $0x14] sm:$0xff]
      %v1867 = vld [vmem:[%s246 + $0x1c] sm:$0xff]
      %v1868 = vld [vmem:[%s246 + $0x24] sm:$0xf]
      %1872 = vrot.lane.b32.xlu0 %v1866, 45
      %v1873 = vpop.permute.xlu0 %1872
      %1874 = vrot.lane.b32.xlu0 %v1867, 45
      %v1875 = vpop.permute.xlu0 %1874
      %1876 = vrot.lane.b32.xlu0 %v1868, 45
      %v1877 = vpop.permute.xlu0 %1876
      %v1878 = vrot.slane %v1873, 4
      %v1879 = vrot.slane %v1875, 4
      %v1880 = vrot.slane %v1877, 4
      %v1881 = vsel %vm277, %v1878, %v1879
      %v1882 = vsel %vm783, %v1873, %v1881
      %v1883 = vsel %vm277, %v1879, %v1880
      %v1884 = vsel %vm783, %v1875, %v1883
      %1887 = vst [vmem:[#allocation3 + $0x160] sm:$0xff] %v1882
      %1888 = vst [vmem:[#allocation3 + $0x168] sm:$0xff] %v1884
      %v1889 = vld [vmem:[%s246 + $0x14] sm:$0xff]
      %v1890 = vld [vmem:[%s246 + $0x1c] sm:$0xff]
      %v1891 = vld [vmem:[%s246 + $0x24] sm:$0xf]
      %1895 = vrot.lane.b32.xlu0 %v1889, 44
      %v1896 = vpop.permute.xlu0 %1895
      %1897 = vrot.lane.b32.xlu0 %v1890, 44
      %v1898 = vpop.permute.xlu0 %1897
      %1899 = vrot.lane.b32.xlu0 %v1891, 44
      %v1900 = vpop.permute.xlu0 %1899
      %v1901 = vrot.slane %v1896, 4
      %v1902 = vrot.slane %v1898, 4
      %v1903 = vrot.slane %v1900, 4
      %v1904 = vsel %vm277, %v1901, %v1902
      %v1905 = vsel %vm807, %v1896, %v1904
      %v1906 = vsel %vm277, %v1902, %v1903
      %v1907 = vsel %vm807, %v1898, %v1906
      %1910 = vst [vmem:[#allocation3 + $0x170] sm:$0xff] %v1905
      %1911 = vst [vmem:[#allocation3 + $0x178] sm:$0xff] %v1907
      %v1912 = vld [vmem:[%s246 + $0x14] sm:$0xff]
      %v1913 = vld [vmem:[%s246 + $0x1c] sm:$0xff]
      %v1914 = vld [vmem:[%s246 + $0x24] sm:$0xf]
      %1918 = vrot.lane.b32.xlu0 %v1912, 36
      %v1919 = vpop.permute.xlu0 %1918
      %1920 = vrot.lane.b32.xlu0 %v1913, 36
      %v1921 = vpop.permute.xlu0 %1920
      %1922 = vrot.lane.b32.xlu0 %v1914, 36
      %v1923 = vpop.permute.xlu0 %1922
      %v1924 = vrot.slane %v1919, 4
      %v1925 = vrot.slane %v1921, 4
      %v1926 = vrot.slane %v1923, 4
      %v1927 = vsel %vm277, %v1924, %v1925
      %v1928 = vsel %vm831, %v1919, %v1927
      %v1929 = vsel %vm277, %v1925, %v1926
      %v1930 = vsel %vm831, %v1921, %v1929
      %1933 = vst [vmem:[#allocation3 + $0x180] sm:$0xff] %v1928
      %1934 = vst [vmem:[#allocation3 + $0x188] sm:$0xff] %v1930
      %v1935 = vld [vmem:[%s246 + $0x14] sm:$0xff]
      %v1936 = vld [vmem:[%s246 + $0x1c] sm:$0xff]
      %v1937 = vld [vmem:[%s246 + $0x24] sm:$0xf]
      %1941 = vrot.lane.b32.xlu0 %v1935, 35
      %v1942 = vpop.permute.xlu0 %1941
      %1943 = vrot.lane.b32.xlu0 %v1936, 35
      %v1944 = vpop.permute.xlu0 %1943
      %1945 = vrot.lane.b32.xlu0 %v1937, 35
      %v1946 = vpop.permute.xlu0 %1945
      %v1947 = vrot.slane %v1942, 4
      %v1948 = vrot.slane %v1944, 4
      %v1949 = vrot.slane %v1946, 4
      %v1950 = vsel %vm277, %v1947, %v1948
      %v1951 = vsel %vm855, %v1942, %v1950
      %v1952 = vsel %vm277, %v1948, %v1949
      %v1953 = vsel %vm855, %v1944, %v1952
      %1956 = vst [vmem:[#allocation3 + $0x190] sm:$0xff] %v1951
      %1957 = vst [vmem:[#allocation3 + $0x198] sm:$0xff] %v1953
      %v1958 = vld [vmem:[%s246 + $0x14] sm:$0xff]
      %v1959 = vld [vmem:[%s246 + $0x1c] sm:$0xff]
      %v1960 = vld [vmem:[%s246 + $0x24] sm:$0xf]
      %1964 = vrot.lane.b32.xlu0 %v1958, 34
      %v1965 = vpop.permute.xlu0 %1964
      %1966 = vrot.lane.b32.xlu0 %v1959, 34
      %v1967 = vpop.permute.xlu0 %1966
      %1968 = vrot.lane.b32.xlu0 %v1960, 34
      %v1969 = vpop.permute.xlu0 %1968
      %v1970 = vrot.slane %v1965, 4
      %v1971 = vrot.slane %v1967, 4
      %v1972 = vrot.slane %v1969, 4
      %v1973 = vsel %vm277, %v1970, %v1971
      %v1974 = vsel %vm879, %v1965, %v1973
      %v1975 = vsel %vm277, %v1971, %v1972
      %v1976 = vsel %vm879, %v1967, %v1975
      %1979 = vst [vmem:[#allocation3 + $0x1a0] sm:$0xff] %v1974
      %1980 = vst [vmem:[#allocation3 + $0x1a8] sm:$0xff] %v1976
      %v1981 = vld [vmem:[%s1] sm:$0xff]
      %v1982 = vld [vmem:[#allocation3] sm:$0xff]
      %v1983 = vld [vmem:[#allocation3 + $0x8] sm:$0xff]
      %v1984 = vld [vmem:[#allocation3 + $0x10] sm:$0xff]
      %v1985 = vld [vmem:[#allocation3 + $0x18] sm:$0xff]
      %v1986 = vld [vmem:[#allocation3 + $0x20] sm:$0xff]
      %v1987 = vld [vmem:[#allocation3 + $0x28] sm:$0xff]
      %v1988 = vld [vmem:[#allocation3 + $0x30] sm:$0xff]
      %v1989 = vld [vmem:[#allocation3 + $0x38] sm:$0xff]
      %v1990 = vld [vmem:[#allocation3 + $0x40] sm:$0xff]
      %v1991 = vld [vmem:[#allocation3 + $0x48] sm:$0xff]
      %v1992 = vld [vmem:[#allocation3 + $0x50] sm:$0xff]
      %v1993 = vld [vmem:[#allocation3 + $0x58] sm:$0xff]
      %v1994 = vld [vmem:[#allocation3 + $0x60] sm:$0xff]
      %v1995 = vld [vmem:[#allocation3 + $0x68] sm:$0xff]
      %v1996 = vld [vmem:[#allocation3 + $0x70] sm:$0xff]
      %v1997 = vld [vmem:[#allocation3 + $0x78] sm:$0xff]
      %v1998 = vld [vmem:[#allocation3 + $0x80] sm:$0xff]
      %v1999 = vld [vmem:[#allocation3 + $0x88] sm:$0xff]
      %v2000 = vld [vmem:[#allocation3 + $0x90] sm:$0xff]
      %v2001 = vld [vmem:[#allocation3 + $0x98] sm:$0xff]
      %v2002 = vld [vmem:[#allocation3 + $0xa0] sm:$0xff]
      %v2003 = vld [vmem:[#allocation3 + $0xa8] sm:$0xff]
      %v2004 = vld [vmem:[#allocation3 + $0xb0] sm:$0xff]
      %v2005 = vld [vmem:[#allocation3 + $0xb8] sm:$0xff]
      %v2006 = vld [vmem:[#allocation3 + $0xc0] sm:$0xff]
      %v2007 = vld [vmem:[#allocation3 + $0xc8] sm:$0xff]
      %v2008 = vld [vmem:[#allocation3 + $0xd0] sm:$0xff]
      %v2009 = vld [vmem:[#allocation3 + $0xd8] sm:$0xff]
      %v2010 = vld [vmem:[#allocation3 + $0xe0] sm:$0xff]
      %v2011 = vld [vmem:[#allocation3 + $0xe8] sm:$0xff]
      %v2012 = vld [vmem:[#allocation3 + $0xf0] sm:$0xff]
      %v2013 = vld [vmem:[#allocation3 + $0xf8] sm:$0xff]
      %v2014 = vld [vmem:[#allocation3 + $0x100] sm:$0xff]
      %v2015 = vld [vmem:[#allocation3 + $0x108] sm:$0xff]
      %v2016 = vld [vmem:[#allocation3 + $0x110] sm:$0xff]
      %v2017 = vld [vmem:[#allocation3 + $0x118] sm:$0xff]
      %v2018 = vld [vmem:[#allocation3 + $0x120] sm:$0xff]
      %v2019 = vld [vmem:[#allocation3 + $0x128] sm:$0xff]
      %v2020 = vld [vmem:[#allocation3 + $0x130] sm:$0xff]
      %v2021 = vld [vmem:[#allocation3 + $0x138] sm:$0xff]
      %v2022 = vld [vmem:[#allocation3 + $0x140] sm:$0xff]
      %v2023 = vld [vmem:[#allocation3 + $0x148] sm:$0xff]
      %v2024 = vld [vmem:[#allocation3 + $0x150] sm:$0xff]
      %v2025 = vld [vmem:[#allocation3 + $0x158] sm:$0xff]
      %v2026 = vld [vmem:[#allocation3 + $0x160] sm:$0xff]
      %v2027 = vld [vmem:[#allocation3 + $0x168] sm:$0xff]
      %v2028 = vld [vmem:[#allocation3 + $0x170] sm:$0xff]
      %v2029 = vld [vmem:[#allocation3 + $0x178] sm:$0xff]
      %v2030 = vld [vmem:[#allocation3 + $0x180] sm:$0xff]
      %v2031 = vld [vmem:[#allocation3 + $0x188] sm:$0xff]
      %v2032 = vld [vmem:[#allocation3 + $0x190] sm:$0xff]
      %v2033 = vld [vmem:[#allocation3 + $0x198] sm:$0xff]
      %v2034 = vld [vmem:[#allocation3 + $0x1a0] sm:$0xff]
      %v2035 = vld [vmem:[#allocation3 + $0x1a8] sm:$0xff]
      %v2036 = vld [vmem:[%s2] sm:$0xff]
      %2038 = vset.pattern.permute.xlu0 0
      %2039 = vperm.xlu0 %2038, %v2036
      %v2040 = vpop.permute.xlu0 %2039
      %v2043 = vunpack.c.l.b16 %v1981
      %v2044 = vunpack.c.h.b16 %v1981
      %v2045 = vpack.c.b16 %v2043, %v2043
      %v2046 = vpack.c.b16 %v2044, %v2044
      %v2102 = vunpack.c.l.b16 %v1982
      %v2103 = vunpack.c.h.b16 %v1982
      %v2104 = vunpack.c.l.b16 %v1983
      %v2105 = vunpack.c.h.b16 %v1983
      %v2106 = vunpack.c.l.b16 %v1984
      %v2107 = vunpack.c.h.b16 %v1984
      %v2108 = vunpack.c.l.b16 %v1985
      %v2109 = vunpack.c.h.b16 %v1985
      %v2110 = vunpack.c.l.b16 %v1986
      %v2111 = vunpack.c.h.b16 %v1986
      %v2112 = vunpack.c.l.b16 %v1987
      %v2113 = vunpack.c.h.b16 %v1987
      %v2114 = vunpack.c.l.b16 %v1988
      %v2115 = vunpack.c.h.b16 %v1988
      %v2116 = vunpack.c.l.b16 %v1989
      %v2117 = vunpack.c.h.b16 %v1989
      %v2118 = vunpack.c.l.b16 %v1990
      %v2119 = vunpack.c.h.b16 %v1990
      %v2120 = vunpack.c.l.b16 %v1991
      %v2121 = vunpack.c.h.b16 %v1991
      %v2122 = vunpack.c.l.b16 %v1992
      %v2123 = vunpack.c.h.b16 %v1992
      %v2124 = vunpack.c.l.b16 %v1993
      %v2125 = vunpack.c.h.b16 %v1993
      %v2126 = vunpack.c.l.b16 %v1994
      %v2127 = vunpack.c.h.b16 %v1994
      %v2128 = vunpack.c.l.b16 %v1995
      %v2129 = vunpack.c.h.b16 %v1995
      %v2130 = vunpack.c.l.b16 %v1996
      %v2131 = vunpack.c.h.b16 %v1996
      %v2132 = vunpack.c.l.b16 %v1997
      %v2133 = vunpack.c.h.b16 %v1997
      %v2134 = vunpack.c.l.b16 %v1998
      %v2135 = vunpack.c.h.b16 %v1998
      %v2136 = vunpack.c.l.b16 %v1999
      %v2137 = vunpack.c.h.b16 %v1999
      %v2138 = vunpack.c.l.b16 %v2000
      %v2139 = vunpack.c.h.b16 %v2000
      %v2140 = vunpack.c.l.b16 %v2001
      %v2141 = vunpack.c.h.b16 %v2001
      %v2142 = vunpack.c.l.b16 %v2002
      %v2143 = vunpack.c.h.b16 %v2002
      %v2144 = vunpack.c.l.b16 %v2003
      %v2145 = vunpack.c.h.b16 %v2003
      %v2146 = vunpack.c.l.b16 %v2004
      %v2147 = vunpack.c.h.b16 %v2004
      %v2148 = vunpack.c.l.b16 %v2005
      %v2149 = vunpack.c.h.b16 %v2005
      %v2150 = vunpack.c.l.b16 %v2006
      %v2151 = vunpack.c.h.b16 %v2006
      %v2152 = vunpack.c.l.b16 %v2007
      %v2153 = vunpack.c.h.b16 %v2007
      %v2154 = vunpack.c.l.b16 %v2008
      %v2155 = vunpack.c.h.b16 %v2008
      %v2156 = vunpack.c.l.b16 %v2009
      %v2157 = vunpack.c.h.b16 %v2009
      %v2158 = vunpack.c.l.b16 %v2010
      %v2159 = vunpack.c.h.b16 %v2010
      %v2160 = vunpack.c.l.b16 %v2011
      %v2161 = vunpack.c.h.b16 %v2011
      %v2162 = vunpack.c.l.b16 %v2012
      %v2163 = vunpack.c.h.b16 %v2012
      %v2164 = vunpack.c.l.b16 %v2013
      %v2165 = vunpack.c.h.b16 %v2013
      %v2166 = vunpack.c.l.b16 %v2014
      %v2167 = vunpack.c.h.b16 %v2014
      %v2168 = vunpack.c.l.b16 %v2015
      %v2169 = vunpack.c.h.b16 %v2015
      %v2170 = vunpack.c.l.b16 %v2016
      %v2171 = vunpack.c.h.b16 %v2016
      %v2172 = vunpack.c.l.b16 %v2017
      %v2173 = vunpack.c.h.b16 %v2017
      %v2174 = vunpack.c.l.b16 %v2018
      %v2175 = vunpack.c.h.b16 %v2018
      %v2176 = vunpack.c.l.b16 %v2019
      %v2177 = vunpack.c.h.b16 %v2019
      %v2178 = vunpack.c.l.b16 %v2020
      %v2179 = vunpack.c.h.b16 %v2020
      %v2180 = vunpack.c.l.b16 %v2021
      %v2181 = vunpack.c.h.b16 %v2021
      %v2182 = vunpack.c.l.b16 %v2022
      %v2183 = vunpack.c.h.b16 %v2022
      %v2184 = vunpack.c.l.b16 %v2023
      %v2185 = vunpack.c.h.b16 %v2023
      %v2186 = vunpack.c.l.b16 %v2024
      %v2187 = vunpack.c.h.b16 %v2024
      %v2188 = vunpack.c.l.b16 %v2025
      %v2189 = vunpack.c.h.b16 %v2025
      %v2190 = vunpack.c.l.b16 %v2026
      %v2191 = vunpack.c.h.b16 %v2026
      %v2192 = vunpack.c.l.b16 %v2027
      %v2193 = vunpack.c.h.b16 %v2027
      %v2194 = vunpack.c.l.b16 %v2028
      %v2195 = vunpack.c.h.b16 %v2028
      %v2196 = vunpack.c.l.b16 %v2029
      %v2197 = vunpack.c.h.b16 %v2029
      %v2198 = vunpack.c.l.b16 %v2030
      %v2199 = vunpack.c.h.b16 %v2030
      %v2200 = vunpack.c.l.b16 %v2031
      %v2201 = vunpack.c.h.b16 %v2031
      %v2202 = vunpack.c.l.b16 %v2032
      %v2203 = vunpack.c.h.b16 %v2032
      %v2204 = vunpack.c.l.b16 %v2033
      %v2205 = vunpack.c.h.b16 %v2033
      %v2206 = vunpack.c.l.b16 %v2034
      %v2207 = vunpack.c.h.b16 %v2034
      %v2208 = vunpack.c.l.b16 %v2035
      %v2209 = vunpack.c.h.b16 %v2035
      %v2210 = vpack.c.b16 %v2106, %v2102
      %v2211 = vpack.c.b16 %v2107, %v2103
      %v2212 = vpack.c.b16 %v2108, %v2104
      %v2213 = vpack.c.b16 %v2109, %v2105
      %v2214 = vpack.c.b16 %v2114, %v2110
      %v2215 = vpack.c.b16 %v2115, %v2111
      %v2216 = vpack.c.b16 %v2116, %v2112
      %v2217 = vpack.c.b16 %v2117, %v2113
      %v2218 = vpack.c.b16 %v2122, %v2118
      %v2219 = vpack.c.b16 %v2123, %v2119
      %v2220 = vpack.c.b16 %v2124, %v2120
      %v2221 = vpack.c.b16 %v2125, %v2121
      %v2222 = vpack.c.b16 %v2130, %v2126
      %v2223 = vpack.c.b16 %v2131, %v2127
      %v2224 = vpack.c.b16 %v2132, %v2128
      %v2225 = vpack.c.b16 %v2133, %v2129
      %v2226 = vpack.c.b16 %v2138, %v2134
      %v2227 = vpack.c.b16 %v2139, %v2135
      %v2228 = vpack.c.b16 %v2140, %v2136
      %v2229 = vpack.c.b16 %v2141, %v2137
      %v2230 = vpack.c.b16 %v2146, %v2142
      %v2231 = vpack.c.b16 %v2147, %v2143
      %v2232 = vpack.c.b16 %v2148, %v2144
      %v2233 = vpack.c.b16 %v2149, %v2145
      %v2234 = vpack.c.b16 %v2154, %v2150
      %v2235 = vpack.c.b16 %v2155, %v2151
      %v2236 = vpack.c.b16 %v2156, %v2152
      %v2237 = vpack.c.b16 %v2157, %v2153
      %v2238 = vpack.c.b16 %v2162, %v2158
      %v2239 = vpack.c.b16 %v2163, %v2159
      %v2240 = vpack.c.b16 %v2164, %v2160
      %v2241 = vpack.c.b16 %v2165, %v2161
      %v2242 = vpack.c.b16 %v2170, %v2166
      %v2243 = vpack.c.b16 %v2171, %v2167
      %v2244 = vpack.c.b16 %v2172, %v2168
      %v2245 = vpack.c.b16 %v2173, %v2169
      %v2246 = vpack.c.b16 %v2178, %v2174
      %v2247 = vpack.c.b16 %v2179, %v2175
      %v2248 = vpack.c.b16 %v2180, %v2176
      %v2249 = vpack.c.b16 %v2181, %v2177
      %v2250 = vpack.c.b16 %v2186, %v2182
      %v2251 = vpack.c.b16 %v2187, %v2183
      %v2252 = vpack.c.b16 %v2188, %v2184
      %v2253 = vpack.c.b16 %v2189, %v2185
      %v2254 = vpack.c.b16 %v2194, %v2190
      %v2255 = vpack.c.b16 %v2195, %v2191
      %v2256 = vpack.c.b16 %v2196, %v2192
      %v2257 = vpack.c.b16 %v2197, %v2193
      %v2258 = vpack.c.b16 %v2202, %v2198
      %v2259 = vpack.c.b16 %v2203, %v2199
      %v2260 = vpack.c.b16 %v2204, %v2200
      %v2261 = vpack.c.b16 %v2205, %v2201
      %v2262 = vpack.c.b16 %v2206, %v2206
      %v2263 = vpack.c.b16 %v2207, %v2207
      %v2264 = vpack.c.b16 %v2208, %v2208
      %v2265 = vpack.c.b16 %v2209, %v2209
      %v2319 = vsel %vm1224, %v2046, 0
      %v2322 = vsel %vm1228, %v2262, 0
      %v2325 = vsel %vm1228, %v2263, 0
      %v2328 = vsel %vm1228, %v2264, 0
      %v2331 = vsel %vm1228, %v2265, 0
      %2333 = vmatprep.subr.bf16.mxu0 %v2239
      %2334 = vmatpush1.bf16.msra.mxu0 %v2238
      %2335 = vmatprep.subr.bf16.mxu0 %v2235
      %2336 = vmatpush1.bf16.msra.mxu0 %v2234
      %2337 = vmatprep.subr.bf16.mxu0 %v2231
      %2338 = vmatpush1.bf16.msra.mxu0 %v2230
      %2339 = vmatprep.subr.bf16.mxu0 %v2227
      %2340 = vmatpush1.bf16.msra.mxu0 %v2226
      %2341 = vmatprep.subr.bf16.mxu0 %v2223
      %2342 = vmatpush1.bf16.msra.mxu0 %v2222
      %2343 = vmatprep.subr.bf16.mxu0 %v2219
      %2344 = vmatpush1.bf16.msra.mxu0 %v2218
      %2345 = vmatprep.subr.bf16.mxu0 %v2215
      %2346 = vmatpush1.bf16.msra.mxu0 %v2214
      %2347 = vmatprep.subr.bf16.mxu0 %v2211
      %2348 = vmatpush1.bf16.msra.mxu0 %v2210
      %2349 = vmatprep.subr.bf16.mxu0 0
      %2350 = vmatpush2.bf16.msra.mxu0 0
      %2351 = vmatprep.subr.bf16.mxu0 0
      %2352 = vmatpush2.bf16.msra.mxu0 0
      %2353 = vmatprep.subr.bf16.mxu0 %v2325
      %2354 = vmatpush2.bf16.msra.mxu0 %v2322
      %2355 = vmatprep.subr.bf16.mxu0 %v2259
      %2356 = vmatpush2.bf16.msra.mxu0 %v2258
      %2357 = vmatprep.subr.bf16.mxu0 %v2255
      %2358 = vmatpush2.bf16.msra.mxu0 %v2254
      %2359 = vmatprep.subr.bf16.mxu0 %v2251
      %2360 = vmatpush2.bf16.msra.mxu0 %v2250
      %2361 = vmatprep.subr.bf16.mxu0 %v2247
      %2362 = vmatpush2.bf16.msra.mxu0 %v2246
      %2363 = vmatprep.subr.bf16.mxu0 %v2243
      %2364 = vmatpush2.bf16.msra.mxu0 %v2242
      %2365 = vmatprep.mubr.bf16.mxu0 %v2319
      %2366 = vmatmul.mubr.bf16.gmra.mxu0 %v2045
      %v2367 = vpop.f32.mrf.mxu0
      %v2368 = vadd.f32 %v2040, %v2367
      %v2369 = vpop.f32.mrf.mxu0
      %v2370 = vadd.f32 %v2040, %v2369
      %v2371 = vpop.f32.mrf.mxu0
      %v2372 = vpop.f32.mrf.mxu0
      %2373 = vdwg.mxu0
      %2374 = vmatprep.subr.bf16.mxu0 %v2241
      %2375 = vmatpush1.bf16.msra.mxu0 %v2240
      %2376 = vmatprep.subr.bf16.mxu0 %v2237
      %2377 = vmatpush1.bf16.msra.mxu0 %v2236
      %2378 = vmatprep.subr.bf16.mxu0 %v2233
      %2379 = vmatpush1.bf16.msra.mxu0 %v2232
      %2380 = vmatprep.subr.bf16.mxu0 %v2229
      %2381 = vmatpush1.bf16.msra.mxu0 %v2228
      %2382 = vmatprep.subr.bf16.mxu0 %v2225
      %2383 = vmatpush1.bf16.msra.mxu0 %v2224
      %2384 = vmatprep.subr.bf16.mxu0 %v2221
      %2385 = vmatpush1.bf16.msra.mxu0 %v2220
      %2386 = vmatprep.subr.bf16.mxu0 %v2217
      %2387 = vmatpush1.bf16.msra.mxu0 %v2216
      %2388 = vmatprep.subr.bf16.mxu0 %v2213
      %2389 = vmatpush1.bf16.msra.mxu0 %v2212
      %2390 = vmatprep.subr.bf16.mxu0 0
      %2391 = vmatpush2.bf16.msra.mxu0 0
      %2392 = vmatprep.subr.bf16.mxu0 0
      %2393 = vmatpush2.bf16.msra.mxu0 0
      %2394 = vmatprep.subr.bf16.mxu0 %v2331
      %2395 = vmatpush2.bf16.msra.mxu0 %v2328
      %2396 = vmatprep.subr.bf16.mxu0 %v2261
      %2397 = vmatpush2.bf16.msra.mxu0 %v2260
      %2398 = vmatprep.subr.bf16.mxu0 %v2257
      %2399 = vmatpush2.bf16.msra.mxu0 %v2256
      %2400 = vmatprep.subr.bf16.mxu0 %v2253
      %2401 = vmatpush2.bf16.msra.mxu0 %v2252
      %2402 = vmatprep.subr.bf16.mxu0 %v2249
      %2403 = vmatpush2.bf16.msra.mxu0 %v2248
      %2404 = vmatprep.subr.bf16.mxu0 %v2245
      %2405 = vmatpush2.bf16.msra.mxu0 %v2244
      %2406 = vmatprep.mubr.bf16.mxu0 %v2319
      %2407 = vmatmul.mubr.bf16.gmra.mxu0 %v2045
      %v2408 = vpop.f32.mrf.mxu0
      %v2409 = vadd.f32 %v2040, %v2408
      %v2410 = vpop.f32.mrf.mxu0
      %v2411 = vadd.f32 %v2040, %v2410
      %v2412 = vpop.f32.mrf.mxu0
      %v2413 = vpop.f32.mrf.mxu0
      %2414 = vdwg.mxu0
      %vm2415 = vcmp.ge.f32.partialorder %v2368, 0.0
      %vm2416 = vcmp.ge.f32.partialorder %v2370, 0.0
      %vm2417 = vcmp.ge.f32.partialorder %v2409, 0.0
      %vm2418 = vcmp.ge.f32.partialorder %v2411, 0.0
      %v2419 = vmul.f32 %v2368, 0.01
      %v2420 = vmul.f32 %v2370, 0.01
      %v2421 = vmul.f32 %v2409, 0.01
      %v2422 = vmul.f32 %v2411, 0.01
      %v2423 = vsel %vm2415, %v2368, %v2419
      %v2424 = vsel %vm2416, %v2370, %v2420
      %v2425 = vsel %vm2417, %v2409, %v2421
      %v2426 = vsel %vm2418, %v2411, %v2422
      %v2427 = vld [vmem:[%s5 + $0x4] sm:$0xf]
      %v2429 = vlaneseq
      %v2430 = vshrl.u32 %v2429, 7
      %v2431 = vsub.s32 0, %v2430
      %v2432 = vrot.slane %v2427, %v2431
      %v2433 = vlaneseq
      %v2434 = vshrl.u32 %v2433, 7
      %v2435 = vsub.s32 1, %v2434
      %v2436 = vrot.slane %v2427, %v2435
      %v2437 = vlaneseq
      %v2438 = vshrl.u32 %v2437, 7
      %v2439 = vsub.s32 2, %v2438
      %v2440 = vrot.slane %v2427, %v2439
      %v2441 = vlaneseq
      %v2442 = vshrl.u32 %v2441, 7
      %v2443 = vsub.s32 3, %v2442
      %v2444 = vrot.slane %v2427, %v2443
      %v2449 = vmul.f32 %v2423, %v2432
      %v2450 = vmul.f32 %v2424, %v2436
      %v2451 = vmul.f32 %v2425, %v2440
      %v2452 = vmul.f32 %v2426, %v2444
      %v2453 = vpack.c.bf16 %v2449, %v2449
      %v2454 = vpack.c.bf16 %v2450, %v2450
      %v2455 = vpack.c.bf16 %v2451, %v2451
      %v2456 = vpack.c.bf16 %v2452, %v2452
      %v2461 = vunpack.c.l.b16 %v2453
      %v2462 = vunpack.c.l.b16 %v2454
      %v2463 = vunpack.c.l.b16 %v2455
      %v2464 = vunpack.c.l.b16 %v2456
      %v2465 = vpack.c.b16 %v2462, %v2461
      %v2466 = vpack.c.b16 %v2464, %v2463
      %2469 = vst [vmem:[#allocation2 + $0x14] sm:$0xff] %v2465
      %2470 = vst [vmem:[#allocation2 + $0x1c] sm:$0xff] %v2466
      %v2471 = vld [vmem:[#allocation2] sm:$0xff]
      %v2472 = vld [vmem:[#allocation2 + $0x8] sm:$0xff]
      %v2473 = vld [vmem:[#allocation2 + $0x10] sm:$0xf]
      %2477 = vrot.lane.b32.xlu0 %v2471, 111
      %v2478 = vpop.permute.xlu0 %2477
      %2479 = vrot.lane.b32.xlu0 %v2472, 111
      %v2480 = vpop.permute.xlu0 %2479
      %2481 = vrot.lane.b32.xlu0 %v2473, 111
      %v2482 = vpop.permute.xlu0 %2481
      %v2483 = vrot.slane %v2478, 4
      %v2484 = vrot.slane %v2480, 4
      %v2485 = vrot.slane %v2482, 4
      %v2486 = vsel %vm277, %v2483, %v2484
      %vm2487 = vcmask 908288
      %v2488 = vsel %vm2487, %v2478, %v2486
      %v2489 = vsel %vm277, %v2484, %v2485
      %v2490 = vsel %vm2487, %v2480, %v2489
      %2493 = vst [vmem:[#allocation4] sm:$0xff] %v2488
      %2494 = vst [vmem:[#allocation4 + $0x8] sm:$0xff] %v2490
      %v2495 = vld [vmem:[#allocation2] sm:$0xff]
      %v2496 = vld [vmem:[#allocation2 + $0x8] sm:$0xff]
      %v2497 = vld [vmem:[#allocation2 + $0x10] sm:$0xf]
      %2501 = vrot.lane.b32.xlu0 %v2495, 110
      %v2502 = vpop.permute.xlu0 %2501
      %2503 = vrot.lane.b32.xlu0 %v2496, 110
      %v2504 = vpop.permute.xlu0 %2503
      %2505 = vrot.lane.b32.xlu0 %v2497, 110
      %v2506 = vpop.permute.xlu0 %2505
      %v2507 = vrot.slane %v2502, 4
      %v2508 = vrot.slane %v2504, 4
      %v2509 = vrot.slane %v2506, 4
      %v2510 = vsel %vm277, %v2507, %v2508
      %vm2511 = vcmask 900096
      %v2512 = vsel %vm2511, %v2502, %v2510
      %v2513 = vsel %vm277, %v2508, %v2509
      %v2514 = vsel %vm2511, %v2504, %v2513
      %2517 = vst [vmem:[#allocation4 + $0x10] sm:$0xff] %v2512
      %2518 = vst [vmem:[#allocation4 + $0x18] sm:$0xff] %v2514
      %v2519 = vld [vmem:[#allocation2] sm:$0xff]
      %v2520 = vld [vmem:[#allocation2 + $0x8] sm:$0xff]
      %v2521 = vld [vmem:[#allocation2 + $0x10] sm:$0xf]
      %2525 = vrot.lane.b32.xlu0 %v2519, 109
      %v2526 = vpop.permute.xlu0 %2525
      %2527 = vrot.lane.b32.xlu0 %v2520, 109
      %v2528 = vpop.permute.xlu0 %2527
      %2529 = vrot.lane.b32.xlu0 %v2521, 109
      %v2530 = vpop.permute.xlu0 %2529
      %v2531 = vrot.slane %v2526, 4
      %v2532 = vrot.slane %v2528, 4
      %v2533 = vrot.slane %v2530, 4
      %v2534 = vsel %vm277, %v2531, %v2532
      %vm2535 = vcmask 891904
      %v2536 = vsel %vm2535, %v2526, %v2534
      %v2537 = vsel %vm277, %v2532, %v2533
      %v2538 = vsel %vm2535, %v2528, %v2537
      %2541 = vst [vmem:[#allocation4 + $0x20] sm:$0xff] %v2536
      %2542 = vst [vmem:[#allocation4 + $0x28] sm:$0xff] %v2538
      %v2543 = vld [vmem:[#allocation2] sm:$0xff]
      %v2544 = vld [vmem:[#allocation2 + $0x8] sm:$0xff]
      %v2545 = vld [vmem:[#allocation2 + $0x10] sm:$0xf]
      %2549 = vrot.lane.b32.xlu0 %v2543, 101
      %v2550 = vpop.permute.xlu0 %2549
      %2551 = vrot.lane.b32.xlu0 %v2544, 101
      %v2552 = vpop.permute.xlu0 %2551
      %2553 = vrot.lane.b32.xlu0 %v2545, 101
      %v2554 = vpop.permute.xlu0 %2553
      %v2555 = vrot.slane %v2550, 4
      %v2556 = vrot.slane %v2552, 4
      %v2557 = vrot.slane %v2554, 4
      %v2558 = vsel %vm277, %v2555, %v2556
      %vm2559 = vcmask 826368
      %v2560 = vsel %vm2559, %v2550, %v2558
      %v2561 = vsel %vm277, %v2556, %v2557
      %v2562 = vsel %vm2559, %v2552, %v2561
      %2565 = vst [vmem:[#allocation4 + $0x30] sm:$0xff] %v2560
      %2566 = vst [vmem:[#allocation4 + $0x38] sm:$0xff] %v2562
      %v2567 = vld [vmem:[#allocation2] sm:$0xff]
      %v2568 = vld [vmem:[#allocation2 + $0x8] sm:$0xff]
      %v2569 = vld [vmem:[#allocation2 + $0x10] sm:$0xf]
      %2573 = vrot.lane.b32.xlu0 %v2567, 100
      %v2574 = vpop.permute.xlu0 %2573
      %2575 = vrot.lane.b32.xlu0 %v2568, 100
      %v2576 = vpop.permute.xlu0 %2575
      %2577 = vrot.lane.b32.xlu0 %v2569, 100
      %v2578 = vpop.permute.xlu0 %2577
      %v2579 = vrot.slane %v2574, 4
      %v2580 = vrot.slane %v2576, 4
      %v2581 = vrot.slane %v2578, 4
      %v2582 = vsel %vm277, %v2579, %v2580
      %vm2583 = vcmask 818176
      %v2584 = vsel %vm2583, %v2574, %v2582
      %v2585 = vsel %vm277, %v2580, %v2581
      %v2586 = vsel %vm2583, %v2576, %v2585
      %2589 = vst [vmem:[#allocation4 + $0x40] sm:$0xff] %v2584
      %2590 = vst [vmem:[#allocation4 + $0x48] sm:$0xff] %v2586
      %v2591 = vld [vmem:[#allocation2] sm:$0xff]
      %v2592 = vld [vmem:[#allocation2 + $0x8] sm:$0xff]
      %v2593 = vld [vmem:[#allocation2 + $0x10] sm:$0xf]
      %2597 = vrot.lane.b32.xlu0 %v2591, 99
      %v2598 = vpop.permute.xlu0 %2597
      %2599 = vrot.lane.b32.xlu0 %v2592, 99
      %v2600 = vpop.permute.xlu0 %2599
      %2601 = vrot.lane.b32.xlu0 %v2593, 99
      %v2602 = vpop.permute.xlu0 %2601
      %v2603 = vrot.slane %v2598, 4
      %v2604 = vrot.slane %v2600, 4
      %v2605 = vrot.slane %v2602, 4
      %v2606 = vsel %vm277, %v2603, %v2604
      %vm2607 = vcmask 809984
      %v2608 = vsel %vm2607, %v2598, %v2606
      %v2609 = vsel %vm277, %v2604, %v2605
      %v2610 = vsel %vm2607, %v2600, %v2609
      %2613 = vst [vmem:[#allocation4 + $0x50] sm:$0xff] %v2608
      %2614 = vst [vmem:[#allocation4 + $0x58] sm:$0xff] %v2610
      %v2615 = vld [vmem:[#allocation2] sm:$0xff]
      %v2616 = vld [vmem:[#allocation2 + $0x8] sm:$0xff]
      %v2617 = vld [vmem:[#allocation2 + $0x10] sm:$0xf]
      %2621 = vrot.lane.b32.xlu0 %v2615, 91
      %v2622 = vpop.permute.xlu0 %2621
      %2623 = vrot.lane.b32.xlu0 %v2616, 91
      %v2624 = vpop.permute.xlu0 %2623
      %2625 = vrot.lane.b32.xlu0 %v2617, 91
      %v2626 = vpop.permute.xlu0 %2625
      %v2627 = vrot.slane %v2622, 4
      %v2628 = vrot.slane %v2624, 4
      %v2629 = vrot.slane %v2626, 4
      %v2630 = vsel %vm277, %v2627, %v2628
      %vm2631 = vcmask 744448
      %v2632 = vsel %vm2631, %v2622, %v2630
      %v2633 = vsel %vm277, %v2628, %v2629
      %v2634 = vsel %vm2631, %v2624, %v2633
      %2637 = vst [vmem:[#allocation4 + $0x60] sm:$0xff] %v2632
      %2638 = vst [vmem:[#allocation4 + $0x68] sm:$0xff] %v2634
      %v2639 = vld [vmem:[#allocation2] sm:$0xff]
      %v2640 = vld [vmem:[#allocation2 + $0x8] sm:$0xff]
      %v2641 = vld [vmem:[#allocation2 + $0x10] sm:$0xf]
      %2645 = vrot.lane.b32.xlu0 %v2639, 90
      %v2646 = vpop.permute.xlu0 %2645
      %2647 = vrot.lane.b32.xlu0 %v2640, 90
      %v2648 = vpop.permute.xlu0 %2647
      %2649 = vrot.lane.b32.xlu0 %v2641, 90
      %v2650 = vpop.permute.xlu0 %2649
      %v2651 = vrot.slane %v2646, 4
      %v2652 = vrot.slane %v2648, 4
      %v2653 = vrot.slane %v2650, 4
      %v2654 = vsel %vm277, %v2651, %v2652
      %vm2655 = vcmask 736256
      %v2656 = vsel %vm2655, %v2646, %v2654
      %v2657 = vsel %vm277, %v2652, %v2653
      %v2658 = vsel %vm2655, %v2648, %v2657
      %2661 = vst [vmem:[#allocation4 + $0x70] sm:$0xff] %v2656
      %2662 = vst [vmem:[#allocation4 + $0x78] sm:$0xff] %v2658
      %v2663 = vld [vmem:[#allocation2] sm:$0xff]
      %v2664 = vld [vmem:[#allocation2 + $0x8] sm:$0xff]
      %v2665 = vld [vmem:[#allocation2 + $0x10] sm:$0xf]
      %2669 = vrot.lane.b32.xlu0 %v2663, 89
      %v2670 = vpop.permute.xlu0 %2669
      %2671 = vrot.lane.b32.xlu0 %v2664, 89
      %v2672 = vpop.permute.xlu0 %2671
      %2673 = vrot.lane.b32.xlu0 %v2665, 89
      %v2674 = vpop.permute.xlu0 %2673
      %v2675 = vrot.slane %v2670, 4
      %v2676 = vrot.slane %v2672, 4
      %v2677 = vrot.slane %v2674, 4
      %v2678 = vsel %vm277, %v2675, %v2676
      %vm2679 = vcmask 728064
      %v2680 = vsel %vm2679, %v2670, %v2678
      %v2681 = vsel %vm277, %v2676, %v2677
      %v2682 = vsel %vm2679, %v2672, %v2681
      %2685 = vst [vmem:[#allocation4 + $0x80] sm:$0xff] %v2680
      %2686 = vst [vmem:[#allocation4 + $0x88] sm:$0xff] %v2682
      %v2687 = vld [vmem:[#allocation2] sm:$0xff]
      %v2688 = vld [vmem:[#allocation2 + $0x8] sm:$0xff]
      %v2689 = vld [vmem:[#allocation2 + $0x10] sm:$0xf]
      %2693 = vrot.lane.b32.xlu0 %v2687, 11
      %v2694 = vpop.permute.xlu0 %2693
      %2695 = vrot.lane.b32.xlu0 %v2688, 11
      %v2696 = vpop.permute.xlu0 %2695
      %2697 = vrot.lane.b32.xlu0 %v2689, 11
      %v2698 = vpop.permute.xlu0 %2697
      %v2699 = vrot.slane %v2694, 4
      %v2700 = vrot.slane %v2696, 4
      %v2701 = vrot.slane %v2698, 4
      %v2702 = vsel %vm277, %v2699, %v2700
      %vm2703 = vcmask 89088
      %v2704 = vsel %vm2703, %v2694, %v2702
      %v2705 = vsel %vm277, %v2700, %v2701
      %v2706 = vsel %vm2703, %v2696, %v2705
      %2709 = vst [vmem:[#allocation4 + $0x90] sm:$0xff] %v2704
      %2710 = vst [vmem:[#allocation4 + $0x98] sm:$0xff] %v2706
      %v2711 = vld [vmem:[#allocation2] sm:$0xff]
      %v2712 = vld [vmem:[#allocation2 + $0x8] sm:$0xff]
      %v2713 = vld [vmem:[#allocation2 + $0x10] sm:$0xf]
      %2717 = vrot.lane.b32.xlu0 %v2711, 10
      %v2718 = vpop.permute.xlu0 %2717
      %2719 = vrot.lane.b32.xlu0 %v2712, 10
      %v2720 = vpop.permute.xlu0 %2719
      %2721 = vrot.lane.b32.xlu0 %v2713, 10
      %v2722 = vpop.permute.xlu0 %2721
      %v2723 = vrot.slane %v2718, 4
      %v2724 = vrot.slane %v2720, 4
      %v2725 = vrot.slane %v2722, 4
      %v2726 = vsel %vm277, %v2723, %v2724
      %vm2727 = vcmask 80896
      %v2728 = vsel %vm2727, %v2718, %v2726
      %v2729 = vsel %vm277, %v2724, %v2725
      %v2730 = vsel %vm2727, %v2720, %v2729
      %2733 = vst [vmem:[#allocation4 + $0xa0] sm:$0xff] %v2728
      %2734 = vst [vmem:[#allocation4 + $0xa8] sm:$0xff] %v2730
      %v2735 = vld [vmem:[#allocation2] sm:$0xff]
      %v2736 = vld [vmem:[#allocation2 + $0x8] sm:$0xff]
      %v2737 = vld [vmem:[#allocation2 + $0x10] sm:$0xf]
      %2741 = vrot.lane.b32.xlu0 %v2735, 9
      %v2742 = vpop.permute.xlu0 %2741
      %2743 = vrot.lane.b32.xlu0 %v2736, 9
      %v2744 = vpop.permute.xlu0 %2743
      %2745 = vrot.lane.b32.xlu0 %v2737, 9
      %v2746 = vpop.permute.xlu0 %2745
      %v2747 = vrot.slane %v2742, 4
      %v2748 = vrot.slane %v2744, 4
      %v2749 = vrot.slane %v2746, 4
      %v2750 = vsel %vm277, %v2747, %v2748
      %vm2751 = vcmask 72704
      %v2752 = vsel %vm2751, %v2742, %v2750
      %v2753 = vsel %vm277, %v2748, %v2749
      %v2754 = vsel %vm2751, %v2744, %v2753
      %2757 = vst [vmem:[#allocation4 + $0xb0] sm:$0xff] %v2752
      %2758 = vst [vmem:[#allocation4 + $0xb8] sm:$0xff] %v2754
      %v2759 = vld [vmem:[#allocation2] sm:$0xff]
      %v2760 = vld [vmem:[#allocation2 + $0x8] sm:$0xff]
      %v2761 = vld [vmem:[#allocation2 + $0x10] sm:$0xf]
      %2765 = vrot.lane.b32.xlu0 %v2759, 1
      %v2766 = vpop.permute.xlu0 %2765
      %2767 = vrot.lane.b32.xlu0 %v2760, 1
      %v2768 = vpop.permute.xlu0 %2767
      %2769 = vrot.lane.b32.xlu0 %v2761, 1
      %v2770 = vpop.permute.xlu0 %2769
      %v2771 = vrot.slane %v2766, 4
      %v2772 = vrot.slane %v2768, 4
      %v2773 = vrot.slane %v2770, 4
      %v2774 = vsel %vm277, %v2771, %v2772
      %vm2775 = vcmask 7168
      %v2776 = vsel %vm2775, %v2766, %v2774
      %v2777 = vsel %vm277, %v2772, %v2773
      %v2778 = vsel %vm2775, %v2768, %v2777
      %2781 = vst [vmem:[#allocation4 + $0xc0] sm:$0xff] %v2776
      %2782 = vst [vmem:[#allocation4 + $0xc8] sm:$0xff] %v2778
      %v2783 = vld [vmem:[#allocation2 + $0x4] sm:$0xff]
      %v2784 = vld [vmem:[#allocation2 + $0xc] sm:$0xff]
      %2785 = vst [vmem:[#allocation4 + $0xd0] sm:$0xff] %v2783
      %2786 = vst [vmem:[#allocation4 + $0xd8] sm:$0xff] %v2784
      %v2787 = vld [vmem:[#allocation2 + $0x4] sm:$0xff]
      %v2788 = vld [vmem:[#allocation2 + $0xc] sm:$0xff]
      %v2789 = vld [vmem:[#allocation2 + $0x14] sm:$0xf]
      %2793 = vrot.lane.b32.xlu0 %v2787, 127
      %v2794 = vpop.permute.xlu0 %2793
      %2795 = vrot.lane.b32.xlu0 %v2788, 127
      %v2796 = vpop.permute.xlu0 %2795
      %2797 = vrot.lane.b32.xlu0 %v2789, 127
      %v2798 = vpop.permute.xlu0 %2797
      %v2799 = vrot.slane %v2794, 4
      %v2800 = vrot.slane %v2796, 4
      %v2801 = vrot.slane %v2798, 4
      %v2802 = vsel %vm277, %v2799, %v2800
      %v2803 = vsel %vm279, %v2794, %v2802
      %v2804 = vsel %vm277, %v2800, %v2801
      %v2805 = vsel %vm279, %v2796, %v2804
      %2808 = vst [vmem:[#allocation4 + $0xe0] sm:$0xff] %v2803
      %2809 = vst [vmem:[#allocation4 + $0xe8] sm:$0xff] %v2805
      %v2810 = vld [vmem:[#allocation2 + $0x4] sm:$0xff]
      %v2811 = vld [vmem:[#allocation2 + $0xc] sm:$0xff]
      %v2812 = vld [vmem:[#allocation2 + $0x14] sm:$0xf]
      %2816 = vrot.lane.b32.xlu0 %v2810, 119
      %v2817 = vpop.permute.xlu0 %2816
      %2818 = vrot.lane.b32.xlu0 %v2811, 119
      %v2819 = vpop.permute.xlu0 %2818
      %2820 = vrot.lane.b32.xlu0 %v2812, 119
      %v2821 = vpop.permute.xlu0 %2820
      %v2822 = vrot.slane %v2817, 4
      %v2823 = vrot.slane %v2819, 4
      %v2824 = vrot.slane %v2821, 4
      %v2825 = vsel %vm277, %v2822, %v2823
      %vm2826 = vcmask 973824
      %v2827 = vsel %vm2826, %v2817, %v2825
      %v2828 = vsel %vm277, %v2823, %v2824
      %v2829 = vsel %vm2826, %v2819, %v2828
      %2832 = vst [vmem:[#allocation4 + $0xf0] sm:$0xff] %v2827
      %2833 = vst [vmem:[#allocation4 + $0xf8] sm:$0xff] %v2829
      %v2834 = vld [vmem:[#allocation2 + $0x4] sm:$0xff]
      %v2835 = vld [vmem:[#allocation2 + $0xc] sm:$0xff]
      %v2836 = vld [vmem:[#allocation2 + $0x14] sm:$0xf]
      %2840 = vrot.lane.b32.xlu0 %v2834, 118
      %v2841 = vpop.permute.xlu0 %2840
      %2842 = vrot.lane.b32.xlu0 %v2835, 118
      %v2843 = vpop.permute.xlu0 %2842
      %2844 = vrot.lane.b32.xlu0 %v2836, 118
      %v2845 = vpop.permute.xlu0 %2844
      %v2846 = vrot.slane %v2841, 4
      %v2847 = vrot.slane %v2843, 4
      %v2848 = vrot.slane %v2845, 4
      %v2849 = vsel %vm277, %v2846, %v2847
      %v2850 = vsel %vm327, %v2841, %v2849
      %v2851 = vsel %vm277, %v2847, %v2848
      %v2852 = vsel %vm327, %v2843, %v2851
      %2855 = vst [vmem:[#allocation4 + $0x100] sm:$0xff] %v2850
      %2856 = vst [vmem:[#allocation4 + $0x108] sm:$0xff] %v2852
      %v2857 = vld [vmem:[#allocation2 + $0x4] sm:$0xff]
      %v2858 = vld [vmem:[#allocation2 + $0xc] sm:$0xff]
      %v2859 = vld [vmem:[#allocation2 + $0x14] sm:$0xf]
      %2863 = vrot.lane.b32.xlu0 %v2857, 117
      %v2864 = vpop.permute.xlu0 %2863
      %2865 = vrot.lane.b32.xlu0 %v2858, 117
      %v2866 = vpop.permute.xlu0 %2865
      %2867 = vrot.lane.b32.xlu0 %v2859, 117
      %v2868 = vpop.permute.xlu0 %2867
      %v2869 = vrot.slane %v2864, 4
      %v2870 = vrot.slane %v2866, 4
      %v2871 = vrot.slane %v2868, 4
      %v2872 = vsel %vm277, %v2869, %v2870
      %v2873 = vsel %vm351, %v2864, %v2872
      %v2874 = vsel %vm277, %v2870, %v2871
      %v2875 = vsel %vm351, %v2866, %v2874
      %2878 = vst [vmem:[#allocation4 + $0x110] sm:$0xff] %v2873
      %2879 = vst [vmem:[#allocation4 + $0x118] sm:$0xff] %v2875
      %v2880 = vld [vmem:[#allocation2 + $0x4] sm:$0xff]
      %v2881 = vld [vmem:[#allocation2 + $0xc] sm:$0xff]
      %v2882 = vld [vmem:[#allocation2 + $0x14] sm:$0xf]
      %2886 = vrot.lane.b32.xlu0 %v2880, 39
      %v2887 = vpop.permute.xlu0 %2886
      %2888 = vrot.lane.b32.xlu0 %v2881, 39
      %v2889 = vpop.permute.xlu0 %2888
      %2890 = vrot.lane.b32.xlu0 %v2882, 39
      %v2891 = vpop.permute.xlu0 %2890
      %v2892 = vrot.slane %v2887, 4
      %v2893 = vrot.slane %v2889, 4
      %v2894 = vrot.slane %v2891, 4
      %v2895 = vsel %vm277, %v2892, %v2893
      %vm2896 = vcmask 318464
      %v2897 = vsel %vm2896, %v2887, %v2895
      %v2898 = vsel %vm277, %v2893, %v2894
      %v2899 = vsel %vm2896, %v2889, %v2898
      %2902 = vst [vmem:[#allocation4 + $0x120] sm:$0xff] %v2897
      %2903 = vst [vmem:[#allocation4 + $0x128] sm:$0xff] %v2899
      %v2904 = vld [vmem:[#allocation2 + $0x4] sm:$0xff]
      %v2905 = vld [vmem:[#allocation2 + $0xc] sm:$0xff]
      %v2906 = vld [vmem:[#allocation2 + $0x14] sm:$0xf]
      %2910 = vrot.lane.b32.xlu0 %v2904, 38
      %v2911 = vpop.permute.xlu0 %2910
      %2912 = vrot.lane.b32.xlu0 %v2905, 38
      %v2913 = vpop.permute.xlu0 %2912
      %2914 = vrot.lane.b32.xlu0 %v2906, 38
      %v2915 = vpop.permute.xlu0 %2914
      %v2916 = vrot.slane %v2911, 4
      %v2917 = vrot.slane %v2913, 4
      %v2918 = vrot.slane %v2915, 4
      %v2919 = vsel %vm277, %v2916, %v2917
      %vm2920 = vcmask 310272
      %v2921 = vsel %vm2920, %v2911, %v2919
      %v2922 = vsel %vm277, %v2917, %v2918
      %v2923 = vsel %vm2920, %v2913, %v2922
      %2926 = vst [vmem:[#allocation4 + $0x130] sm:$0xff] %v2921
      %2927 = vst [vmem:[#allocation4 + $0x138] sm:$0xff] %v2923
      %v2928 = vld [vmem:[#allocation2 + $0x4] sm:$0xff]
      %v2929 = vld [vmem:[#allocation2 + $0xc] sm:$0xff]
      %v2930 = vld [vmem:[#allocation2 + $0x14] sm:$0xf]
      %2934 = vrot.lane.b32.xlu0 %v2928, 37
      %v2935 = vpop.permute.xlu0 %2934
      %2936 = vrot.lane.b32.xlu0 %v2929, 37
      %v2937 = vpop.permute.xlu0 %2936
      %2938 = vrot.lane.b32.xlu0 %v2930, 37
      %v2939 = vpop.permute.xlu0 %2938
      %v2940 = vrot.slane %v2935, 4
      %v2941 = vrot.slane %v2937, 4
      %v2942 = vrot.slane %v2939, 4
      %v2943 = vsel %vm277, %v2940, %v2941
      %vm2944 = vcmask 302080
      %v2945 = vsel %vm2944, %v2935, %v2943
      %v2946 = vsel %vm277, %v2941, %v2942
      %v2947 = vsel %vm2944, %v2937, %v2946
      %2950 = vst [vmem:[#allocation4 + $0x140] sm:$0xff] %v2945
      %2951 = vst [vmem:[#allocation4 + $0x148] sm:$0xff] %v2947
      %v2952 = vld [vmem:[#allocation2 + $0x4] sm:$0xff]
      %v2953 = vld [vmem:[#allocation2 + $0xc] sm:$0xff]
      %v2954 = vld [vmem:[#allocation2 + $0x14] sm:$0xf]
      %2958 = vrot.lane.b32.xlu0 %v2952, 29
      %v2959 = vpop.permute.xlu0 %2958
      %2960 = vrot.lane.b32.xlu0 %v2953, 29
      %v2961 = vpop.permute.xlu0 %2960
      %2962 = vrot.lane.b32.xlu0 %v2954, 29
      %v2963 = vpop.permute.xlu0 %2962
      %v2964 = vrot.slane %v2959, 4
      %v2965 = vrot.slane %v2961, 4
      %v2966 = vrot.slane %v2963, 4
      %v2967 = vsel %vm277, %v2964, %v2965
      %vm2968 = vcmask 236544
      %v2969 = vsel %vm2968, %v2959, %v2967
      %v2970 = vsel %vm277, %v2965, %v2966
      %v2971 = vsel %vm2968, %v2961, %v2970
      %2974 = vst [vmem:[#allocation4 + $0x150] sm:$0xff] %v2969
      %2975 = vst [vmem:[#allocation4 + $0x158] sm:$0xff] %v2971
      %v2976 = vld [vmem:[#allocation2 + $0x4] sm:$0xff]
      %v2977 = vld [vmem:[#allocation2 + $0xc] sm:$0xff]
      %v2978 = vld [vmem:[#allocation2 + $0x14] sm:$0xf]
      %2982 = vrot.lane.b32.xlu0 %v2976, 28
      %v2983 = vpop.permute.xlu0 %2982
      %2984 = vrot.lane.b32.xlu0 %v2977, 28
      %v2985 = vpop.permute.xlu0 %2984
      %2986 = vrot.lane.b32.xlu0 %v2978, 28
      %v2987 = vpop.permute.xlu0 %2986
      %v2988 = vrot.slane %v2983, 4
      %v2989 = vrot.slane %v2985, 4
      %v2990 = vrot.slane %v2987, 4
      %v2991 = vsel %vm277, %v2988, %v2989
      %v2992 = vsel %vm471, %v2983, %v2991
      %v2993 = vsel %vm277, %v2989, %v2990
      %v2994 = vsel %vm471, %v2985, %v2993
      %2997 = vst [vmem:[#allocation4 + $0x160] sm:$0xff] %v2992
      %2998 = vst [vmem:[#allocation4 + $0x168] sm:$0xff] %v2994
      %v2999 = vld [vmem:[#allocation2 + $0x4] sm:$0xff]
      %v3000 = vld [vmem:[#allocation2 + $0xc] sm:$0xff]
      %v3001 = vld [vmem:[#allocation2 + $0x14] sm:$0xf]
      %3005 = vrot.lane.b32.xlu0 %v2999, 27
      %v3006 = vpop.permute.xlu0 %3005
      %3007 = vrot.lane.b32.xlu0 %v3000, 27
      %v3008 = vpop.permute.xlu0 %3007
      %3009 = vrot.lane.b32.xlu0 %v3001, 27
      %v3010 = vpop.permute.xlu0 %3009
      %v3011 = vrot.slane %v3006, 4
      %v3012 = vrot.slane %v3008, 4
      %v3013 = vrot.slane %v3010, 4
      %v3014 = vsel %vm277, %v3011, %v3012
      %v3015 = vsel %vm495, %v3006, %v3014
      %v3016 = vsel %vm277, %v3012, %v3013
      %v3017 = vsel %vm495, %v3008, %v3016
      %3020 = vst [vmem:[#allocation4 + $0x170] sm:$0xff] %v3015
      %3021 = vst [vmem:[#allocation4 + $0x178] sm:$0xff] %v3017
      %v3022 = vld [vmem:[#allocation2 + $0x4] sm:$0xff]
      %v3023 = vld [vmem:[#allocation2 + $0xc] sm:$0xff]
      %v3024 = vld [vmem:[#allocation2 + $0x14] sm:$0xf]
      %3028 = vrot.lane.b32.xlu0 %v3022, 19
      %v3029 = vpop.permute.xlu0 %3028
      %3030 = vrot.lane.b32.xlu0 %v3023, 19
      %v3031 = vpop.permute.xlu0 %3030
      %3032 = vrot.lane.b32.xlu0 %v3024, 19
      %v3033 = vpop.permute.xlu0 %3032
      %v3034 = vrot.slane %v3029, 4
      %v3035 = vrot.slane %v3031, 4
      %v3036 = vrot.slane %v3033, 4
      %v3037 = vsel %vm277, %v3034, %v3035
      %vm3038 = vcmask 154624
      %v3039 = vsel %vm3038, %v3029, %v3037
      %v3040 = vsel %vm277, %v3035, %v3036
      %v3041 = vsel %vm3038, %v3031, %v3040
      %3044 = vst [vmem:[#allocation4 + $0x180] sm:$0xff] %v3039
      %3045 = vst [vmem:[#allocation4 + $0x188] sm:$0xff] %v3041
      %v3046 = vld [vmem:[#allocation2 + $0x4] sm:$0xff]
      %v3047 = vld [vmem:[#allocation2 + $0xc] sm:$0xff]
      %v3048 = vld [vmem:[#allocation2 + $0x14] sm:$0xf]
      %3052 = vrot.lane.b32.xlu0 %v3046, 18
      %v3053 = vpop.permute.xlu0 %3052
      %3054 = vrot.lane.b32.xlu0 %v3047, 18
      %v3055 = vpop.permute.xlu0 %3054
      %3056 = vrot.lane.b32.xlu0 %v3048, 18
      %v3057 = vpop.permute.xlu0 %3056
      %v3058 = vrot.slane %v3053, 4
      %v3059 = vrot.slane %v3055, 4
      %v3060 = vrot.slane %v3057, 4
      %v3061 = vsel %vm277, %v3058, %v3059
      %v3062 = vsel %vm543, %v3053, %v3061
      %v3063 = vsel %vm277, %v3059, %v3060
      %v3064 = vsel %vm543, %v3055, %v3063
      %3067 = vst [vmem:[#allocation4 + $0x190] sm:$0xff] %v3062
      %3068 = vst [vmem:[#allocation4 + $0x198] sm:$0xff] %v3064
      %v3069 = vld [vmem:[#allocation2 + $0x4] sm:$0xff]
      %v3070 = vld [vmem:[#allocation2 + $0xc] sm:$0xff]
      %v3071 = vld [vmem:[#allocation2 + $0x14] sm:$0xf]
      %3075 = vrot.lane.b32.xlu0 %v3069, 17
      %v3076 = vpop.permute.xlu0 %3075
      %3077 = vrot.lane.b32.xlu0 %v3070, 17
      %v3078 = vpop.permute.xlu0 %3077
      %3079 = vrot.lane.b32.xlu0 %v3071, 17
      %v3080 = vpop.permute.xlu0 %3079
      %v3081 = vrot.slane %v3076, 4
      %v3082 = vrot.slane %v3078, 4
      %v3083 = vrot.slane %v3080, 4
      %v3084 = vsel %vm277, %v3081, %v3082
      %v3085 = vsel %vm567, %v3076, %v3084
      %v3086 = vsel %vm277, %v3082, %v3083
      %v3087 = vsel %vm567, %v3078, %v3086
      %3090 = vst [vmem:[#allocation4 + $0x1a0] sm:$0xff] %v3085
      %3091 = vst [vmem:[#allocation4 + $0x1a8] sm:$0xff] %v3087
      %v3092 = vld [vmem:[%s3] sm:$0xff]
      %v3093 = vld [vmem:[#allocation4] sm:$0xff]
      %v3094 = vld [vmem:[#allocation4 + $0x8] sm:$0xff]
      %v3095 = vld [vmem:[#allocation4 + $0x10] sm:$0xff]
      %v3096 = vld [vmem:[#allocation4 + $0x18] sm:$0xff]
      %v3097 = vld [vmem:[#allocation4 + $0x20] sm:$0xff]
      %v3098 = vld [vmem:[#allocation4 + $0x28] sm:$0xff]
      %v3099 = vld [vmem:[#allocation4 + $0x30] sm:$0xff]
      %v3100 = vld [vmem:[#allocation4 + $0x38] sm:$0xff]
      %v3101 = vld [vmem:[#allocation4 + $0x40] sm:$0xff]
      %v3102 = vld [vmem:[#allocation4 + $0x48] sm:$0xff]
      %v3103 = vld [vmem:[#allocation4 + $0x50] sm:$0xff]
      %v3104 = vld [vmem:[#allocation4 + $0x58] sm:$0xff]
      %v3105 = vld [vmem:[#allocation4 + $0x60] sm:$0xff]
      %v3106 = vld [vmem:[#allocation4 + $0x68] sm:$0xff]
      %v3107 = vld [vmem:[#allocation4 + $0x70] sm:$0xff]
      %v3108 = vld [vmem:[#allocation4 + $0x78] sm:$0xff]
      %v3109 = vld [vmem:[#allocation4 + $0x80] sm:$0xff]
      %v3110 = vld [vmem:[#allocation4 + $0x88] sm:$0xff]
      %v3111 = vld [vmem:[#allocation4 + $0x90] sm:$0xff]
      %v3112 = vld [vmem:[#allocation4 + $0x98] sm:$0xff]
      %v3113 = vld [vmem:[#allocation4 + $0xa0] sm:$0xff]
      %v3114 = vld [vmem:[#allocation4 + $0xa8] sm:$0xff]
      %v3115 = vld [vmem:[#allocation4 + $0xb0] sm:$0xff]
      %v3116 = vld [vmem:[#allocation4 + $0xb8] sm:$0xff]
      %v3117 = vld [vmem:[#allocation4 + $0xc0] sm:$0xff]
      %v3118 = vld [vmem:[#allocation4 + $0xc8] sm:$0xff]
      %v3119 = vld [vmem:[#allocation4 + $0xd0] sm:$0xff]
      %v3120 = vld [vmem:[#allocation4 + $0xd8] sm:$0xff]
      %v3121 = vld [vmem:[#allocation4 + $0xe0] sm:$0xff]
      %v3122 = vld [vmem:[#allocation4 + $0xe8] sm:$0xff]
      %v3123 = vld [vmem:[#allocation4 + $0xf0] sm:$0xff]
      %v3124 = vld [vmem:[#allocation4 + $0xf8] sm:$0xff]
      %v3125 = vld [vmem:[#allocation4 + $0x100] sm:$0xff]
      %v3126 = vld [vmem:[#allocation4 + $0x108] sm:$0xff]
      %v3127 = vld [vmem:[#allocation4 + $0x110] sm:$0xff]
      %v3128 = vld [vmem:[#allocation4 + $0x118] sm:$0xff]
      %v3129 = vld [vmem:[#allocation4 + $0x120] sm:$0xff]
      %v3130 = vld [vmem:[#allocation4 + $0x128] sm:$0xff]
      %v3131 = vld [vmem:[#allocation4 + $0x130] sm:$0xff]
      %v3132 = vld [vmem:[#allocation4 + $0x138] sm:$0xff]
      %v3133 = vld [vmem:[#allocation4 + $0x140] sm:$0xff]
      %v3134 = vld [vmem:[#allocation4 + $0x148] sm:$0xff]
      %v3135 = vld [vmem:[#allocation4 + $0x150] sm:$0xff]
      %v3136 = vld [vmem:[#allocation4 + $0x158] sm:$0xff]
      %v3137 = vld [vmem:[#allocation4 + $0x160] sm:$0xff]
      %v3138 = vld [vmem:[#allocation4 + $0x168] sm:$0xff]
      %v3139 = vld [vmem:[#allocation4 + $0x170] sm:$0xff]
      %v3140 = vld [vmem:[#allocation4 + $0x178] sm:$0xff]
      %v3141 = vld [vmem:[#allocation4 + $0x180] sm:$0xff]
      %v3142 = vld [vmem:[#allocation4 + $0x188] sm:$0xff]
      %v3143 = vld [vmem:[#allocation4 + $0x190] sm:$0xff]
      %v3144 = vld [vmem:[#allocation4 + $0x198] sm:$0xff]
      %v3145 = vld [vmem:[#allocation4 + $0x1a0] sm:$0xff]
      %v3146 = vld [vmem:[#allocation4 + $0x1a8] sm:$0xff]
      %v3147 = vld [vmem:[%s4] sm:$0xff]
      %3149 = vset.pattern.permute.xlu0 0
      %3150 = vperm.xlu0 %3149, %v3147
      %v3151 = vpop.permute.xlu0 %3150
      %v3154 = vunpack.c.l.b16 %v3092
      %v3155 = vunpack.c.h.b16 %v3092
      %v3156 = vpack.c.b16 %v3154, %v3154
      %v3157 = vpack.c.b16 %v3155, %v3155
      %v3213 = vunpack.c.l.b16 %v3093
      %v3214 = vunpack.c.h.b16 %v3093
      %v3215 = vunpack.c.l.b16 %v3094
      %v3216 = vunpack.c.h.b16 %v3094
      %v3217 = vunpack.c.l.b16 %v3095
      %v3218 = vunpack.c.h.b16 %v3095
      %v3219 = vunpack.c.l.b16 %v3096
      %v3220 = vunpack.c.h.b16 %v3096
      %v3221 = vunpack.c.l.b16 %v3097
      %v3222 = vunpack.c.h.b16 %v3097
      %v3223 = vunpack.c.l.b16 %v3098
      %v3224 = vunpack.c.h.b16 %v3098
      %v3225 = vunpack.c.l.b16 %v3099
      %v3226 = vunpack.c.h.b16 %v3099
      %v3227 = vunpack.c.l.b16 %v3100
      %v3228 = vunpack.c.h.b16 %v3100
      %v3229 = vunpack.c.l.b16 %v3101
      %v3230 = vunpack.c.h.b16 %v3101
      %v3231 = vunpack.c.l.b16 %v3102
      %v3232 = vunpack.c.h.b16 %v3102
      %v3233 = vunpack.c.l.b16 %v3103
      %v3234 = vunpack.c.h.b16 %v3103
      %v3235 = vunpack.c.l.b16 %v3104
      %v3236 = vunpack.c.h.b16 %v3104
      %v3237 = vunpack.c.l.b16 %v3105
      %v3238 = vunpack.c.h.b16 %v3105
      %v3239 = vunpack.c.l.b16 %v3106
      %v3240 = vunpack.c.h.b16 %v3106
      %v3241 = vunpack.c.l.b16 %v3107
      %v3242 = vunpack.c.h.b16 %v3107
      %v3243 = vunpack.c.l.b16 %v3108
      %v3244 = vunpack.c.h.b16 %v3108
      %v3245 = vunpack.c.l.b16 %v3109
      %v3246 = vunpack.c.h.b16 %v3109
      %v3247 = vunpack.c.l.b16 %v3110
      %v3248 = vunpack.c.h.b16 %v3110
      %v3249 = vunpack.c.l.b16 %v3111
      %v3250 = vunpack.c.h.b16 %v3111
      %v3251 = vunpack.c.l.b16 %v3112
      %v3252 = vunpack.c.h.b16 %v3112
      %v3253 = vunpack.c.l.b16 %v3113
      %v3254 = vunpack.c.h.b16 %v3113
      %v3255 = vunpack.c.l.b16 %v3114
      %v3256 = vunpack.c.h.b16 %v3114
      %v3257 = vunpack.c.l.b16 %v3115
      %v3258 = vunpack.c.h.b16 %v3115
      %v3259 = vunpack.c.l.b16 %v3116
      %v3260 = vunpack.c.h.b16 %v3116
      %v3261 = vunpack.c.l.b16 %v3117
      %v3262 = vunpack.c.h.b16 %v3117
      %v3263 = vunpack.c.l.b16 %v3118
      %v3264 = vunpack.c.h.b16 %v3118
      %v3265 = vunpack.c.l.b16 %v3119
      %v3266 = vunpack.c.h.b16 %v3119
      %v3267 = vunpack.c.l.b16 %v3120
      %v3268 = vunpack.c.h.b16 %v3120
      %v3269 = vunpack.c.l.b16 %v3121
      %v3270 = vunpack.c.h.b16 %v3121
      %v3271 = vunpack.c.l.b16 %v3122
      %v3272 = vunpack.c.h.b16 %v3122
      %v3273 = vunpack.c.l.b16 %v3123
      %v3274 = vunpack.c.h.b16 %v3123
      %v3275 = vunpack.c.l.b16 %v3124
      %v3276 = vunpack.c.h.b16 %v3124
      %v3277 = vunpack.c.l.b16 %v3125
      %v3278 = vunpack.c.h.b16 %v3125
      %v3279 = vunpack.c.l.b16 %v3126
      %v3280 = vunpack.c.h.b16 %v3126
      %v3281 = vunpack.c.l.b16 %v3127
      %v3282 = vunpack.c.h.b16 %v3127
      %v3283 = vunpack.c.l.b16 %v3128
      %v3284 = vunpack.c.h.b16 %v3128
      %v3285 = vunpack.c.l.b16 %v3129
      %v3286 = vunpack.c.h.b16 %v3129
      %v3287 = vunpack.c.l.b16 %v3130
      %v3288 = vunpack.c.h.b16 %v3130
      %v3289 = vunpack.c.l.b16 %v3131
      %v3290 = vunpack.c.h.b16 %v3131
      %v3291 = vunpack.c.l.b16 %v3132
      %v3292 = vunpack.c.h.b16 %v3132
      %v3293 = vunpack.c.l.b16 %v3133
      %v3294 = vunpack.c.h.b16 %v3133
      %v3295 = vunpack.c.l.b16 %v3134
      %v3296 = vunpack.c.h.b16 %v3134
      %v3297 = vunpack.c.l.b16 %v3135
      %v3298 = vunpack.c.h.b16 %v3135
      %v3299 = vunpack.c.l.b16 %v3136
      %v3300 = vunpack.c.h.b16 %v3136
      %v3301 = vunpack.c.l.b16 %v3137
      %v3302 = vunpack.c.h.b16 %v3137
      %v3303 = vunpack.c.l.b16 %v3138
      %v3304 = vunpack.c.h.b16 %v3138
      %v3305 = vunpack.c.l.b16 %v3139
      %v3306 = vunpack.c.h.b16 %v3139
      %v3307 = vunpack.c.l.b16 %v3140
      %v3308 = vunpack.c.h.b16 %v3140
      %v3309 = vunpack.c.l.b16 %v3141
      %v3310 = vunpack.c.h.b16 %v3141
      %v3311 = vunpack.c.l.b16 %v3142
      %v3312 = vunpack.c.h.b16 %v3142
      %v3313 = vunpack.c.l.b16 %v3143
      %v3314 = vunpack.c.h.b16 %v3143
      %v3315 = vunpack.c.l.b16 %v3144
      %v3316 = vunpack.c.h.b16 %v3144
      %v3317 = vunpack.c.l.b16 %v3145
      %v3318 = vunpack.c.h.b16 %v3145
      %v3319 = vunpack.c.l.b16 %v3146
      %v3320 = vunpack.c.h.b16 %v3146
      %v3321 = vpack.c.b16 %v3217, %v3213
      %v3322 = vpack.c.b16 %v3218, %v3214
      %v3323 = vpack.c.b16 %v3219, %v3215
      %v3324 = vpack.c.b16 %v3220, %v3216
      %v3325 = vpack.c.b16 %v3225, %v3221
      %v3326 = vpack.c.b16 %v3226, %v3222
      %v3327 = vpack.c.b16 %v3227, %v3223
      %v3328 = vpack.c.b16 %v3228, %v3224
      %v3329 = vpack.c.b16 %v3233, %v3229
      %v3330 = vpack.c.b16 %v3234, %v3230
      %v3331 = vpack.c.b16 %v3235, %v3231
      %v3332 = vpack.c.b16 %v3236, %v3232
      %v3333 = vpack.c.b16 %v3241, %v3237
      %v3334 = vpack.c.b16 %v3242, %v3238
      %v3335 = vpack.c.b16 %v3243, %v3239
      %v3336 = vpack.c.b16 %v3244, %v3240
      %v3337 = vpack.c.b16 %v3249, %v3245
      %v3338 = vpack.c.b16 %v3250, %v3246
      %v3339 = vpack.c.b16 %v3251, %v3247
      %v3340 = vpack.c.b16 %v3252, %v3248
      %v3341 = vpack.c.b16 %v3257, %v3253
      %v3342 = vpack.c.b16 %v3258, %v3254
      %v3343 = vpack.c.b16 %v3259, %v3255
      %v3344 = vpack.c.b16 %v3260, %v3256
      %v3345 = vpack.c.b16 %v3265, %v3261
      %v3346 = vpack.c.b16 %v3266, %v3262
      %v3347 = vpack.c.b16 %v3267, %v3263
      %v3348 = vpack.c.b16 %v3268, %v3264
      %v3349 = vpack.c.b16 %v3273, %v3269
      %v3350 = vpack.c.b16 %v3274, %v3270
      %v3351 = vpack.c.b16 %v3275, %v3271
      %v3352 = vpack.c.b16 %v3276, %v3272
      %v3353 = vpack.c.b16 %v3281, %v3277
      %v3354 = vpack.c.b16 %v3282, %v3278
      %v3355 = vpack.c.b16 %v3283, %v3279
      %v3356 = vpack.c.b16 %v3284, %v3280
      %v3357 = vpack.c.b16 %v3289, %v3285
      %v3358 = vpack.c.b16 %v3290, %v3286
      %v3359 = vpack.c.b16 %v3291, %v3287
      %v3360 = vpack.c.b16 %v3292, %v3288
      %v3361 = vpack.c.b16 %v3297, %v3293
      %v3362 = vpack.c.b16 %v3298, %v3294
      %v3363 = vpack.c.b16 %v3299, %v3295
      %v3364 = vpack.c.b16 %v3300, %v3296
      %v3365 = vpack.c.b16 %v3305, %v3301
      %v3366 = vpack.c.b16 %v3306, %v3302
      %v3367 = vpack.c.b16 %v3307, %v3303
      %v3368 = vpack.c.b16 %v3308, %v3304
      %v3369 = vpack.c.b16 %v3313, %v3309
      %v3370 = vpack.c.b16 %v3314, %v3310
      %v3371 = vpack.c.b16 %v3315, %v3311
      %v3372 = vpack.c.b16 %v3316, %v3312
      %v3373 = vpack.c.b16 %v3317, %v3317
      %v3374 = vpack.c.b16 %v3318, %v3318
      %v3375 = vpack.c.b16 %v3319, %v3319
      %v3376 = vpack.c.b16 %v3320, %v3320
      %v3430 = vsel %vm1224, %v3157, 0
      %v3433 = vsel %vm1228, %v3373, 0
      %v3436 = vsel %vm1228, %v3374, 0
      %v3439 = vsel %vm1228, %v3375, 0
      %v3442 = vsel %vm1228, %v3376, 0
      %3444 = vmatprep.subr.bf16.mxu0 %v3350
      %3445 = vmatpush1.bf16.msra.mxu0 %v3349
      %3446 = vmatprep.subr.bf16.mxu0 %v3346
      %3447 = vmatpush1.bf16.msra.mxu0 %v3345
      %3448 = vmatprep.subr.bf16.mxu0 %v3342
      %3449 = vmatpush1.bf16.msra.mxu0 %v3341
      %3450 = vmatprep.subr.bf16.mxu0 %v3338
      %3451 = vmatpush1.bf16.msra.mxu0 %v3337
      %3452 = vmatprep.subr.bf16.mxu0 %v3334
      %3453 = vmatpush1.bf16.msra.mxu0 %v3333
      %3454 = vmatprep.subr.bf16.mxu0 %v3330
      %3455 = vmatpush1.bf16.msra.mxu0 %v3329
      %3456 = vmatprep.subr.bf16.mxu0 %v3326
      %3457 = vmatpush1.bf16.msra.mxu0 %v3325
      %3458 = vmatprep.subr.bf16.mxu0 %v3322
      %3459 = vmatpush1.bf16.msra.mxu0 %v3321
      %3460 = vmatprep.subr.bf16.mxu0 0
      %3461 = vmatpush2.bf16.msra.mxu0 0
      %3462 = vmatprep.subr.bf16.mxu0 0
      %3463 = vmatpush2.bf16.msra.mxu0 0
      %3464 = vmatprep.subr.bf16.mxu0 %v3436
      %3465 = vmatpush2.bf16.msra.mxu0 %v3433
      %3466 = vmatprep.subr.bf16.mxu0 %v3370
      %3467 = vmatpush2.bf16.msra.mxu0 %v3369
      %3468 = vmatprep.subr.bf16.mxu0 %v3366
      %3469 = vmatpush2.bf16.msra.mxu0 %v3365
      %3470 = vmatprep.subr.bf16.mxu0 %v3362
      %3471 = vmatpush2.bf16.msra.mxu0 %v3361
      %3472 = vmatprep.subr.bf16.mxu0 %v3358
      %3473 = vmatpush2.bf16.msra.mxu0 %v3357
      %3474 = vmatprep.subr.bf16.mxu0 %v3354
      %3475 = vmatpush2.bf16.msra.mxu0 %v3353
      %3476 = vmatprep.mubr.bf16.mxu0 %v3430
      %3477 = vmatmul.mubr.bf16.gmra.mxu0 %v3156
      %v3478 = vpop.f32.mrf.mxu0
      %v3479 = vadd.f32 %v3151, %v3478
      %v3480 = vpop.f32.mrf.mxu0
      %v3481 = vadd.f32 %v3151, %v3480
      %v3482 = vpop.f32.mrf.mxu0
      %v3483 = vpop.f32.mrf.mxu0
      %3484 = vdwg.mxu0
      %3485 = vmatprep.subr.bf16.mxu0 %v3352
      %3486 = vmatpush1.bf16.msra.mxu0 %v3351
      %3487 = vmatprep.subr.bf16.mxu0 %v3348
      %3488 = vmatpush1.bf16.msra.mxu0 %v3347
      %3489 = vmatprep.subr.bf16.mxu0 %v3344
      %3490 = vmatpush1.bf16.msra.mxu0 %v3343
      %3491 = vmatprep.subr.bf16.mxu0 %v3340
      %3492 = vmatpush1.bf16.msra.mxu0 %v3339
      %3493 = vmatprep.subr.bf16.mxu0 %v3336
      %3494 = vmatpush1.bf16.msra.mxu0 %v3335
      %3495 = vmatprep.subr.bf16.mxu0 %v3332
      %3496 = vmatpush1.bf16.msra.mxu0 %v3331
      %3497 = vmatprep.subr.bf16.mxu0 %v3328
      %3498 = vmatpush1.bf16.msra.mxu0 %v3327
      %3499 = vmatprep.subr.bf16.mxu0 %v3324
      %3500 = vmatpush1.bf16.msra.mxu0 %v3323
      %3501 = vmatprep.subr.bf16.mxu0 0
      %3502 = vmatpush2.bf16.msra.mxu0 0
      %3503 = vmatprep.subr.bf16.mxu0 0
      %3504 = vmatpush2.bf16.msra.mxu0 0
      %3505 = vmatprep.subr.bf16.mxu0 %v3442
      %3506 = vmatpush2.bf16.msra.mxu0 %v3439
      %3507 = vmatprep.subr.bf16.mxu0 %v3372
      %3508 = vmatpush2.bf16.msra.mxu0 %v3371
      %3509 = vmatprep.subr.bf16.mxu0 %v3368
      %3510 = vmatpush2.bf16.msra.mxu0 %v3367
      %3511 = vmatprep.subr.bf16.mxu0 %v3364
      %3512 = vmatpush2.bf16.msra.mxu0 %v3363
      %3513 = vmatprep.subr.bf16.mxu0 %v3360
      %3514 = vmatpush2.bf16.msra.mxu0 %v3359
      %3515 = vmatprep.subr.bf16.mxu0 %v3356
      %3516 = vmatpush2.bf16.msra.mxu0 %v3355
      %3517 = vmatprep.mubr.bf16.mxu0 %v3430
      %3518 = vmatmul.mubr.bf16.gmra.mxu0 %v3156
      %v3519 = vpop.f32.mrf.mxu0
      %v3520 = vadd.f32 %v3151, %v3519
      %v3521 = vpop.f32.mrf.mxu0
      %v3522 = vadd.f32 %v3151, %v3521
      %v3523 = vpop.f32.mrf.mxu0
      %v3524 = vpop.f32.mrf.mxu0
      %3525 = vdwg.mxu0
      %vm3526 = vcmp.ge.f32.partialorder %v3479, 0.0
      %vm3527 = vcmp.ge.f32.partialorder %v3481, 0.0
      %vm3528 = vcmp.ge.f32.partialorder %v3520, 0.0
      %vm3529 = vcmp.ge.f32.partialorder %v3522, 0.0
      %v3530 = vmul.f32 %v3479, 0.01
      %v3531 = vmul.f32 %v3481, 0.01
      %v3532 = vmul.f32 %v3520, 0.01
      %v3533 = vmul.f32 %v3522, 0.01
      %v3534 = vsel %vm3526, %v3479, %v3530
      %v3535 = vsel %vm3527, %v3481, %v3531
      %v3536 = vsel %vm3528, %v3520, %v3532
      %v3537 = vsel %vm3529, %v3522, %v3533
      %3538 = vst [vmem:[%s251] sm:$0xff] %v3534
      %3539 = vst [vmem:[%s251 + $0x8] sm:$0xff] %v3535
      %3540 = vst [vmem:[%s251 + $0x10] sm:$0xff] %v3536
      %3541 = vst [vmem:[%s251 + $0x18] sm:$0xff] %v3537
      %v3542 = vld [vmem:[#allocation2 + $0x10] sm:$0xff]
      %v3543 = vld [vmem:[#allocation2 + $0x18] sm:$0xff]
      %v3544 = vld [vmem:[#allocation2 + $0x20] sm:$0xf]
      %3548 = vrot.lane.b32.xlu0 %v3542, 111
      %v3549 = vpop.permute.xlu0 %3548
      %3550 = vrot.lane.b32.xlu0 %v3543, 111
      %v3551 = vpop.permute.xlu0 %3550
      %3552 = vrot.lane.b32.xlu0 %v3544, 111
      %v3553 = vpop.permute.xlu0 %3552
      %v3554 = vrot.slane %v3549, 4
      %v3555 = vrot.slane %v3551, 4
      %v3556 = vrot.slane %v3553, 4
      %v3557 = vsel %vm277, %v3554, %v3555
      %v3558 = vsel %vm2487, %v3549, %v3557
      %v3559 = vsel %vm277, %v3555, %v3556
      %v3560 = vsel %vm2487, %v3551, %v3559
      %3563 = vst [vmem:[#allocation4] sm:$0xff] %v3558
      %3564 = vst [vmem:[#allocation4 + $0x8] sm:$0xff] %v3560
      %v3565 = vld [vmem:[#allocation2 + $0x10] sm:$0xff]
      %v3566 = vld [vmem:[#allocation2 + $0x18] sm:$0xff]
      %v3567 = vld [vmem:[#allocation2 + $0x20] sm:$0xf]
      %3571 = vrot.lane.b32.xlu0 %v3565, 110
      %v3572 = vpop.permute.xlu0 %3571
      %3573 = vrot.lane.b32.xlu0 %v3566, 110
      %v3574 = vpop.permute.xlu0 %3573
      %3575 = vrot.lane.b32.xlu0 %v3567, 110
      %v3576 = vpop.permute.xlu0 %3575
      %v3577 = vrot.slane %v3572, 4
      %v3578 = vrot.slane %v3574, 4
      %v3579 = vrot.slane %v3576, 4
      %v3580 = vsel %vm277, %v3577, %v3578
      %v3581 = vsel %vm2511, %v3572, %v3580
      %v3582 = vsel %vm277, %v3578, %v3579
      %v3583 = vsel %vm2511, %v3574, %v3582
      %3586 = vst [vmem:[#allocation4 + $0x10] sm:$0xff] %v3581
      %3587 = vst [vmem:[#allocation4 + $0x18] sm:$0xff] %v3583
      %v3588 = vld [vmem:[#allocation2 + $0x10] sm:$0xff]
      %v3589 = vld [vmem:[#allocation2 + $0x18] sm:$0xff]
      %v3590 = vld [vmem:[#allocation2 + $0x20] sm:$0xf]
      %3594 = vrot.lane.b32.xlu0 %v3588, 109
      %v3595 = vpop.permute.xlu0 %3594
      %3596 = vrot.lane.b32.xlu0 %v3589, 109
      %v3597 = vpop.permute.xlu0 %3596
      %3598 = vrot.lane.b32.xlu0 %v3590, 109
      %v3599 = vpop.permute.xlu0 %3598
      %v3600 = vrot.slane %v3595, 4
      %v3601 = vrot.slane %v3597, 4
      %v3602 = vrot.slane %v3599, 4
      %v3603 = vsel %vm277, %v3600, %v3601
      %v3604 = vsel %vm2535, %v3595, %v3603
      %v3605 = vsel %vm277, %v3601, %v3602
      %v3606 = vsel %vm2535, %v3597, %v3605
      %3609 = vst [vmem:[#allocation4 + $0x20] sm:$0xff] %v3604
      %3610 = vst [vmem:[#allocation4 + $0x28] sm:$0xff] %v3606
      %v3611 = vld [vmem:[#allocation2 + $0x10] sm:$0xff]
      %v3612 = vld [vmem:[#allocation2 + $0x18] sm:$0xff]
      %v3613 = vld [vmem:[#allocation2 + $0x20] sm:$0xf]
      %3617 = vrot.lane.b32.xlu0 %v3611, 101
      %v3618 = vpop.permute.xlu0 %3617
      %3619 = vrot.lane.b32.xlu0 %v3612, 101
      %v3620 = vpop.permute.xlu0 %3619
      %3621 = vrot.lane.b32.xlu0 %v3613, 101
      %v3622 = vpop.permute.xlu0 %3621
      %v3623 = vrot.slane %v3618, 4
      %v3624 = vrot.slane %v3620, 4
      %v3625 = vrot.slane %v3622, 4
      %v3626 = vsel %vm277, %v3623, %v3624
      %v3627 = vsel %vm2559, %v3618, %v3626
      %v3628 = vsel %vm277, %v3624, %v3625
      %v3629 = vsel %vm2559, %v3620, %v3628
      %3632 = vst [vmem:[#allocation4 + $0x30] sm:$0xff] %v3627
      %3633 = vst [vmem:[#allocation4 + $0x38] sm:$0xff] %v3629
      %v3634 = vld [vmem:[#allocation2 + $0x10] sm:$0xff]
      %v3635 = vld [vmem:[#allocation2 + $0x18] sm:$0xff]
      %v3636 = vld [vmem:[#allocation2 + $0x20] sm:$0xf]
      %3640 = vrot.lane.b32.xlu0 %v3634, 100
      %v3641 = vpop.permute.xlu0 %3640
      %3642 = vrot.lane.b32.xlu0 %v3635, 100
      %v3643 = vpop.permute.xlu0 %3642
      %3644 = vrot.lane.b32.xlu0 %v3636, 100
      %v3645 = vpop.permute.xlu0 %3644
      %v3646 = vrot.slane %v3641, 4
      %v3647 = vrot.slane %v3643, 4
      %v3648 = vrot.slane %v3645, 4
      %v3649 = vsel %vm277, %v3646, %v3647
      %v3650 = vsel %vm2583, %v3641, %v3649
      %v3651 = vsel %vm277, %v3647, %v3648
      %v3652 = vsel %vm2583, %v3643, %v3651
      %3655 = vst [vmem:[#allocation4 + $0x40] sm:$0xff] %v3650
      %3656 = vst [vmem:[#allocation4 + $0x48] sm:$0xff] %v3652
      %v3657 = vld [vmem:[#allocation2 + $0x10] sm:$0xff]
      %v3658 = vld [vmem:[#allocation2 + $0x18] sm:$0xff]
      %v3659 = vld [vmem:[#allocation2 + $0x20] sm:$0xf]
      %3663 = vrot.lane.b32.xlu0 %v3657, 99
      %v3664 = vpop.permute.xlu0 %3663
      %3665 = vrot.lane.b32.xlu0 %v3658, 99
      %v3666 = vpop.permute.xlu0 %3665
      %3667 = vrot.lane.b32.xlu0 %v3659, 99
      %v3668 = vpop.permute.xlu0 %3667
      %v3669 = vrot.slane %v3664, 4
      %v3670 = vrot.slane %v3666, 4
      %v3671 = vrot.slane %v3668, 4
      %v3672 = vsel %vm277, %v3669, %v3670
      %v3673 = vsel %vm2607, %v3664, %v3672
      %v3674 = vsel %vm277, %v3670, %v3671
      %v3675 = vsel %vm2607, %v3666, %v3674
      %3678 = vst [vmem:[#allocation4 + $0x50] sm:$0xff] %v3673
      %3679 = vst [vmem:[#allocation4 + $0x58] sm:$0xff] %v3675
      %v3680 = vld [vmem:[#allocation2 + $0x10] sm:$0xff]
      %v3681 = vld [vmem:[#allocation2 + $0x18] sm:$0xff]
      %v3682 = vld [vmem:[#allocation2 + $0x20] sm:$0xf]
      %3686 = vrot.lane.b32.xlu0 %v3680, 91
      %v3687 = vpop.permute.xlu0 %3686
      %3688 = vrot.lane.b32.xlu0 %v3681, 91
      %v3689 = vpop.permute.xlu0 %3688
      %3690 = vrot.lane.b32.xlu0 %v3682, 91
      %v3691 = vpop.permute.xlu0 %3690
      %v3692 = vrot.slane %v3687, 4
      %v3693 = vrot.slane %v3689, 4
      %v3694 = vrot.slane %v3691, 4
      %v3695 = vsel %vm277, %v3692, %v3693
      %v3696 = vsel %vm2631, %v3687, %v3695
      %v3697 = vsel %vm277, %v3693, %v3694
      %v3698 = vsel %vm2631, %v3689, %v3697
      %3701 = vst [vmem:[#allocation4 + $0x60] sm:$0xff] %v3696
      %3702 = vst [vmem:[#allocation4 + $0x68] sm:$0xff] %v3698
      %v3703 = vld [vmem:[#allocation2 + $0x10] sm:$0xff]
      %v3704 = vld [vmem:[#allocation2 + $0x18] sm:$0xff]
      %v3705 = vld [vmem:[#allocation2 + $0x20] sm:$0xf]
      %3709 = vrot.lane.b32.xlu0 %v3703, 90
      %v3710 = vpop.permute.xlu0 %3709
      %3711 = vrot.lane.b32.xlu0 %v3704, 90
      %v3712 = vpop.permute.xlu0 %3711
      %3713 = vrot.lane.b32.xlu0 %v3705, 90
      %v3714 = vpop.permute.xlu0 %3713
      %v3715 = vrot.slane %v3710, 4
      %v3716 = vrot.slane %v3712, 4
      %v3717 = vrot.slane %v3714, 4
      %v3718 = vsel %vm277, %v3715, %v3716
      %v3719 = vsel %vm2655, %v3710, %v3718
      %v3720 = vsel %vm277, %v3716, %v3717
      %v3721 = vsel %vm2655, %v3712, %v3720
      %3724 = vst [vmem:[#allocation4 + $0x70] sm:$0xff] %v3719
      %3725 = vst [vmem:[#allocation4 + $0x78] sm:$0xff] %v3721
      %v3726 = vld [vmem:[#allocation2 + $0x10] sm:$0xff]
      %v3727 = vld [vmem:[#allocation2 + $0x18] sm:$0xff]
      %v3728 = vld [vmem:[#allocation2 + $0x20] sm:$0xf]
      %3732 = vrot.lane.b32.xlu0 %v3726, 89
      %v3733 = vpop.permute.xlu0 %3732
      %3734 = vrot.lane.b32.xlu0 %v3727, 89
      %v3735 = vpop.permute.xlu0 %3734
      %3736 = vrot.lane.b32.xlu0 %v3728, 89
      %v3737 = vpop.permute.xlu0 %3736
      %v3738 = vrot.slane %v3733, 4
      %v3739 = vrot.slane %v3735, 4
      %v3740 = vrot.slane %v3737, 4
      %v3741 = vsel %vm277, %v3738, %v3739
      %v3742 = vsel %vm2679, %v3733, %v3741
      %v3743 = vsel %vm277, %v3739, %v3740
      %v3744 = vsel %vm2679, %v3735, %v3743
      %3747 = vst [vmem:[#allocation4 + $0x80] sm:$0xff] %v3742
      %3748 = vst [vmem:[#allocation4 + $0x88] sm:$0xff] %v3744
      %v3749 = vld [vmem:[#allocation2 + $0x10] sm:$0xff]
      %v3750 = vld [vmem:[#allocation2 + $0x18] sm:$0xff]
      %v3751 = vld [vmem:[#allocation2 + $0x20] sm:$0xf]
      %3755 = vrot.lane.b32.xlu0 %v3749, 11
      %v3756 = vpop.permute.xlu0 %3755
      %3757 = vrot.lane.b32.xlu0 %v3750, 11
      %v3758 = vpop.permute.xlu0 %3757
      %3759 = vrot.lane.b32.xlu0 %v3751, 11
      %v3760 = vpop.permute.xlu0 %3759
      %v3761 = vrot.slane %v3756, 4
      %v3762 = vrot.slane %v3758, 4
      %v3763 = vrot.slane %v3760, 4
      %v3764 = vsel %vm277, %v3761, %v3762
      %v3765 = vsel %vm2703, %v3756, %v3764
      %v3766 = vsel %vm277, %v3762, %v3763
      %v3767 = vsel %vm2703, %v3758, %v3766
      %3770 = vst [vmem:[#allocation4 + $0x90] sm:$0xff] %v3765
      %3771 = vst [vmem:[#allocation4 + $0x98] sm:$0xff] %v3767
      %v3772 = vld [vmem:[#allocation2 + $0x10] sm:$0xff]
      %v3773 = vld [vmem:[#allocation2 + $0x18] sm:$0xff]
      %v3774 = vld [vmem:[#allocation2 + $0x20] sm:$0xf]
      %3778 = vrot.lane.b32.xlu0 %v3772, 10
      %v3779 = vpop.permute.xlu0 %3778
      %3780 = vrot.lane.b32.xlu0 %v3773, 10
      %v3781 = vpop.permute.xlu0 %3780
      %3782 = vrot.lane.b32.xlu0 %v3774, 10
      %v3783 = vpop.permute.xlu0 %3782
      %v3784 = vrot.slane %v3779, 4
      %v3785 = vrot.slane %v3781, 4
      %v3786 = vrot.slane %v3783, 4
      %v3787 = vsel %vm277, %v3784, %v3785
      %v3788 = vsel %vm2727, %v3779, %v3787
      %v3789 = vsel %vm277, %v3785, %v3786
      %v3790 = vsel %vm2727, %v3781, %v3789
      %3793 = vst [vmem:[#allocation4 + $0xa0] sm:$0xff] %v3788
      %3794 = vst [vmem:[#allocation4 + $0xa8] sm:$0xff] %v3790
      %v3795 = vld [vmem:[#allocation2 + $0x10] sm:$0xff]
      %v3796 = vld [vmem:[#allocation2 + $0x18] sm:$0xff]
      %v3797 = vld [vmem:[#allocation2 + $0x20] sm:$0xf]
      %3801 = vrot.lane.b32.xlu0 %v3795, 9
      %v3802 = vpop.permute.xlu0 %3801
      %3803 = vrot.lane.b32.xlu0 %v3796, 9
      %v3804 = vpop.permute.xlu0 %3803
      %3805 = vrot.lane.b32.xlu0 %v3797, 9
      %v3806 = vpop.permute.xlu0 %3805
      %v3807 = vrot.slane %v3802, 4
      %v3808 = vrot.slane %v3804, 4
      %v3809 = vrot.slane %v3806, 4
      %v3810 = vsel %vm277, %v3807, %v3808
      %v3811 = vsel %vm2751, %v3802, %v3810
      %v3812 = vsel %vm277, %v3808, %v3809
      %v3813 = vsel %vm2751, %v3804, %v3812
      %3816 = vst [vmem:[#allocation4 + $0xb0] sm:$0xff] %v3811
      %3817 = vst [vmem:[#allocation4 + $0xb8] sm:$0xff] %v3813
      %v3818 = vld [vmem:[#allocation2 + $0x10] sm:$0xff]
      %v3819 = vld [vmem:[#allocation2 + $0x18] sm:$0xff]
      %v3820 = vld [vmem:[#allocation2 + $0x20] sm:$0xf]
      %3824 = vrot.lane.b32.xlu0 %v3818, 1
      %v3825 = vpop.permute.xlu0 %3824
      %3826 = vrot.lane.b32.xlu0 %v3819, 1
      %v3827 = vpop.permute.xlu0 %3826
      %3828 = vrot.lane.b32.xlu0 %v3820, 1
      %v3829 = vpop.permute.xlu0 %3828
      %v3830 = vrot.slane %v3825, 4
      %v3831 = vrot.slane %v3827, 4
      %v3832 = vrot.slane %v3829, 4
      %v3833 = vsel %vm277, %v3830, %v3831
      %v3834 = vsel %vm2775, %v3825, %v3833
      %v3835 = vsel %vm277, %v3831, %v3832
      %v3836 = vsel %vm2775, %v3827, %v3835
      %3839 = vst [vmem:[#allocation4 + $0xc0] sm:$0xff] %v3834
      %3840 = vst [vmem:[#allocation4 + $0xc8] sm:$0xff] %v3836
      %v3841 = vld [vmem:[#allocation2 + $0x14] sm:$0xff]
      %v3842 = vld [vmem:[#allocation2 + $0x1c] sm:$0xff]
      %3843 = vst [vmem:[#allocation4 + $0xd0] sm:$0xff] %v3841
      %3844 = vst [vmem:[#allocation4 + $0xd8] sm:$0xff] %v3842
      %v3845 = vld [vmem:[#allocation2 + $0x14] sm:$0xff]
      %v3846 = vld [vmem:[#allocation2 + $0x1c] sm:$0xff]
      %v3847 = vld [vmem:[#allocation2 + $0x24] sm:$0xf]
      %3851 = vrot.lane.b32.xlu0 %v3845, 127
      %v3852 = vpop.permute.xlu0 %3851
      %3853 = vrot.lane.b32.xlu0 %v3846, 127
      %v3854 = vpop.permute.xlu0 %3853
      %3855 = vrot.lane.b32.xlu0 %v3847, 127
      %v3856 = vpop.permute.xlu0 %3855
      %v3857 = vrot.slane %v3852, 4
      %v3858 = vrot.slane %v3854, 4
      %v3859 = vrot.slane %v3856, 4
      %v3860 = vsel %vm277, %v3857, %v3858
      %v3861 = vsel %vm279, %v3852, %v3860
      %v3862 = vsel %vm277, %v3858, %v3859
      %v3863 = vsel %vm279, %v3854, %v3862
      %3866 = vst [vmem:[#allocation4 + $0xe0] sm:$0xff] %v3861
      %3867 = vst [vmem:[#allocation4 + $0xe8] sm:$0xff] %v3863
      %v3868 = vld [vmem:[#allocation2 + $0x14] sm:$0xff]
      %v3869 = vld [vmem:[#allocation2 + $0x1c] sm:$0xff]
      %v3870 = vld [vmem:[#allocation2 + $0x24] sm:$0xf]
      %3874 = vrot.lane.b32.xlu0 %v3868, 119
      %v3875 = vpop.permute.xlu0 %3874
      %3876 = vrot.lane.b32.xlu0 %v3869, 119
      %v3877 = vpop.permute.xlu0 %3876
      %3878 = vrot.lane.b32.xlu0 %v3870, 119
      %v3879 = vpop.permute.xlu0 %3878
      %v3880 = vrot.slane %v3875, 4
      %v3881 = vrot.slane %v3877, 4
      %v3882 = vrot.slane %v3879, 4
      %v3883 = vsel %vm277, %v3880, %v3881
      %v3884 = vsel %vm2826, %v3875, %v3883
      %v3885 = vsel %vm277, %v3881, %v3882
      %v3886 = vsel %vm2826, %v3877, %v3885
      %3889 = vst [vmem:[#allocation4 + $0xf0] sm:$0xff] %v3884
      %3890 = vst [vmem:[#allocation4 + $0xf8] sm:$0xff] %v3886
      %v3891 = vld [vmem:[#allocation2 + $0x14] sm:$0xff]
      %v3892 = vld [vmem:[#allocation2 + $0x1c] sm:$0xff]
      %v3893 = vld [vmem:[#allocation2 + $0x24] sm:$0xf]
      %3897 = vrot.lane.b32.xlu0 %v3891, 118
      %v3898 = vpop.permute.xlu0 %3897
      %3899 = vrot.lane.b32.xlu0 %v3892, 118
      %v3900 = vpop.permute.xlu0 %3899
      %3901 = vrot.lane.b32.xlu0 %v3893, 118
      %v3902 = vpop.permute.xlu0 %3901
      %v3903 = vrot.slane %v3898, 4
      %v3904 = vrot.slane %v3900, 4
      %v3905 = vrot.slane %v3902, 4
      %v3906 = vsel %vm277, %v3903, %v3904
      %v3907 = vsel %vm327, %v3898, %v3906
      %v3908 = vsel %vm277, %v3904, %v3905
      %v3909 = vsel %vm327, %v3900, %v3908
      %3912 = vst [vmem:[#allocation4 + $0x100] sm:$0xff] %v3907
      %3913 = vst [vmem:[#allocation4 + $0x108] sm:$0xff] %v3909
      %v3914 = vld [vmem:[#allocation2 + $0x14] sm:$0xff]
      %v3915 = vld [vmem:[#allocation2 + $0x1c] sm:$0xff]
      %v3916 = vld [vmem:[#allocation2 + $0x24] sm:$0xf]
      %3920 = vrot.lane.b32.xlu0 %v3914, 117
      %v3921 = vpop.permute.xlu0 %3920
      %3922 = vrot.lane.b32.xlu0 %v3915, 117
      %v3923 = vpop.permute.xlu0 %3922
      %3924 = vrot.lane.b32.xlu0 %v3916, 117
      %v3925 = vpop.permute.xlu0 %3924
      %v3926 = vrot.slane %v3921, 4
      %v3927 = vrot.slane %v3923, 4
      %v3928 = vrot.slane %v3925, 4
      %v3929 = vsel %vm277, %v3926, %v3927
      %v3930 = vsel %vm351, %v3921, %v3929
      %v3931 = vsel %vm277, %v3927, %v3928
      %v3932 = vsel %vm351, %v3923, %v3931
      %3935 = vst [vmem:[#allocation4 + $0x110] sm:$0xff] %v3930
      %3936 = vst [vmem:[#allocation4 + $0x118] sm:$0xff] %v3932
      %v3937 = vld [vmem:[#allocation2 + $0x14] sm:$0xff]
      %v3938 = vld [vmem:[#allocation2 + $0x1c] sm:$0xff]
      %v3939 = vld [vmem:[#allocation2 + $0x24] sm:$0xf]
      %3943 = vrot.lane.b32.xlu0 %v3937, 39
      %v3944 = vpop.permute.xlu0 %3943
      %3945 = vrot.lane.b32.xlu0 %v3938, 39
      %v3946 = vpop.permute.xlu0 %3945
      %3947 = vrot.lane.b32.xlu0 %v3939, 39
      %v3948 = vpop.permute.xlu0 %3947
      %v3949 = vrot.slane %v3944, 4
      %v3950 = vrot.slane %v3946, 4
      %v3951 = vrot.slane %v3948, 4
      %v3952 = vsel %vm277, %v3949, %v3950
      %v3953 = vsel %vm2896, %v3944, %v3952
      %v3954 = vsel %vm277, %v3950, %v3951
      %v3955 = vsel %vm2896, %v3946, %v3954
      %3958 = vst [vmem:[#allocation4 + $0x120] sm:$0xff] %v3953
      %3959 = vst [vmem:[#allocation4 + $0x128] sm:$0xff] %v3955
      %v3960 = vld [vmem:[#allocation2 + $0x14] sm:$0xff]
      %v3961 = vld [vmem:[#allocation2 + $0x1c] sm:$0xff]
      %v3962 = vld [vmem:[#allocation2 + $0x24] sm:$0xf]
      %3966 = vrot.lane.b32.xlu0 %v3960, 38
      %v3967 = vpop.permute.xlu0 %3966
      %3968 = vrot.lane.b32.xlu0 %v3961, 38
      %v3969 = vpop.permute.xlu0 %3968
      %3970 = vrot.lane.b32.xlu0 %v3962, 38
      %v3971 = vpop.permute.xlu0 %3970
      %v3972 = vrot.slane %v3967, 4
      %v3973 = vrot.slane %v3969, 4
      %v3974 = vrot.slane %v3971, 4
      %v3975 = vsel %vm277, %v3972, %v3973
      %v3976 = vsel %vm2920, %v3967, %v3975
      %v3977 = vsel %vm277, %v3973, %v3974
      %v3978 = vsel %vm2920, %v3969, %v3977
      %3981 = vst [vmem:[#allocation4 + $0x130] sm:$0xff] %v3976
      %3982 = vst [vmem:[#allocation4 + $0x138] sm:$0xff] %v3978
      %v3983 = vld [vmem:[#allocation2 + $0x14] sm:$0xff]
      %v3984 = vld [vmem:[#allocation2 + $0x1c] sm:$0xff]
      %v3985 = vld [vmem:[#allocation2 + $0x24] sm:$0xf]
      %3989 = vrot.lane.b32.xlu0 %v3983, 37
      %v3990 = vpop.permute.xlu0 %3989
      %3991 = vrot.lane.b32.xlu0 %v3984, 37
      %v3992 = vpop.permute.xlu0 %3991
      %3993 = vrot.lane.b32.xlu0 %v3985, 37
      %v3994 = vpop.permute.xlu0 %3993
      %v3995 = vrot.slane %v3990, 4
      %v3996 = vrot.slane %v3992, 4
      %v3997 = vrot.slane %v3994, 4
      %v3998 = vsel %vm277, %v3995, %v3996
      %v3999 = vsel %vm2944, %v3990, %v3998
      %v4000 = vsel %vm277, %v3996, %v3997
      %v4001 = vsel %vm2944, %v3992, %v4000
      %4004 = vst [vmem:[#allocation4 + $0x140] sm:$0xff] %v3999
      %4005 = vst [vmem:[#allocation4 + $0x148] sm:$0xff] %v4001
      %v4006 = vld [vmem:[#allocation2 + $0x14] sm:$0xff]
      %v4007 = vld [vmem:[#allocation2 + $0x1c] sm:$0xff]
      %v4008 = vld [vmem:[#allocation2 + $0x24] sm:$0xf]
      %4012 = vrot.lane.b32.xlu0 %v4006, 29
      %v4013 = vpop.permute.xlu0 %4012
      %4014 = vrot.lane.b32.xlu0 %v4007, 29
      %v4015 = vpop.permute.xlu0 %4014
      %4016 = vrot.lane.b32.xlu0 %v4008, 29
      %v4017 = vpop.permute.xlu0 %4016
      %v4018 = vrot.slane %v4013, 4
      %v4019 = vrot.slane %v4015, 4
      %v4020 = vrot.slane %v4017, 4
      %v4021 = vsel %vm277, %v4018, %v4019
      %v4022 = vsel %vm2968, %v4013, %v4021
      %v4023 = vsel %vm277, %v4019, %v4020
      %v4024 = vsel %vm2968, %v4015, %v4023
      %4027 = vst [vmem:[#allocation4 + $0x150] sm:$0xff] %v4022
      %4028 = vst [vmem:[#allocation4 + $0x158] sm:$0xff] %v4024
      %v4029 = vld [vmem:[#allocation2 + $0x14] sm:$0xff]
      %v4030 = vld [vmem:[#allocation2 + $0x1c] sm:$0xff]
      %v4031 = vld [vmem:[#allocation2 + $0x24] sm:$0xf]
      %4035 = vrot.lane.b32.xlu0 %v4029, 28
      %v4036 = vpop.permute.xlu0 %4035
      %4037 = vrot.lane.b32.xlu0 %v4030, 28
      %v4038 = vpop.permute.xlu0 %4037
      %4039 = vrot.lane.b32.xlu0 %v4031, 28
      %v4040 = vpop.permute.xlu0 %4039
      %v4041 = vrot.slane %v4036, 4
      %v4042 = vrot.slane %v4038, 4
      %v4043 = vrot.slane %v4040, 4
      %v4044 = vsel %vm277, %v4041, %v4042
      %v4045 = vsel %vm471, %v4036, %v4044
      %v4046 = vsel %vm277, %v4042, %v4043
      %v4047 = vsel %vm471, %v4038, %v4046
      %4050 = vst [vmem:[#allocation4 + $0x160] sm:$0xff] %v4045
      %4051 = vst [vmem:[#allocation4 + $0x168] sm:$0xff] %v4047
      %v4052 = vld [vmem:[#allocation2 + $0x14] sm:$0xff]
      %v4053 = vld [vmem:[#allocation2 + $0x1c] sm:$0xff]
      %v4054 = vld [vmem:[#allocation2 + $0x24] sm:$0xf]
      %4058 = vrot.lane.b32.xlu0 %v4052, 27
      %v4059 = vpop.permute.xlu0 %4058
      %4060 = vrot.lane.b32.xlu0 %v4053, 27
      %v4061 = vpop.permute.xlu0 %4060
      %4062 = vrot.lane.b32.xlu0 %v4054, 27
      %v4063 = vpop.permute.xlu0 %4062
      %v4064 = vrot.slane %v4059, 4
      %v4065 = vrot.slane %v4061, 4
      %v4066 = vrot.slane %v4063, 4
      %v4067 = vsel %vm277, %v4064, %v4065
      %v4068 = vsel %vm495, %v4059, %v4067
      %v4069 = vsel %vm277, %v4065, %v4066
      %v4070 = vsel %vm495, %v4061, %v4069
      %4073 = vst [vmem:[#allocation4 + $0x170] sm:$0xff] %v4068
      %4074 = vst [vmem:[#allocation4 + $0x178] sm:$0xff] %v4070
      %v4075 = vld [vmem:[#allocation2 + $0x14] sm:$0xff]
      %v4076 = vld [vmem:[#allocation2 + $0x1c] sm:$0xff]
      %v4077 = vld [vmem:[#allocation2 + $0x24] sm:$0xf]
      %4081 = vrot.lane.b32.xlu0 %v4075, 19
      %v4082 = vpop.permute.xlu0 %4081
      %4083 = vrot.lane.b32.xlu0 %v4076, 19
      %v4084 = vpop.permute.xlu0 %4083
      %4085 = vrot.lane.b32.xlu0 %v4077, 19
      %v4086 = vpop.permute.xlu0 %4085
      %v4087 = vrot.slane %v4082, 4
      %v4088 = vrot.slane %v4084, 4
      %v4089 = vrot.slane %v4086, 4
      %v4090 = vsel %vm277, %v4087, %v4088
      %v4091 = vsel %vm3038, %v4082, %v4090
      %v4092 = vsel %vm277, %v4088, %v4089
      %v4093 = vsel %vm3038, %v4084, %v4092
      %4096 = vst [vmem:[#allocation4 + $0x180] sm:$0xff] %v4091
      %4097 = vst [vmem:[#allocation4 + $0x188] sm:$0xff] %v4093
      %v4098 = vld [vmem:[#allocation2 + $0x14] sm:$0xff]
      %v4099 = vld [vmem:[#allocation2 + $0x1c] sm:$0xff]
      %v4100 = vld [vmem:[#allocation2 + $0x24] sm:$0xf]
      %4104 = vrot.lane.b32.xlu0 %v4098, 18
      %v4105 = vpop.permute.xlu0 %4104
      %4106 = vrot.lane.b32.xlu0 %v4099, 18
      %v4107 = vpop.permute.xlu0 %4106
      %4108 = vrot.lane.b32.xlu0 %v4100, 18
      %v4109 = vpop.permute.xlu0 %4108
      %v4110 = vrot.slane %v4105, 4
      %v4111 = vrot.slane %v4107, 4
      %v4112 = vrot.slane %v4109, 4
      %v4113 = vsel %vm277, %v4110, %v4111
      %v4114 = vsel %vm543, %v4105, %v4113
      %v4115 = vsel %vm277, %v4111, %v4112
      %v4116 = vsel %vm543, %v4107, %v4115
      %4119 = vst [vmem:[#allocation4 + $0x190] sm:$0xff] %v4114
      %4120 = vst [vmem:[#allocation4 + $0x198] sm:$0xff] %v4116
      %v4121 = vld [vmem:[#allocation2 + $0x14] sm:$0xff]
      %v4122 = vld [vmem:[#allocation2 + $0x1c] sm:$0xff]
      %v4123 = vld [vmem:[#allocation2 + $0x24] sm:$0xf]
      %4127 = vrot.lane.b32.xlu0 %v4121, 17
      %v4128 = vpop.permute.xlu0 %4127
      %4129 = vrot.lane.b32.xlu0 %v4122, 17
      %v4130 = vpop.permute.xlu0 %4129
      %4131 = vrot.lane.b32.xlu0 %v4123, 17
      %v4132 = vpop.permute.xlu0 %4131
      %v4133 = vrot.slane %v4128, 4
      %v4134 = vrot.slane %v4130, 4
      %v4135 = vrot.slane %v4132, 4
      %v4136 = vsel %vm277, %v4133, %v4134
      %v4137 = vsel %vm567, %v4128, %v4136
      %v4138 = vsel %vm277, %v4134, %v4135
      %v4139 = vsel %vm567, %v4130, %v4138
      %4142 = vst [vmem:[#allocation4 + $0x1a0] sm:$0xff] %v4137
      %4143 = vst [vmem:[#allocation4 + $0x1a8] sm:$0xff] %v4139
      %v4144 = vld [vmem:[%s3] sm:$0xff]
      %v4145 = vld [vmem:[#allocation4] sm:$0xff]
      %v4146 = vld [vmem:[#allocation4 + $0x8] sm:$0xff]
      %v4147 = vld [vmem:[#allocation4 + $0x10] sm:$0xff]
      %v4148 = vld [vmem:[#allocation4 + $0x18] sm:$0xff]
      %v4149 = vld [vmem:[#allocation4 + $0x20] sm:$0xff]
      %v4150 = vld [vmem:[#allocation4 + $0x28] sm:$0xff]
      %v4151 = vld [vmem:[#allocation4 + $0x30] sm:$0xff]
      %v4152 = vld [vmem:[#allocation4 + $0x38] sm:$0xff]
      %v4153 = vld [vmem:[#allocation4 + $0x40] sm:$0xff]
      %v4154 = vld [vmem:[#allocation4 + $0x48] sm:$0xff]
      %v4155 = vld [vmem:[#allocation4 + $0x50] sm:$0xff]
      %v4156 = vld [vmem:[#allocation4 + $0x58] sm:$0xff]
      %v4157 = vld [vmem:[#allocation4 + $0x60] sm:$0xff]
      %v4158 = vld [vmem:[#allocation4 + $0x68] sm:$0xff]
      %v4159 = vld [vmem:[#allocation4 + $0x70] sm:$0xff]
      %v4160 = vld [vmem:[#allocation4 + $0x78] sm:$0xff]
      %v4161 = vld [vmem:[#allocation4 + $0x80] sm:$0xff]
      %v4162 = vld [vmem:[#allocation4 + $0x88] sm:$0xff]
      %v4163 = vld [vmem:[#allocation4 + $0x90] sm:$0xff]
      %v4164 = vld [vmem:[#allocation4 + $0x98] sm:$0xff]
      %v4165 = vld [vmem:[#allocation4 + $0xa0] sm:$0xff]
      %v4166 = vld [vmem:[#allocation4 + $0xa8] sm:$0xff]
      %v4167 = vld [vmem:[#allocation4 + $0xb0] sm:$0xff]
      %v4168 = vld [vmem:[#allocation4 + $0xb8] sm:$0xff]
      %v4169 = vld [vmem:[#allocation4 + $0xc0] sm:$0xff]
      %v4170 = vld [vmem:[#allocation4 + $0xc8] sm:$0xff]
      %v4171 = vld [vmem:[#allocation4 + $0xd0] sm:$0xff]
      %v4172 = vld [vmem:[#allocation4 + $0xd8] sm:$0xff]
      %v4173 = vld [vmem:[#allocation4 + $0xe0] sm:$0xff]
      %v4174 = vld [vmem:[#allocation4 + $0xe8] sm:$0xff]
      %v4175 = vld [vmem:[#allocation4 + $0xf0] sm:$0xff]
      %v4176 = vld [vmem:[#allocation4 + $0xf8] sm:$0xff]
      %v4177 = vld [vmem:[#allocation4 + $0x100] sm:$0xff]
      %v4178 = vld [vmem:[#allocation4 + $0x108] sm:$0xff]
      %v4179 = vld [vmem:[#allocation4 + $0x110] sm:$0xff]
      %v4180 = vld [vmem:[#allocation4 + $0x118] sm:$0xff]
      %v4181 = vld [vmem:[#allocation4 + $0x120] sm:$0xff]
      %v4182 = vld [vmem:[#allocation4 + $0x128] sm:$0xff]
      %v4183 = vld [vmem:[#allocation4 + $0x130] sm:$0xff]
      %v4184 = vld [vmem:[#allocation4 + $0x138] sm:$0xff]
      %v4185 = vld [vmem:[#allocation4 + $0x140] sm:$0xff]
      %v4186 = vld [vmem:[#allocation4 + $0x148] sm:$0xff]
      %v4187 = vld [vmem:[#allocation4 + $0x150] sm:$0xff]
      %v4188 = vld [vmem:[#allocation4 + $0x158] sm:$0xff]
      %v4189 = vld [vmem:[#allocation4 + $0x160] sm:$0xff]
      %v4190 = vld [vmem:[#allocation4 + $0x168] sm:$0xff]
      %v4191 = vld [vmem:[#allocation4 + $0x170] sm:$0xff]
      %v4192 = vld [vmem:[#allocation4 + $0x178] sm:$0xff]
      %v4193 = vld [vmem:[#allocation4 + $0x180] sm:$0xff]
      %v4194 = vld [vmem:[#allocation4 + $0x188] sm:$0xff]
      %v4195 = vld [vmem:[#allocation4 + $0x190] sm:$0xff]
      %v4196 = vld [vmem:[#allocation4 + $0x198] sm:$0xff]
      %v4197 = vld [vmem:[#allocation4 + $0x1a0] sm:$0xff]
      %v4198 = vld [vmem:[#allocation4 + $0x1a8] sm:$0xff]
      %v4199 = vld [vmem:[%s4] sm:$0xff]
      %4201 = vset.pattern.permute.xlu0 0
      %4202 = vperm.xlu0 %4201, %v4199
      %v4203 = vpop.permute.xlu0 %4202
      %v4206 = vunpack.c.l.b16 %v4144
      %v4207 = vunpack.c.h.b16 %v4144
      %v4208 = vpack.c.b16 %v4206, %v4206
      %v4209 = vpack.c.b16 %v4207, %v4207
      %v4265 = vunpack.c.l.b16 %v4145
      %v4266 = vunpack.c.h.b16 %v4145
      %v4267 = vunpack.c.l.b16 %v4146
      %v4268 = vunpack.c.h.b16 %v4146
      %v4269 = vunpack.c.l.b16 %v4147
      %v4270 = vunpack.c.h.b16 %v4147
      %v4271 = vunpack.c.l.b16 %v4148
      %v4272 = vunpack.c.h.b16 %v4148
      %v4273 = vunpack.c.l.b16 %v4149
      %v4274 = vunpack.c.h.b16 %v4149
      %v4275 = vunpack.c.l.b16 %v4150
      %v4276 = vunpack.c.h.b16 %v4150
      %v4277 = vunpack.c.l.b16 %v4151
      %v4278 = vunpack.c.h.b16 %v4151
      %v4279 = vunpack.c.l.b16 %v4152
      %v4280 = vunpack.c.h.b16 %v4152
      %v4281 = vunpack.c.l.b16 %v4153
      %v4282 = vunpack.c.h.b16 %v4153
      %v4283 = vunpack.c.l.b16 %v4154
      %v4284 = vunpack.c.h.b16 %v4154
      %v4285 = vunpack.c.l.b16 %v4155
      %v4286 = vunpack.c.h.b16 %v4155
      %v4287 = vunpack.c.l.b16 %v4156
      %v4288 = vunpack.c.h.b16 %v4156
      %v4289 = vunpack.c.l.b16 %v4157
      %v4290 = vunpack.c.h.b16 %v4157
      %v4291 = vunpack.c.l.b16 %v4158
      %v4292 = vunpack.c.h.b16 %v4158
      %v4293 = vunpack.c.l.b16 %v4159
      %v4294 = vunpack.c.h.b16 %v4159
      %v4295 = vunpack.c.l.b16 %v4160
      %v4296 = vunpack.c.h.b16 %v4160
      %v4297 = vunpack.c.l.b16 %v4161
      %v4298 = vunpack.c.h.b16 %v4161
      %v4299 = vunpack.c.l.b16 %v4162
      %v4300 = vunpack.c.h.b16 %v4162
      %v4301 = vunpack.c.l.b16 %v4163
      %v4302 = vunpack.c.h.b16 %v4163
      %v4303 = vunpack.c.l.b16 %v4164
      %v4304 = vunpack.c.h.b16 %v4164
      %v4305 = vunpack.c.l.b16 %v4165
      %v4306 = vunpack.c.h.b16 %v4165
      %v4307 = vunpack.c.l.b16 %v4166
      %v4308 = vunpack.c.h.b16 %v4166
      %v4309 = vunpack.c.l.b16 %v4167
      %v4310 = vunpack.c.h.b16 %v4167
      %v4311 = vunpack.c.l.b16 %v4168
      %v4312 = vunpack.c.h.b16 %v4168
      %v4313 = vunpack.c.l.b16 %v4169
      %v4314 = vunpack.c.h.b16 %v4169
      %v4315 = vunpack.c.l.b16 %v4170
      %v4316 = vunpack.c.h.b16 %v4170
      %v4317 = vunpack.c.l.b16 %v4171
      %v4318 = vunpack.c.h.b16 %v4171
      %v4319 = vunpack.c.l.b16 %v4172
      %v4320 = vunpack.c.h.b16 %v4172
      %v4321 = vunpack.c.l.b16 %v4173
      %v4322 = vunpack.c.h.b16 %v4173
      %v4323 = vunpack.c.l.b16 %v4174
      %v4324 = vunpack.c.h.b16 %v4174
      %v4325 = vunpack.c.l.b16 %v4175
      %v4326 = vunpack.c.h.b16 %v4175
      %v4327 = vunpack.c.l.b16 %v4176
      %v4328 = vunpack.c.h.b16 %v4176
      %v4329 = vunpack.c.l.b16 %v4177
      %v4330 = vunpack.c.h.b16 %v4177
      %v4331 = vunpack.c.l.b16 %v4178
      %v4332 = vunpack.c.h.b16 %v4178
      %v4333 = vunpack.c.l.b16 %v4179
      %v4334 = vunpack.c.h.b16 %v4179
      %v4335 = vunpack.c.l.b16 %v4180
      %v4336 = vunpack.c.h.b16 %v4180
      %v4337 = vunpack.c.l.b16 %v4181
      %v4338 = vunpack.c.h.b16 %v4181
      %v4339 = vunpack.c.l.b16 %v4182
      %v4340 = vunpack.c.h.b16 %v4182
      %v4341 = vunpack.c.l.b16 %v4183
      %v4342 = vunpack.c.h.b16 %v4183
      %v4343 = vunpack.c.l.b16 %v4184
      %v4344 = vunpack.c.h.b16 %v4184
      %v4345 = vunpack.c.l.b16 %v4185
      %v4346 = vunpack.c.h.b16 %v4185
      %v4347 = vunpack.c.l.b16 %v4186
      %v4348 = vunpack.c.h.b16 %v4186
      %v4349 = vunpack.c.l.b16 %v4187
      %v4350 = vunpack.c.h.b16 %v4187
      %v4351 = vunpack.c.l.b16 %v4188
      %v4352 = vunpack.c.h.b16 %v4188
      %v4353 = vunpack.c.l.b16 %v4189
      %v4354 = vunpack.c.h.b16 %v4189
      %v4355 = vunpack.c.l.b16 %v4190
      %v4356 = vunpack.c.h.b16 %v4190
      %v4357 = vunpack.c.l.b16 %v4191
      %v4358 = vunpack.c.h.b16 %v4191
      %v4359 = vunpack.c.l.b16 %v4192
      %v4360 = vunpack.c.h.b16 %v4192
      %v4361 = vunpack.c.l.b16 %v4193
      %v4362 = vunpack.c.h.b16 %v4193
      %v4363 = vunpack.c.l.b16 %v4194
      %v4364 = vunpack.c.h.b16 %v4194
      %v4365 = vunpack.c.l.b16 %v4195
      %v4366 = vunpack.c.h.b16 %v4195
      %v4367 = vunpack.c.l.b16 %v4196
      %v4368 = vunpack.c.h.b16 %v4196
      %v4369 = vunpack.c.l.b16 %v4197
      %v4370 = vunpack.c.h.b16 %v4197
      %v4371 = vunpack.c.l.b16 %v4198
      %v4372 = vunpack.c.h.b16 %v4198
      %v4373 = vpack.c.b16 %v4269, %v4265
      %v4374 = vpack.c.b16 %v4270, %v4266
      %v4375 = vpack.c.b16 %v4271, %v4267
      %v4376 = vpack.c.b16 %v4272, %v4268
      %v4377 = vpack.c.b16 %v4277, %v4273
      %v4378 = vpack.c.b16 %v4278, %v4274
      %v4379 = vpack.c.b16 %v4279, %v4275
      %v4380 = vpack.c.b16 %v4280, %v4276
      %v4381 = vpack.c.b16 %v4285, %v4281
      %v4382 = vpack.c.b16 %v4286, %v4282
      %v4383 = vpack.c.b16 %v4287, %v4283
      %v4384 = vpack.c.b16 %v4288, %v4284
      %v4385 = vpack.c.b16 %v4293, %v4289
      %v4386 = vpack.c.b16 %v4294, %v4290
      %v4387 = vpack.c.b16 %v4295, %v4291
      %v4388 = vpack.c.b16 %v4296, %v4292
      %v4389 = vpack.c.b16 %v4301, %v4297
      %v4390 = vpack.c.b16 %v4302, %v4298
      %v4391 = vpack.c.b16 %v4303, %v4299
      %v4392 = vpack.c.b16 %v4304, %v4300
      %v4393 = vpack.c.b16 %v4309, %v4305
      %v4394 = vpack.c.b16 %v4310, %v4306
      %v4395 = vpack.c.b16 %v4311, %v4307
      %v4396 = vpack.c.b16 %v4312, %v4308
      %v4397 = vpack.c.b16 %v4317, %v4313
      %v4398 = vpack.c.b16 %v4318, %v4314
      %v4399 = vpack.c.b16 %v4319, %v4315
      %v4400 = vpack.c.b16 %v4320, %v4316
      %v4401 = vpack.c.b16 %v4325, %v4321
      %v4402 = vpack.c.b16 %v4326, %v4322
      %v4403 = vpack.c.b16 %v4327, %v4323
      %v4404 = vpack.c.b16 %v4328, %v4324
      %v4405 = vpack.c.b16 %v4333, %v4329
      %v4406 = vpack.c.b16 %v4334, %v4330
      %v4407 = vpack.c.b16 %v4335, %v4331
      %v4408 = vpack.c.b16 %v4336, %v4332
      %v4409 = vpack.c.b16 %v4341, %v4337
      %v4410 = vpack.c.b16 %v4342, %v4338
      %v4411 = vpack.c.b16 %v4343, %v4339
      %v4412 = vpack.c.b16 %v4344, %v4340
      %v4413 = vpack.c.b16 %v4349, %v4345
      %v4414 = vpack.c.b16 %v4350, %v4346
      %v4415 = vpack.c.b16 %v4351, %v4347
      %v4416 = vpack.c.b16 %v4352, %v4348
      %v4417 = vpack.c.b16 %v4357, %v4353
      %v4418 = vpack.c.b16 %v4358, %v4354
      %v4419 = vpack.c.b16 %v4359, %v4355
      %v4420 = vpack.c.b16 %v4360, %v4356
      %v4421 = vpack.c.b16 %v4365, %v4361
      %v4422 = vpack.c.b16 %v4366, %v4362
      %v4423 = vpack.c.b16 %v4367, %v4363
      %v4424 = vpack.c.b16 %v4368, %v4364
      %v4425 = vpack.c.b16 %v4369, %v4369
      %v4426 = vpack.c.b16 %v4370, %v4370
      %v4427 = vpack.c.b16 %v4371, %v4371
      %v4428 = vpack.c.b16 %v4372, %v4372
      %v4482 = vsel %vm1224, %v4209, 0
      %v4485 = vsel %vm1228, %v4425, 0
      %v4488 = vsel %vm1228, %v4426, 0
      %v4491 = vsel %vm1228, %v4427, 0
      %v4494 = vsel %vm1228, %v4428, 0
      %4496 = vmatprep.subr.bf16.mxu0 %v4402
      %4497 = vmatpush1.bf16.msra.mxu0 %v4401
      %4498 = vmatprep.subr.bf16.mxu0 %v4398
      %4499 = vmatpush1.bf16.msra.mxu0 %v4397
      %4500 = vmatprep.subr.bf16.mxu0 %v4394
      %4501 = vmatpush1.bf16.msra.mxu0 %v4393
      %4502 = vmatprep.subr.bf16.mxu0 %v4390
      %4503 = vmatpush1.bf16.msra.mxu0 %v4389
      %4504 = vmatprep.subr.bf16.mxu0 %v4386
      %4505 = vmatpush1.bf16.msra.mxu0 %v4385
      %4506 = vmatprep.subr.bf16.mxu0 %v4382
      %4507 = vmatpush1.bf16.msra.mxu0 %v4381
      %4508 = vmatprep.subr.bf16.mxu0 %v4378
      %4509 = vmatpush1.bf16.msra.mxu0 %v4377
      %4510 = vmatprep.subr.bf16.mxu0 %v4374
      %4511 = vmatpush1.bf16.msra.mxu0 %v4373
      %4512 = vmatprep.subr.bf16.mxu0 0
      %4513 = vmatpush2.bf16.msra.mxu0 0
      %4514 = vmatprep.subr.bf16.mxu0 0
      %4515 = vmatpush2.bf16.msra.mxu0 0
      %4516 = vmatprep.subr.bf16.mxu0 %v4488
      %4517 = vmatpush2.bf16.msra.mxu0 %v4485
      %4518 = vmatprep.subr.bf16.mxu0 %v4422
      %4519 = vmatpush2.bf16.msra.mxu0 %v4421
      %4520 = vmatprep.subr.bf16.mxu0 %v4418
      %4521 = vmatpush2.bf16.msra.mxu0 %v4417
      %4522 = vmatprep.subr.bf16.mxu0 %v4414
      %4523 = vmatpush2.bf16.msra.mxu0 %v4413
      %4524 = vmatprep.subr.bf16.mxu0 %v4410
      %4525 = vmatpush2.bf16.msra.mxu0 %v4409
      %4526 = vmatprep.subr.bf16.mxu0 %v4406
      %4527 = vmatpush2.bf16.msra.mxu0 %v4405
      %4528 = vmatprep.mubr.bf16.mxu0 %v4482
      %4529 = vmatmul.mubr.bf16.gmra.mxu0 %v4208
      %v4530 = vpop.f32.mrf.mxu0
      %v4531 = vadd.f32 %v4203, %v4530
      %v4532 = vpop.f32.mrf.mxu0
      %v4533 = vadd.f32 %v4203, %v4532
      %v4534 = vpop.f32.mrf.mxu0
      %v4535 = vpop.f32.mrf.mxu0
      %4536 = vdwg.mxu0
      %4537 = vmatprep.subr.bf16.mxu0 %v4404
      %4538 = vmatpush1.bf16.msra.mxu0 %v4403
      %4539 = vmatprep.subr.bf16.mxu0 %v4400
      %4540 = vmatpush1.bf16.msra.mxu0 %v4399
      %4541 = vmatprep.subr.bf16.mxu0 %v4396
      %4542 = vmatpush1.bf16.msra.mxu0 %v4395
      %4543 = vmatprep.subr.bf16.mxu0 %v4392
      %4544 = vmatpush1.bf16.msra.mxu0 %v4391
      %4545 = vmatprep.subr.bf16.mxu0 %v4388
      %4546 = vmatpush1.bf16.msra.mxu0 %v4387
      %4547 = vmatprep.subr.bf16.mxu0 %v4384
      %4548 = vmatpush1.bf16.msra.mxu0 %v4383
      %4549 = vmatprep.subr.bf16.mxu0 %v4380
      %4550 = vmatpush1.bf16.msra.mxu0 %v4379
      %4551 = vmatprep.subr.bf16.mxu0 %v4376
      %4552 = vmatpush1.bf16.msra.mxu0 %v4375
      %4553 = vmatprep.subr.bf16.mxu0 0
      %4554 = vmatpush2.bf16.msra.mxu0 0
      %4555 = vmatprep.subr.bf16.mxu0 0
      %4556 = vmatpush2.bf16.msra.mxu0 0
      %4557 = vmatprep.subr.bf16.mxu0 %v4494
      %4558 = vmatpush2.bf16.msra.mxu0 %v4491
      %4559 = vmatprep.subr.bf16.mxu0 %v4424
      %4560 = vmatpush2.bf16.msra.mxu0 %v4423
      %4561 = vmatprep.subr.bf16.mxu0 %v4420
      %4562 = vmatpush2.bf16.msra.mxu0 %v4419
      %4563 = vmatprep.subr.bf16.mxu0 %v4416
      %4564 = vmatpush2.bf16.msra.mxu0 %v4415
      %4565 = vmatprep.subr.bf16.mxu0 %v4412
      %4566 = vmatpush2.bf16.msra.mxu0 %v4411
      %4567 = vmatprep.subr.bf16.mxu0 %v4408
      %4568 = vmatpush2.bf16.msra.mxu0 %v4407
      %4569 = vmatprep.mubr.bf16.mxu0 %v4482
      %4570 = vmatmul.mubr.bf16.gmra.mxu0 %v4208
      %v4571 = vpop.f32.mrf.mxu0
      %v4572 = vadd.f32 %v4203, %v4571
      %v4573 = vpop.f32.mrf.mxu0
      %v4574 = vadd.f32 %v4203, %v4573
      %v4575 = vpop.f32.mrf.mxu0
      %v4576 = vpop.f32.mrf.mxu0
      %4577 = vdwg.mxu0
      %vm4578 = vcmp.ge.f32.partialorder %v4531, 0.0
      %vm4579 = vcmp.ge.f32.partialorder %v4533, 0.0
      %vm4580 = vcmp.ge.f32.partialorder %v4572, 0.0
      %vm4581 = vcmp.ge.f32.partialorder %v4574, 0.0
      %v4582 = vmul.f32 %v4531, 0.01
      %v4583 = vmul.f32 %v4533, 0.01
      %v4584 = vmul.f32 %v4572, 0.01
      %v4585 = vmul.f32 %v4574, 0.01
      %v4586 = vsel %vm4578, %v4531, %v4582
      %v4587 = vsel %vm4579, %v4533, %v4583
      %v4588 = vsel %vm4580, %v4572, %v4584
      %v4589 = vsel %vm4581, %v4574, %v4585
      %4590 = vst [vmem:[%s251 + $0x20] sm:$0xff] %v4586
      %4591 = vst [vmem:[%s251 + $0x28] sm:$0xff] %v4587
      %4592 = vst [vmem:[%s251 + $0x30] sm:$0xff] %v4588
      %4593 = vst [vmem:[%s251 + $0x38] sm:$0xff] %v4589
      %p4594 = scmp.lt.s32.totalorder %s17, 1
      %s4595 = scalar_select %p4594, %s17, 1
      %s4596 = smul.addr %s4595, 8
      %s4597 = smul.addr %s4596, 8
      %s4598 = scalar_lea.vmem %s6, %s4597
      // Predicated region
      $region45: #{unet_box_forward.1} parent=43 // pred_check
        %p4599 = pneg %p166
      $region46: #{unet_box_forward.1} parent=43 // pred_check_branch
        %4601 = sbr.rel (%p4599) target = $region48
      $region47: #{unet_box_forward.1} parent=43 // pred_region
        _
      $region48: #{unet_box_forward.1} parent=43 // pred_fallthru
        _
    $region44: #{unet_box_forward.1} parent=5 // pred_fallthru
      _
    %p4602 = scmp.le.s32.totalorder 2, %s12
    // Predicated region
    $region49: #{unet_box_forward.1} parent=5 // pred_check
      %p4603 = pneg %p4602
    $region50: #{unet_box_forward.1} parent=5 // pred_check_branch
      %4605 = sbr.rel (%p4603) target = $region52
    $region51: #{unet_box_forward.1} parent=5 // pred_region
      %s4606 = ssub.s32 %s12, 2
      // Predicated region
      $region53: #{unet_box_forward.1} parent=51 // pred_check
        %p4607 = pneg %p172
      $region54: #{unet_box_forward.1} parent=51 // pred_check_branch
        %4609 = sbr.rel (%p4607) target = $region56
      $region55: #{unet_box_forward.1} parent=51 // pred_region
        %p4610 = scmp.lt.s32.totalorder %s18, 1
        %s4611 = scalar_select %p4610, %s18, 1
        %s4612 = smul.addr %s4611, 8
        %s4613 = smul.addr %s4612, 8
        %s4614 = scalar_lea.vmem %s6, %s4613
      $region56: #{unet_box_forward.1} parent=51 // pred_fallthru
        _
    $region52: #{unet_box_forward.1} parent=5 // pred_fallthru
      _
  $region6: #{unet_box_forward.1} parent=0 // loop_footer
    %s16 = sadd.s32 1, %s12
  $region7: #{unet_box_forward.1} parent=0 // loop_footer_branch
    %11 = sbr.rel target = $region3
  $region8: #{unet_box_forward.1} parent=0 // loop_exit
    _

</llo_original>
